<compile_context>
chip_gen: v7x
topology: tpu7x:2x2x1
jax: 0.10.0
libtpu: 0.0.40
codegen_flags: <defaults>
</compile_context>

<pallas_src>
import jax
import jax.numpy as jnp
from jax.experimental import pallas as pl
from jax.experimental.pallas import tpu as pltpu

# ---- small config consistent with VisionConfig semantics ----
B = 8            # batch (bumped so BS = 128 fills the MXU M-dim)
S = 16           # seq_len (num image tokens)
D = 128          # hidden_size
H = 4            # num_attention_heads
HD = D // H      # head_dim
I = 256          # intermediate_size
EPS = 1e-6       # layer_norm_eps
SCALE = HD ** (-0.5)
BS = B * S       # fused row dimension


def _layer_norm(x, gamma, beta):
    # population variance (PyTorch LayerNorm semantics), eps inside sqrt; f32
    mean = jnp.mean(x, axis=-1, keepdims=True)
    var = jnp.mean((x - mean) ** 2, axis=-1, keepdims=True)
    return (x - mean) * jax.lax.rsqrt(var + EPS) * gamma + beta


def _gelu_tanh(x):
    # F.gelu(x, approximate='tanh'); f32
    c = 0.7978845608028654  # sqrt(2/pi)
    return 0.5 * x * (1.0 + jnp.tanh(c * (x + 0.044715 * x * x * x)))


def encoder_layer_kernel(x_ref, mask_ref, ln1_g_ref, ln1_b_ref,
                         wqkv_ref, bqkv_ref, wo_ref, bo_ref,
                         ln2_g_ref, ln2_b_ref,
                         w1_ref, b1_ref, w2_ref, b2_ref, o_ref):
    x = x_ref[...]                                  # (BS, D) f32
    residual = x

    # ---- layer_norm1 (f32) ----
    xn = _layer_norm(x, ln1_g_ref[0], ln1_b_ref[0])
    xn_bf = xn.astype(jnp.bfloat16)

    # ---- fused, lane-dense QKV projection: one (BS,D)@(D,3D) matmul ----
    # wqkv columns: [q(head0..headH-1) | k(...) | v(...)]; the Q slab (weights
    # and bias) was pre-scaled by SCALE at parameter-prep time.
    qkv = jnp.dot(xn_bf, wqkv_ref[...],
                  preferred_element_type=jnp.float32) + bqkv_ref[0]   # (BS, 3D)

    mask = mask_ref[...]                            # (BS, BS) additive f32 mask
                                                    # (0 same batch, -1e30 cross)

    # ---- per-head attention: tiny static 32-lane slices of the qkv slab ----
    # attention_dropout = 0.0 -> dropout is identity.
    attn_heads = []
    for h in range(H):                              # H = 4, unrolled at trace time
        q_h = qkv[:, h * HD:(h + 1) * HD].astype(jnp.bfloat16)            # (BS, HD)
        k_h = qkv[:, D + h * HD:D + (h + 1) * HD].astype(jnp.bfloat16)    # (BS, HD)
        v_h = qkv[:, 2 * D + h * HD:2 * D + (h + 1) * HD].astype(jnp.bfloat16)

        # scores = q_h @ k_h.T, contracting last dims directly (no explicit .T)
        s = jax.lax.dot_general(q_h, k_h, (((1,), (1,)), ((), ())),
                                preferred_element_type=jnp.float32)       # (BS, BS)
        s = s + mask

        # softmax (f32)
        m = jnp.max(s, axis=-1, keepdims=True)
        p = jnp.exp(s - m)
        p = p * pl.reciprocal(jnp.sum(p, axis=-1, keepdims=True), approx=True)

        attn_heads.append(jnp.dot(p.astype(jnp.bfloat16), v_h,
                                  preferred_element_type=jnp.float32))    # (BS, HD)

    # reassemble heads lane-contiguously -> single full-depth out_proj matmul
    attn_cat = jnp.concatenate(attn_heads, axis=-1).astype(jnp.bfloat16)  # (BS, D)
    attn_out = jnp.dot(attn_cat, wo_ref[...],
                       preferred_element_type=jnp.float32) + bo_ref[0]    # (BS, D)

    # ---- residual 1 ----
    x2 = residual + attn_out

    # ---- layer_norm2 + MLP ----
    xn2 = _layer_norm(x2, ln2_g_ref[0], ln2_b_ref[0])
    h1 = jnp.dot(xn2.astype(jnp.bfloat16), w1_ref[...],
                 preferred_element_type=jnp.float32) + b1_ref[0]          # (BS, I)
    h1 = _gelu_tanh(h1)
    h2 = jnp.dot(h1.astype(jnp.bfloat16), w2_ref[...],
                 preferred_element_type=jnp.float32) + b2_ref[0]          # (BS, D)

    # ---- residual 2 ----
    o_ref[...] = (h2 + x2).astype(o_ref.dtype)


def prepare_params(params):
    """One-time parameter restructuring (done at load time, NOT per call)."""
    (ln1_g, ln1_b, wq, bq, wk, bk, wv, bv, wo, bo,
     ln2_g, ln2_b, w1, b1, w2, b2) = params

    # Fold the attention scale into the Q projection (free at prep time).
    wqkv = jnp.concatenate([wq * SCALE, wk, wv], axis=1).astype(jnp.bfloat16)  # (D, 3D)
    bqkv = jnp.concatenate([bq * SCALE, bk, bv], axis=1)                       # (1, 3D)

    # Additive block-diagonal mask: queries only attend to keys of the same
    # image (the batch is folded into the fused row dimension).
    row = jnp.arange(BS)[:, None] // S
    col = jnp.arange(BS)[None, :] // S
    mask = jnp.where(row == col, 0.0, -1e30).astype(jnp.float32)               # (BS, BS)

    return (mask, ln1_g, ln1_b, wqkv, bqkv,
            wo.astype(jnp.bfloat16), bo, ln2_g, ln2_b,
            w1.astype(jnp.bfloat16), b1, w2.astype(jnp.bfloat16), b2)


@jax.jit
def encoder_layer(x, prepared):
    x2d = x.reshape(BS, D)             # fold batch into rows (free in XLA)
    args = (x2d,) + tuple(prepared)

    # Single kernel invocation, no grid (grid steps cost ~0.35 us each, which
    # is significant at this size).  On v7x the second TensorCore idles —
    # acceptable / latency-optimal at BS=128; add a "parallel" row grid only
    # when many more rows are fused per call.
    # TODO(synk): overlap HBM->VMEM fetch of the MLP weights with attention via
    # memory_space=pl.ANY + make_async_copy if this stays a standalone call.
    out2d = pl.pallas_call(
        encoder_layer_kernel,
        out_shape=jax.ShapeDtypeStruct((BS, D), x.dtype),
        in_specs=[pl.BlockSpec(memory_space=pltpu.MemorySpace.VMEM)
                  for _ in args],
        out_specs=pl.BlockSpec(memory_space=pltpu.MemorySpace.VMEM),
    )(*args)
    return out2d.reshape(B, S, D)


# ---------------- pure-JAX f32 reference (for correctness check) ----------------
def reference(x, params):
    (ln1_g, ln1_b, wq, bq, wk, bk, wv, bv, wo, bo,
     ln2_g, ln2_b, w1, b1, w2, b2) = params

    def ln(x, g, b):
        m = jnp.mean(x, axis=-1, keepdims=True)
        v = jnp.mean((x - m) ** 2, axis=-1, keepdims=True)
        return (x - m) / jnp.sqrt(v + EPS) * g[0] + b[0]

    residual = x
    h = ln(x, ln1_g, ln1_b)
    q = h @ wq + bq[0]
    k = h @ wk + bk[0]
    v = h @ wv + bv[0]
    q = q.reshape(B, S, H, HD).transpose(0, 2, 1, 3)
    k = k.reshape(B, S, H, HD).transpose(0, 2, 1, 3)
    v = v.reshape(B, S, H, HD).transpose(0, 2, 1, 3)
    scores = jnp.einsum("bhqd,bhkd->bhqk", q, k) * SCALE
    p = jax.nn.softmax(scores, axis=-1)
    ao = jnp.einsum("bhqk,bhkd->bhqd", p, v)
    ao = ao.transpose(0, 2, 1, 3).reshape(B, S, D)
    ao = ao @ wo + bo[0]
    x2 = residual + ao
    h2 = ln(x2, ln2_g, ln2_b)
    m = h2 @ w1 + b1[0]
    c = 0.7978845608028654
    m = 0.5 * m * (1.0 + jnp.tanh(c * (m + 0.044715 * m ** 3)))
    out = m @ w2 + b2[0]
    return out + x2


if __name__ == "__main__":
    key = jax.random.PRNGKey(0)
    keys = jax.random.split(key, 12)

    x = jax.random.normal(keys[0], (B, S, D), dtype=jnp.float32)

    scale = 0.02
    params = (
        jnp.ones((1, D), jnp.float32),                                   # ln1 gamma
        jnp.zeros((1, D), jnp.float32),                                  # ln1 beta
        scale * jax.random.normal(keys[1], (D, D), jnp.float32),         # wq (in,out)
        scale * jax.random.normal(keys[2], (1, D), jnp.float32),         # bq
        scale * jax.random.normal(keys[3], (D, D), jnp.float32),         # wk
        scale * jax.random.normal(keys[4], (1, D), jnp.float32),         # bk
        scale * jax.random.normal(keys[5], (D, D), jnp.float32),         # wv
        scale * jax.random.normal(keys[6], (1, D), jnp.float32),         # bv
        scale * jax.random.normal(keys[7], (D, D), jnp.float32),         # wo
        scale * jax.random.normal(keys[8], (1, D), jnp.float32),         # bo
        jnp.ones((1, D), jnp.float32),                                   # ln2 gamma
        jnp.zeros((1, D), jnp.float32),                                  # ln2 beta
        scale * jax.random.normal(keys[9], (D, I), jnp.float32),         # fc1 w
        scale * jax.random.normal(keys[10], (1, I), jnp.float32),        # fc1 b
        scale * jax.random.normal(keys[11], (I, D), jnp.float32),        # fc2 w
        jnp.zeros((1, D), jnp.float32),                                  # fc2 b
    )

    # One-time parameter prep (outside the hot per-call path).
    prepared = jax.block_until_ready(
        jax.tree_util.tree_map(jnp.asarray, prepare_params(params)))

    out = jax.block_until_ready(encoder_layer(x, prepared))
    ref = jax.block_until_ready(reference(x, params))

    assert out.shape == (B, S, D)
    # Tolerance loosened vs the f32 reference because matmul operands are bf16
    # (f32 accumulation) and the softmax denominator uses the approx reciprocal.
    assert jnp.allclose(out, ref, atol=2e-2, rtol=2e-2), "mismatch vs reference"
    print("KERNEL_OK")
</pallas_src>

<mosaic_0001>
module attributes {stable_mosaic.version = 11 : i64} {
  func.func @encoder_layer_kernel(%arg0: memref<128x128xf32, #tpu.memory_space<vmem>>, %arg1: memref<128x128xf32, #tpu.memory_space<vmem>>, %arg2: memref<1x128xf32, #tpu.memory_space<vmem>>, %arg3: memref<1x128xf32, #tpu.memory_space<vmem>>, %arg4: memref<128x384xbf16, #tpu.memory_space<vmem>>, %arg5: memref<1x384xf32, #tpu.memory_space<vmem>>, %arg6: memref<128x128xbf16, #tpu.memory_space<vmem>>, %arg7: memref<1x128xf32, #tpu.memory_space<vmem>>, %arg8: memref<1x128xf32, #tpu.memory_space<vmem>>, %arg9: memref<1x128xf32, #tpu.memory_space<vmem>>, %arg10: memref<128x256xbf16, #tpu.memory_space<vmem>>, %arg11: memref<1x256xf32, #tpu.memory_space<vmem>>, %arg12: memref<256x128xbf16, #tpu.memory_space<vmem>>, %arg13: memref<1x128xf32, #tpu.memory_space<vmem>>, %arg14: memref<128x128xf32, #tpu.memory_space<vmem>>) attributes {dimension_semantics = [], scalar_prefetch = 0 : i64, scratch_operands = 0 : i64, tpu.core_type = #tpu.core_type<tc>} {
    %c0 = arith.constant 0 : index
    %c0_0 = arith.constant 0 : index
    %0 = vector.load %arg0[%c0, %c0_0] : memref<128x128xf32, #tpu.memory_space<vmem>>, vector<128x128xf32>
    %c0_1 = arith.constant 0 : index
    %c0_2 = arith.constant 0 : index
    %1 = vector.load %arg2[%c0_1, %c0_2] : memref<1x128xf32, #tpu.memory_space<vmem>>, vector<1x128xf32>
    %2 = vector.shape_cast %1 : vector<1x128xf32> to vector<128xf32>
    %c0_3 = arith.constant 0 : index
    %c0_4 = arith.constant 0 : index
    %3 = vector.load %arg3[%c0_3, %c0_4] : memref<1x128xf32, #tpu.memory_space<vmem>>, vector<1x128xf32>
    %4 = vector.shape_cast %3 : vector<1x128xf32> to vector<128xf32>
    %cst = arith.constant dense<0.000000e+00> : vector<128xf32>
    %5 = vector.multi_reduction <add>, %0, %cst [1] : vector<128x128xf32> to vector<128xf32>
    %6 = vector.shape_cast %5 : vector<128xf32> to vector<128x1xf32>
    %cst_5 = arith.constant 1.280000e+02 : f32
    %7 = vector.broadcast %cst_5 : f32 to vector<128x1xf32>
    %8 = arith.divf %6, %7 : vector<128x1xf32>
    %9 = vector.broadcast %8 : vector<128x1xf32> to vector<128x128xf32>
    %10 = arith.subf %0, %9 : vector<128x128xf32>
    %11 = arith.mulf %10, %10 : vector<128x128xf32>
    %cst_6 = arith.constant dense<0.000000e+00> : vector<128xf32>
    %12 = vector.multi_reduction <add>, %11, %cst_6 [1] : vector<128x128xf32> to vector<128xf32>
    %13 = vector.shape_cast %12 : vector<128xf32> to vector<128x1xf32>
    %cst_7 = arith.constant 1.280000e+02 : f32
    %14 = vector.broadcast %cst_7 : f32 to vector<128x1xf32>
    %15 = arith.divf %13, %14 : vector<128x1xf32>
    %16 = vector.broadcast %8 : vector<128x1xf32> to vector<128x128xf32>
    %17 = arith.subf %0, %16 : vector<128x128xf32>
    %cst_8 = arith.constant 9.99999997E-7 : f32
    %18 = vector.broadcast %cst_8 : f32 to vector<128x1xf32>
    %19 = arith.addf %15, %18 : vector<128x1xf32>
    %20 = math.rsqrt %19 : vector<128x1xf32>
    %21 = vector.broadcast %20 : vector<128x1xf32> to vector<128x128xf32>
    %22 = arith.mulf %17, %21 : vector<128x128xf32>
    %23 = vector.shape_cast %2 : vector<128xf32> to vector<1x128xf32>
    %24 = vector.broadcast %23 : vector<1x128xf32> to vector<128x128xf32>
    %25 = arith.mulf %22, %24 : vector<128x128xf32>
    %26 = vector.shape_cast %4 : vector<128xf32> to vector<1x128xf32>
    %27 = vector.broadcast %26 : vector<1x128xf32> to vector<128x128xf32>
    %28 = arith.addf %25, %27 : vector<128x128xf32>
    %29 = arith.truncf %28 : vector<128x128xf32> to vector<128x128xbf16>
    %c0_9 = arith.constant 0 : index
    %c0_10 = arith.constant 0 : index
    %30 = vector.load %arg4[%c0_9, %c0_10] : memref<128x384xbf16, #tpu.memory_space<vmem>>, vector<128x384xbf16>
    %cst_11 = arith.constant dense<0.000000e+00> : vector<128x384xf32>
    %31 = tpu.matmul %29, %30, %cst_11 {dimension_numbers = #tpu.dot_dimension_numbers<[1], [0], [0], [1], [0, 0, 1, 1], [], []>} : vector<128x128xbf16>, vector<128x384xbf16>, vector<128x384xf32> -> vector<128x384xf32>
    %c0_12 = arith.constant 0 : index
    %c0_13 = arith.constant 0 : index
    %32 = vector.load %arg5[%c0_12, %c0_13] : memref<1x384xf32, #tpu.memory_space<vmem>>, vector<1x384xf32>
    %33 = vector.shape_cast %32 : vector<1x384xf32> to vector<384xf32>
    %34 = vector.shape_cast %33 : vector<384xf32> to vector<1x384xf32>
    %35 = vector.broadcast %34 : vector<1x384xf32> to vector<128x384xf32>
    %36 = arith.addf %31, %35 : vector<128x384xf32>
    %c0_14 = arith.constant 0 : index
    %c0_15 = arith.constant 0 : index
    %37 = vector.load %arg1[%c0_14, %c0_15] : memref<128x128xf32, #tpu.memory_space<vmem>>, vector<128x128xf32>
    %38 = vector.extract_strided_slice %36 {offsets = [0, 0], sizes = [128, 32], strides = [1, 1]} : vector<128x384xf32> to vector<128x32xf32>
    %39 = arith.truncf %38 : vector<128x32xf32> to vector<128x32xbf16>
    %40 = vector.extract_strided_slice %36 {offsets = [0, 128], sizes = [128, 32], strides = [1, 1]} : vector<128x384xf32> to vector<128x32xf32>
    %41 = arith.truncf %40 : vector<128x32xf32> to vector<128x32xbf16>
    %42 = vector.extract_strided_slice %36 {offsets = [0, 256], sizes = [128, 32], strides = [1, 1]} : vector<128x384xf32> to vector<128x32xf32>
    %43 = arith.truncf %42 : vector<128x32xf32> to vector<128x32xbf16>
    %cst_16 = arith.constant dense<0.000000e+00> : vector<128x128xf32>
    %44 = tpu.matmul %39, %41, %cst_16 {dimension_numbers = #tpu.dot_dimension_numbers<[1], [1], [0], [0], [0, 0, 1, 0], [], []>} : vector<128x32xbf16>, vector<128x32xbf16>, vector<128x128xf32> -> vector<128x128xf32>
    %45 = arith.addf %44, %37 : vector<128x128xf32>
    %cst_17 = arith.constant dense<0xFF800000> : vector<128xf32>
    %46 = vector.multi_reduction <maximumf>, %45, %cst_17 [1] : vector<128x128xf32> to vector<128xf32>
    %47 = vector.shape_cast %46 : vector<128xf32> to vector<128x1xf32>
    %48 = vector.broadcast %47 : vector<128x1xf32> to vector<128x128xf32>
    %49 = arith.subf %45, %48 : vector<128x128xf32>
    %50 = math.exp %49 : vector<128x128xf32>
    %cst_18 = arith.constant dense<0.000000e+00> : vector<128xf32>
    %51 = vector.multi_reduction <add>, %50, %cst_18 [1] : vector<128x128xf32> to vector<128xf32>
    %52 = vector.shape_cast %51 : vector<128xf32> to vector<128x1xf32>
    %53 = tpu.reciprocal %52 {approx = true} : vector<128x1xf32> -> vector<128x1xf32>
    %54 = vector.broadcast %53 : vector<128x1xf32> to vector<128x128xf32>
    %55 = arith.mulf %50, %54 : vector<128x128xf32>
    %56 = arith.truncf %55 : vector<128x128xf32> to vector<128x128xbf16>
    %cst_19 = arith.constant dense<0.000000e+00> : vector<128x32xf32>
    %57 = tpu.matmul %56, %43, %cst_19 {dimension_numbers = #tpu.dot_dimension_numbers<[1], [0], [0], [1], [0, 0, 1, 1], [], []>} : vector<128x128xbf16>, vector<128x32xbf16>, vector<128x32xf32> -> vector<128x32xf32>
    %58 = vector.extract_strided_slice %36 {offsets = [0, 32], sizes = [128, 32], strides = [1, 1]} : vector<128x384xf32> to vector<128x32xf32>
    %59 = arith.truncf %58 : vector<128x32xf32> to vector<128x32xbf16>
    %60 = vector.extract_strided_slice %36 {offsets = [0, 160], sizes = [128, 32], strides = [1, 1]} : vector<128x384xf32> to vector<128x32xf32>
    %61 = arith.truncf %60 : vector<128x32xf32> to vector<128x32xbf16>
    %62 = vector.extract_strided_slice %36 {offsets = [0, 288], sizes = [128, 32], strides = [1, 1]} : vector<128x384xf32> to vector<128x32xf32>
    %63 = arith.truncf %62 : vector<128x32xf32> to vector<128x32xbf16>
    %cst_20 = arith.constant dense<0.000000e+00> : vector<128x128xf32>
    %64 = tpu.matmul %59, %61, %cst_20 {dimension_numbers = #tpu.dot_dimension_numbers<[1], [1], [0], [0], [0, 0, 1, 0], [], []>} : vector<128x32xbf16>, vector<128x32xbf16>, vector<128x128xf32> -> vector<128x128xf32>
    %65 = arith.addf %64, %37 : vector<128x128xf32>
    %cst_21 = arith.constant dense<0xFF800000> : vector<128xf32>
    %66 = vector.multi_reduction <maximumf>, %65, %cst_21 [1] : vector<128x128xf32> to vector<128xf32>
    %67 = vector.shape_cast %66 : vector<128xf32> to vector<128x1xf32>
    %68 = vector.broadcast %67 : vector<128x1xf32> to vector<128x128xf32>
    %69 = arith.subf %65, %68 : vector<128x128xf32>
    %70 = math.exp %69 : vector<128x128xf32>
    %cst_22 = arith.constant dense<0.000000e+00> : vector<128xf32>
    %71 = vector.multi_reduction <add>, %70, %cst_22 [1] : vector<128x128xf32> to vector<128xf32>
    %72 = vector.shape_cast %71 : vector<128xf32> to vector<128x1xf32>
    %73 = tpu.reciprocal %72 {approx = true} : vector<128x1xf32> -> vector<128x1xf32>
    %74 = vector.broadcast %73 : vector<128x1xf32> to vector<128x128xf32>
    %75 = arith.mulf %70, %74 : vector<128x128xf32>
    %76 = arith.truncf %75 : vector<128x128xf32> to vector<128x128xbf16>
    %cst_23 = arith.constant dense<0.000000e+00> : vector<128x32xf32>
    %77 = tpu.matmul %76, %63, %cst_23 {dimension_numbers = #tpu.dot_dimension_numbers<[1], [0], [0], [1], [0, 0, 1, 1], [], []>} : vector<128x128xbf16>, vector<128x32xbf16>, vector<128x32xf32> -> vector<128x32xf32>
    %78 = vector.extract_strided_slice %36 {offsets = [0, 64], sizes = [128, 32], strides = [1, 1]} : vector<128x384xf32> to vector<128x32xf32>
    %79 = arith.truncf %78 : vector<128x32xf32> to vector<128x32xbf16>
    %80 = vector.extract_strided_slice %36 {offsets = [0, 192], sizes = [128, 32], strides = [1, 1]} : vector<128x384xf32> to vector<128x32xf32>
    %81 = arith.truncf %80 : vector<128x32xf32> to vector<128x32xbf16>
    %82 = vector.extract_strided_slice %36 {offsets = [0, 320], sizes = [128, 32], strides = [1, 1]} : vector<128x384xf32> to vector<128x32xf32>
    %83 = arith.truncf %82 : vector<128x32xf32> to vector<128x32xbf16>
    %cst_24 = arith.constant dense<0.000000e+00> : vector<128x128xf32>
    %84 = tpu.matmul %79, %81, %cst_24 {dimension_numbers = #tpu.dot_dimension_numbers<[1], [1], [0], [0], [0, 0, 1, 0], [], []>} : vector<128x32xbf16>, vector<128x32xbf16>, vector<128x128xf32> -> vector<128x128xf32>
    %85 = arith.addf %84, %37 : vector<128x128xf32>
    %cst_25 = arith.constant dense<0xFF800000> : vector<128xf32>
    %86 = vector.multi_reduction <maximumf>, %85, %cst_25 [1] : vector<128x128xf32> to vector<128xf32>
    %87 = vector.shape_cast %86 : vector<128xf32> to vector<128x1xf32>
    %88 = vector.broadcast %87 : vector<128x1xf32> to vector<128x128xf32>
    %89 = arith.subf %85, %88 : vector<128x128xf32>
    %90 = math.exp %89 : vector<128x128xf32>
    %cst_26 = arith.constant dense<0.000000e+00> : vector<128xf32>
    %91 = vector.multi_reduction <add>, %90, %cst_26 [1] : vector<128x128xf32> to vector<128xf32>
    %92 = vector.shape_cast %91 : vector<128xf32> to vector<128x1xf32>
    %93 = tpu.reciprocal %92 {approx = true} : vector<128x1xf32> -> vector<128x1xf32>
    %94 = vector.broadcast %93 : vector<128x1xf32> to vector<128x128xf32>
    %95 = arith.mulf %90, %94 : vector<128x128xf32>
    %96 = arith.truncf %95 : vector<128x128xf32> to vector<128x128xbf16>
    %cst_27 = arith.constant dense<0.000000e+00> : vector<128x32xf32>
    %97 = tpu.matmul %96, %83, %cst_27 {dimension_numbers = #tpu.dot_dimension_numbers<[1], [0], [0], [1], [0, 0, 1, 1], [], []>} : vector<128x128xbf16>, vector<128x32xbf16>, vector<128x32xf32> -> vector<128x32xf32>
    %98 = vector.extract_strided_slice %36 {offsets = [0, 96], sizes = [128, 32], strides = [1, 1]} : vector<128x384xf32> to vector<128x32xf32>
    %99 = arith.truncf %98 : vector<128x32xf32> to vector<128x32xbf16>
    %100 = vector.extract_strided_slice %36 {offsets = [0, 224], sizes = [128, 32], strides = [1, 1]} : vector<128x384xf32> to vector<128x32xf32>
    %101 = arith.truncf %100 : vector<128x32xf32> to vector<128x32xbf16>
    %102 = vector.extract_strided_slice %36 {offsets = [0, 352], sizes = [128, 32], strides = [1, 1]} : vector<128x384xf32> to vector<128x32xf32>
    %103 = arith.truncf %102 : vector<128x32xf32> to vector<128x32xbf16>
    %cst_28 = arith.constant dense<0.000000e+00> : vector<128x128xf32>
    %104 = tpu.matmul %99, %101, %cst_28 {dimension_numbers = #tpu.dot_dimension_numbers<[1], [1], [0], [0], [0, 0, 1, 0], [], []>} : vector<128x32xbf16>, vector<128x32xbf16>, vector<128x128xf32> -> vector<128x128xf32>
    %105 = arith.addf %104, %37 : vector<128x128xf32>
    %cst_29 = arith.constant dense<0xFF800000> : vector<128xf32>
    %106 = vector.multi_reduction <maximumf>, %105, %cst_29 [1] : vector<128x128xf32> to vector<128xf32>
    %107 = vector.shape_cast %106 : vector<128xf32> to vector<128x1xf32>
    %108 = vector.broadcast %107 : vector<128x1xf32> to vector<128x128xf32>
    %109 = arith.subf %105, %108 : vector<128x128xf32>
    %110 = math.exp %109 : vector<128x128xf32>
    %cst_30 = arith.constant dense<0.000000e+00> : vector<128xf32>
    %111 = vector.multi_reduction <add>, %110, %cst_30 [1] : vector<128x128xf32> to vector<128xf32>
    %112 = vector.shape_cast %111 : vector<128xf32> to vector<128x1xf32>
    %113 = tpu.reciprocal %112 {approx = true} : vector<128x1xf32> -> vector<128x1xf32>
    %114 = vector.broadcast %113 : vector<128x1xf32> to vector<128x128xf32>
    %115 = arith.mulf %110, %114 : vector<128x128xf32>
    %116 = arith.truncf %115 : vector<128x128xf32> to vector<128x128xbf16>
    %cst_31 = arith.constant dense<0.000000e+00> : vector<128x32xf32>
    %117 = tpu.matmul %116, %103, %cst_31 {dimension_numbers = #tpu.dot_dimension_numbers<[1], [0], [0], [1], [0, 0, 1, 1], [], []>} : vector<128x128xbf16>, vector<128x32xbf16>, vector<128x32xf32> -> vector<128x32xf32>
    %118 = tpu.concatenate %57, %77, %97, %117 in 1 : vector<128x32xf32>, vector<128x32xf32>, vector<128x32xf32>, vector<128x32xf32> -> vector<128x128xf32>
    %119 = arith.truncf %118 : vector<128x128xf32> to vector<128x128xbf16>
    %c0_32 = arith.constant 0 : index
    %c0_33 = arith.constant 0 : index
    %120 = vector.load %arg6[%c0_32, %c0_33] : memref<128x128xbf16, #tpu.memory_space<vmem>>, vector<128x128xbf16>
    %cst_34 = arith.constant dense<0.000000e+00> : vector<128x128xf32>
    %121 = tpu.matmul %119, %120, %cst_34 {dimension_numbers = #tpu.dot_dimension_numbers<[1], [0], [0], [1], [0, 0, 1, 1], [], []>} : vector<128x128xbf16>, vector<128x128xbf16>, vector<128x128xf32> -> vector<128x128xf32>
    %c0_35 = arith.constant 0 : index
    %c0_36 = arith.constant 0 : index
    %122 = vector.load %arg7[%c0_35, %c0_36] : memref<1x128xf32, #tpu.memory_space<vmem>>, vector<1x128xf32>
    %123 = vector.shape_cast %122 : vector<1x128xf32> to vector<128xf32>
    %124 = vector.shape_cast %123 : vector<128xf32> to vector<1x128xf32>
    %125 = vector.broadcast %124 : vector<1x128xf32> to vector<128x128xf32>
    %126 = arith.addf %121, %125 : vector<128x128xf32>
    %127 = arith.addf %0, %126 : vector<128x128xf32>
    %c0_37 = arith.constant 0 : index
    %c0_38 = arith.constant 0 : index
    %128 = vector.load %arg8[%c0_37, %c0_38] : memref<1x128xf32, #tpu.memory_space<vmem>>, vector<1x128xf32>
    %129 = vector.shape_cast %128 : vector<1x128xf32> to vector<128xf32>
    %c0_39 = arith.constant 0 : index
    %c0_40 = arith.constant 0 : index
    %130 = vector.load %arg9[%c0_39, %c0_40] : memref<1x128xf32, #tpu.memory_space<vmem>>, vector<1x128xf32>
    %131 = vector.shape_cast %130 : vector<1x128xf32> to vector<128xf32>
    %cst_41 = arith.constant dense<0.000000e+00> : vector<128xf32>
    %132 = vector.multi_reduction <add>, %127, %cst_41 [1] : vector<128x128xf32> to vector<128xf32>
    %133 = vector.shape_cast %132 : vector<128xf32> to vector<128x1xf32>
    %cst_42 = arith.constant 1.280000e+02 : f32
    %134 = vector.broadcast %cst_42 : f32 to vector<128x1xf32>
    %135 = arith.divf %133, %134 : vector<128x1xf32>
    %136 = vector.broadcast %135 : vector<128x1xf32> to vector<128x128xf32>
    %137 = arith.subf %127, %136 : vector<128x128xf32>
    %138 = arith.mulf %137, %137 : vector<128x128xf32>
    %cst_43 = arith.constant dense<0.000000e+00> : vector<128xf32>
    %139 = vector.multi_reduction <add>, %138, %cst_43 [1] : vector<128x128xf32> to vector<128xf32>
    %140 = vector.shape_cast %139 : vector<128xf32> to vector<128x1xf32>
    %cst_44 = arith.constant 1.280000e+02 : f32
    %141 = vector.broadcast %cst_44 : f32 to vector<128x1xf32>
    %142 = arith.divf %140, %141 : vector<128x1xf32>
    %143 = vector.broadcast %135 : vector<128x1xf32> to vector<128x128xf32>
    %144 = arith.subf %127, %143 : vector<128x128xf32>
    %cst_45 = arith.constant 9.99999997E-7 : f32
    %145 = vector.broadcast %cst_45 : f32 to vector<128x1xf32>
    %146 = arith.addf %142, %145 : vector<128x1xf32>
    %147 = math.rsqrt %146 : vector<128x1xf32>
    %148 = vector.broadcast %147 : vector<128x1xf32> to vector<128x128xf32>
    %149 = arith.mulf %144, %148 : vector<128x128xf32>
    %150 = vector.shape_cast %129 : vector<128xf32> to vector<1x128xf32>
    %151 = vector.broadcast %150 : vector<1x128xf32> to vector<128x128xf32>
    %152 = arith.mulf %149, %151 : vector<128x128xf32>
    %153 = vector.shape_cast %131 : vector<128xf32> to vector<1x128xf32>
    %154 = vector.broadcast %153 : vector<1x128xf32> to vector<128x128xf32>
    %155 = arith.addf %152, %154 : vector<128x128xf32>
    %156 = arith.truncf %155 : vector<128x128xf32> to vector<128x128xbf16>
    %c0_46 = arith.constant 0 : index
    %c0_47 = arith.constant 0 : index
    %157 = vector.load %arg10[%c0_46, %c0_47] : memref<128x256xbf16, #tpu.memory_space<vmem>>, vector<128x256xbf16>
    %cst_48 = arith.constant dense<0.000000e+00> : vector<128x256xf32>
    %158 = tpu.matmul %156, %157, %cst_48 {dimension_numbers = #tpu.dot_dimension_numbers<[1], [0], [0], [1], [0, 0, 1, 1], [], []>} : vector<128x128xbf16>, vector<128x256xbf16>, vector<128x256xf32> -> vector<128x256xf32>
    %c0_49 = arith.constant 0 : index
    %c0_50 = arith.constant 0 : index
    %159 = vector.load %arg11[%c0_49, %c0_50] : memref<1x256xf32, #tpu.memory_space<vmem>>, vector<1x256xf32>
    %160 = vector.shape_cast %159 : vector<1x256xf32> to vector<256xf32>
    %161 = vector.shape_cast %160 : vector<256xf32> to vector<1x256xf32>
    %162 = vector.broadcast %161 : vector<1x256xf32> to vector<128x256xf32>
    %163 = arith.addf %158, %162 : vector<128x256xf32>
    %cst_51 = arith.constant 5.000000e-01 : f32
    %164 = vector.broadcast %cst_51 : f32 to vector<128x256xf32>
    %165 = arith.mulf %164, %163 : vector<128x256xf32>
    %cst_52 = arith.constant 4.471500e-02 : f32
    %166 = vector.broadcast %cst_52 : f32 to vector<128x256xf32>
    %167 = arith.mulf %166, %163 : vector<128x256xf32>
    %168 = arith.mulf %167, %163 : vector<128x256xf32>
    %169 = arith.mulf %168, %163 : vector<128x256xf32>
    %170 = arith.addf %163, %169 : vector<128x256xf32>
    %cst_53 = arith.constant 0.797884583 : f32
    %171 = vector.broadcast %cst_53 : f32 to vector<128x256xf32>
    %172 = arith.mulf %171, %170 : vector<128x256xf32>
    %173 = math.tanh %172 : vector<128x256xf32>
    %cst_54 = arith.constant 1.000000e+00 : f32
    %174 = vector.broadcast %cst_54 : f32 to vector<128x256xf32>
    %175 = arith.addf %174, %173 : vector<128x256xf32>
    %176 = arith.mulf %165, %175 : vector<128x256xf32>
    %177 = arith.truncf %176 : vector<128x256xf32> to vector<128x256xbf16>
    %c0_55 = arith.constant 0 : index
    %c0_56 = arith.constant 0 : index
    %178 = vector.load %arg12[%c0_55, %c0_56] : memref<256x128xbf16, #tpu.memory_space<vmem>>, vector<256x128xbf16>
    %cst_57 = arith.constant dense<0.000000e+00> : vector<128x128xf32>
    %179 = tpu.matmul %177, %178, %cst_57 {dimension_numbers = #tpu.dot_dimension_numbers<[1], [0], [0], [1], [0, 0, 1, 1], [], []>} : vector<128x256xbf16>, vector<256x128xbf16>, vector<128x128xf32> -> vector<128x128xf32>
    %c0_58 = arith.constant 0 : index
    %c0_59 = arith.constant 0 : index
    %180 = vector.load %arg13[%c0_58, %c0_59] : memref<1x128xf32, #tpu.memory_space<vmem>>, vector<1x128xf32>
    %181 = vector.shape_cast %180 : vector<1x128xf32> to vector<128xf32>
    %182 = vector.shape_cast %181 : vector<128xf32> to vector<1x128xf32>
    %183 = vector.broadcast %182 : vector<1x128xf32> to vector<128x128xf32>
    %184 = arith.addf %179, %183 : vector<128x128xf32>
    %185 = arith.addf %184, %127 : vector<128x128xf32>
    %c0_60 = arith.constant 0 : index
    %c0_61 = arith.constant 0 : index
    %186 = vector.load %arg14[%c0_60, %c0_61] : memref<128x128xf32, #tpu.memory_space<vmem>>, vector<128x128xf32>
    tpu.vector_store %arg14[%c0_60, %c0_61], %185 {strides = array<i32>} : memref<128x128xf32, #tpu.memory_space<vmem>>, vector<128x128xf32>,
    return
  }
}

</mosaic_0001>

<llo_original>
// kernel: encoder_layer.1
$region0: #{encoder_layer.1}
  #allocation0 [shape = 'u32[]', space=smem, size = 0x4, offset = 0x4, fixed_abs, tag = 'smem constant byte address 0x4 - core index']
  #allocation1 [shape = 'u32[144,128]{1,0:T(1,128)}', space=vmem, size = 0x12000, scoped, tag = 'internal scratch']
  %s0 = inlined_call_operand.hbm [shape: f32[128,128], index: 0, kind: input, shape index: {}]
  %s1 = inlined_call_operand.hbm [shape: f32[128,128], index: 1, kind: input, shape index: {}]
  %s2 = inlined_call_operand.vmem [shape: f32[1,128], index: 2, kind: input, shape index: {}]
  %s3 = inlined_call_operand.vmem [shape: f32[1,128], index: 3, kind: input, shape index: {}]
  %s4 = inlined_call_operand.hbm [shape: bf16[128,384], index: 4, kind: input, shape index: {}]
  %s5 = inlined_call_operand.vmem [shape: f32[1,384], index: 5, kind: input, shape index: {}]
  %s6 = inlined_call_operand.hbm [shape: bf16[128,128], index: 6, kind: input, shape index: {}]
  %s7 = inlined_call_operand.vmem [shape: f32[1,128], index: 7, kind: input, shape index: {}]
  %s8 = inlined_call_operand.vmem [shape: f32[1,128], index: 8, kind: input, shape index: {}]
  %s9 = inlined_call_operand.vmem [shape: f32[1,128], index: 9, kind: input, shape index: {}]
  %s10 = inlined_call_operand.hbm [shape: bf16[128,256], index: 10, kind: input, shape index: {}]
  %s11 = inlined_call_operand.vmem [shape: f32[1,256], index: 11, kind: input, shape index: {}]
  %s12 = inlined_call_operand.hbm [shape: bf16[256,128], index: 12, kind: input, shape index: {}]
  %s13 = inlined_call_operand.vmem [shape: f32[1,128], index: 13, kind: input, shape index: {}]
  %s14 = inlined_call_operand.hbm [shape: f32[128,128], index: 14, kind: output, shape index: {}]
  %s15 = sld [smem:[#allocation0]]
  $region90: #{encoder_layer.1} parent=0
    _
  %s17 = ssub.s32 1, %s15
  %s18 = scalar_select 0, %s17, %s15
  $region1: #{encoder_layer.1} parent=0
    #allocation2 [shape = 'u8[65536]{0}', space=vmem, size = 0x10000, scoped, tag = 'input window, operand 0, single buffered']
    #allocation3 [shape = 's32[1]{0}', space=sflag, size = 0x4, scoped, tag = 'scoped memory for encoder_layer.1']
    #allocation4 [shape = 's32[1]{0}', space=sflag, size = 0x4, scoped, tag = 'scoped memory for encoder_layer.1']
    #allocation5 [shape = 'u8[65536]{0}', space=vmem, size = 0x10000, scoped, tag = 'input window, operand 1, single buffered']
    #allocation6 [shape = 's32[1]{0}', space=sflag, size = 0x4, scoped, tag = 'scoped memory for encoder_layer.1']
    #allocation7 [shape = 'u8[98304]{0}', space=vmem, size = 0x18000, scoped, tag = 'input window, operand 4, single buffered']
    #allocation8 [shape = 'u8[32768]{0}', space=vmem, size = 0x8000, scoped, tag = 'input window, operand 6, single buffered']
    #allocation9 [shape = 's32[1]{0}', space=sflag, size = 0x4, scoped, tag = 'scoped memory for encoder_layer.1']
    #allocation10 [shape = 'u8[65536]{0}', space=vmem, size = 0x10000, scoped, tag = 'input window, operand 10, single buffered']
    #allocation11 [shape = 'u8[65536]{0}', space=vmem, size = 0x10000, scoped, tag = 'input window, operand 12, single buffered']
    #allocation12 [shape = 's32[1]{0}', space=sflag, size = 0x4, scoped, tag = 'scoped memory for encoder_layer.1']
    #allocation13 [shape = 'u8[65536]{0}', space=vmem, size = 0x10000, scoped, tag = 'output window, operand 0, single buffered']
    %19 = vsyncpa [#allocation3], 0
    %20 = vsyncpa [#allocation6], 0
    %21 = vsyncpa [#allocation9], 0
    %22 = vsyncpa [#allocation12], 0
    %23 = vsyncpa [#allocation4], 0
    // Predicated region
    $region2: #{encoder_layer.1} parent=1 // pred_check
      _
    $region3: #{encoder_layer.1} parent=1 // pred_check_branch
      %25 = sbr.rel (0) target = $region5
    $region4: #{encoder_layer.1} parent=1 // pred_region
      %s27 = ssub.s32 2048, 2048
      %28 = vsyncadd [#allocation3], %s27
      %s29 = sshll.u32 [#allocation2], 4
      %s30 = int_to_ptr.vmem [resolvable:$true] %s29
      %35 = dma.hbm_to_vmem [thread:$0]  %s0, 2048, %s30, [#allocation3], 128, 128, 8
    $region5: #{encoder_layer.1} parent=1 // pred_fallthru
      _
    // Predicated region
    $region6: #{encoder_layer.1} parent=1 // pred_check
      _
    $region7: #{encoder_layer.1} parent=1 // pred_check_branch
      %37 = sbr.rel (0) target = $region9
    $region8: #{encoder_layer.1} parent=1 // pred_region
      %s39 = ssub.s32 2048, 2048
      %40 = vsyncadd [#allocation6], %s39
      %s41 = sshll.u32 [#allocation5], 4
      %s42 = int_to_ptr.vmem [resolvable:$true] %s41
      %47 = dma.hbm_to_vmem [thread:$0]  %s1, 2048, %s42, [#allocation6], 128, 128, 8
    $region9: #{encoder_layer.1} parent=1 // pred_fallthru
      _
    // Predicated region
    $region10: #{encoder_layer.1} parent=1 // pred_check
      _
    $region11: #{encoder_layer.1} parent=1 // pred_check_branch
      %49 = sbr.rel (0) target = $region13
    $region12: #{encoder_layer.1} parent=1 // pred_region
      _
    $region13: #{encoder_layer.1} parent=1 // pred_fallthru
      _
    // Predicated region
    $region14: #{encoder_layer.1} parent=1 // pred_check
      _
    $region15: #{encoder_layer.1} parent=1 // pred_check_branch
      %51 = sbr.rel (0) target = $region17
    $region16: #{encoder_layer.1} parent=1 // pred_region
      _
    $region17: #{encoder_layer.1} parent=1 // pred_fallthru
      _
    // Predicated region
    $region18: #{encoder_layer.1} parent=1 // pred_check
      _
    $region19: #{encoder_layer.1} parent=1 // pred_check_branch
      %53 = sbr.rel (0) target = $region21
    $region20: #{encoder_layer.1} parent=1 // pred_region
      %s55 = ssub.s32 3072, 3072
      %56 = vsyncadd [#allocation6], %s55
      %s57 = sshll.u32 [#allocation7], 4
      %s58 = int_to_ptr.vmem [resolvable:$true] %s57
      %63 = dma.hbm_to_vmem [thread:$0]  %s4, 3072, %s58, [#allocation6], 192, 192, 12
    $region21: #{encoder_layer.1} parent=1 // pred_fallthru
      _
    // Predicated region
    $region22: #{encoder_layer.1} parent=1 // pred_check
      _
    $region23: #{encoder_layer.1} parent=1 // pred_check_branch
      %65 = sbr.rel (0) target = $region25
    $region24: #{encoder_layer.1} parent=1 // pred_region
      _
    $region25: #{encoder_layer.1} parent=1 // pred_fallthru
      _
    // Predicated region
    $region26: #{encoder_layer.1} parent=1 // pred_check
      _
    $region27: #{encoder_layer.1} parent=1 // pred_check_branch
      %67 = sbr.rel (0) target = $region29
    $region28: #{encoder_layer.1} parent=1 // pred_region
      %s69 = ssub.s32 1024, 1024
      %70 = vsyncadd [#allocation9], %s69
      %s71 = sshll.u32 [#allocation8], 4
      %s72 = int_to_ptr.vmem [resolvable:$true] %s71
      %77 = dma.hbm_to_vmem [thread:$0]  %s6, 1024, %s72, [#allocation9], 64, 64, 4
    $region29: #{encoder_layer.1} parent=1 // pred_fallthru
      _
    // Predicated region
    $region30: #{encoder_layer.1} parent=1 // pred_check
      _
    $region31: #{encoder_layer.1} parent=1 // pred_check_branch
      %79 = sbr.rel (0) target = $region33
    $region32: #{encoder_layer.1} parent=1 // pred_region
      _
    $region33: #{encoder_layer.1} parent=1 // pred_fallthru
      _
    // Predicated region
    $region34: #{encoder_layer.1} parent=1 // pred_check
      _
    $region35: #{encoder_layer.1} parent=1 // pred_check_branch
      %81 = sbr.rel (0) target = $region37
    $region36: #{encoder_layer.1} parent=1 // pred_region
      _
    $region37: #{encoder_layer.1} parent=1 // pred_fallthru
      _
    // Predicated region
    $region38: #{encoder_layer.1} parent=1 // pred_check
      _
    $region39: #{encoder_layer.1} parent=1 // pred_check_branch
      %83 = sbr.rel (0) target = $region41
    $region40: #{encoder_layer.1} parent=1 // pred_region
      _
    $region41: #{encoder_layer.1} parent=1 // pred_fallthru
      _
    // Predicated region
    $region42: #{encoder_layer.1} parent=1 // pred_check
      _
    $region43: #{encoder_layer.1} parent=1 // pred_check_branch
      %85 = sbr.rel (0) target = $region45
    $region44: #{encoder_layer.1} parent=1 // pred_region
      %s87 = ssub.s32 2048, 2048
      %88 = vsyncadd [#allocation9], %s87
      %s89 = sshll.u32 [#allocation10], 4
      %s90 = int_to_ptr.vmem [resolvable:$true] %s89
      %95 = dma.hbm_to_vmem [thread:$0]  %s10, 2048, %s90, [#allocation9], 128, 128, 8
    $region45: #{encoder_layer.1} parent=1 // pred_fallthru
      _
    // Predicated region
    $region46: #{encoder_layer.1} parent=1 // pred_check
      _
    $region47: #{encoder_layer.1} parent=1 // pred_check_branch
      %97 = sbr.rel (0) target = $region49
    $region48: #{encoder_layer.1} parent=1 // pred_region
      _
    $region49: #{encoder_layer.1} parent=1 // pred_fallthru
      _
    // Predicated region
    $region50: #{encoder_layer.1} parent=1 // pred_check
      _
    $region51: #{encoder_layer.1} parent=1 // pred_check_branch
      %99 = sbr.rel (0) target = $region53
    $region52: #{encoder_layer.1} parent=1 // pred_region
      %s101 = ssub.s32 2048, 2048
      %102 = vsyncadd [#allocation12], %s101
      %s103 = sshll.u32 [#allocation11], 4
      %s104 = int_to_ptr.vmem [resolvable:$true] %s103
      %109 = dma.hbm_to_vmem [thread:$0]  %s12, 2048, %s104, [#allocation12], 64, 64, 4
    $region53: #{encoder_layer.1} parent=1 // pred_fallthru
      _
    // Predicated region
    $region54: #{encoder_layer.1} parent=1 // pred_check
      _
    $region55: #{encoder_layer.1} parent=1 // pred_check_branch
      %111 = sbr.rel (0) target = $region57
    $region56: #{encoder_layer.1} parent=1 // pred_region
      _
    $region57: #{encoder_layer.1} parent=1 // pred_fallthru
      _
    // Predicated region
    $region58: #{encoder_layer.1} parent=1 // pred_check
      _
    $region59: #{encoder_layer.1} parent=1 // pred_check_branch
      %113 = sbr.rel (0) target = $region61
    $region60: #{encoder_layer.1} parent=1 // pred_region
      %114 = dma.done [#allocation3], 2048
    $region61: #{encoder_layer.1} parent=1 // pred_fallthru
      _
    // Predicated region
    $region62: #{encoder_layer.1} parent=1 // pred_check
      _
    $region63: #{encoder_layer.1} parent=1 // pred_check_branch
      %116 = sbr.rel (0) target = $region65
    $region64: #{encoder_layer.1} parent=1 // pred_region
      %117 = dma.done [#allocation6], 2048
    $region65: #{encoder_layer.1} parent=1 // pred_fallthru
      _
    // Predicated region
    $region66: #{encoder_layer.1} parent=1 // pred_check
      _
    $region67: #{encoder_layer.1} parent=1 // pred_check_branch
      %119 = sbr.rel (0) target = $region69
    $region68: #{encoder_layer.1} parent=1 // pred_region
      %120 = dma.done [#allocation6], 3072
    $region69: #{encoder_layer.1} parent=1 // pred_fallthru
      _
    // Predicated region
    $region70: #{encoder_layer.1} parent=1 // pred_check
      _
    $region71: #{encoder_layer.1} parent=1 // pred_check_branch
      %122 = sbr.rel (0) target = $region73
    $region72: #{encoder_layer.1} parent=1 // pred_region
      %123 = dma.done [#allocation9], 1024
    $region73: #{encoder_layer.1} parent=1 // pred_fallthru
      _
    // Predicated region
    $region74: #{encoder_layer.1} parent=1 // pred_check
      _
    $region75: #{encoder_layer.1} parent=1 // pred_check_branch
      %125 = sbr.rel (0) target = $region77
    $region76: #{encoder_layer.1} parent=1 // pred_region
      %126 = dma.done [#allocation9], 2048
    $region77: #{encoder_layer.1} parent=1 // pred_fallthru
      _
    // Predicated region
    $region78: #{encoder_layer.1} parent=1 // pred_check
      _
    $region79: #{encoder_layer.1} parent=1 // pred_check_branch
      %128 = sbr.rel (0) target = $region81
    $region80: #{encoder_layer.1} parent=1 // pred_region
      %129 = dma.done [#allocation12], 2048
    $region81: #{encoder_layer.1} parent=1 // pred_fallthru
      _
    %v131 = vld [vmem:[#allocation2] sm:$0xff]
    %v132 = vld [vmem:[#allocation2 + $0x8] sm:$0xff]
    %v133 = vld [vmem:[#allocation2 + $0x10] sm:$0xff]
    %v134 = vld [vmem:[#allocation2 + $0x18] sm:$0xff]
    %v135 = vld [vmem:[#allocation2 + $0x20] sm:$0xff]
    %v136 = vld [vmem:[#allocation2 + $0x28] sm:$0xff]
    %v137 = vld [vmem:[#allocation2 + $0x30] sm:$0xff]
    %v138 = vld [vmem:[#allocation2 + $0x38] sm:$0xff]
    %v139 = vld [vmem:[#allocation2 + $0x40] sm:$0xff]
    %v140 = vld [vmem:[#allocation2 + $0x48] sm:$0xff]
    %v141 = vld [vmem:[#allocation2 + $0x50] sm:$0xff]
    %v142 = vld [vmem:[#allocation2 + $0x58] sm:$0xff]
    %v143 = vld [vmem:[#allocation2 + $0x60] sm:$0xff]
    %v144 = vld [vmem:[#allocation2 + $0x68] sm:$0xff]
    %v145 = vld [vmem:[#allocation2 + $0x70] sm:$0xff]
    %v146 = vld [vmem:[#allocation2 + $0x78] sm:$0xff]
    %v147 = vld [vmem:[%s2] sm:$0x1]
    %v148 = vld [vmem:[%s3] sm:$0x1]
    %149 = vadd.xlane.f32.xlu0 %v131
    %v150 = vpop.xlane.xlu0 %149
    %151 = vadd.xlane.f32.xlu0 %v132
    %v152 = vpop.xlane.xlu0 %151
    %153 = vadd.xlane.f32.xlu0 %v133
    %v154 = vpop.xlane.xlu0 %153
    %155 = vadd.xlane.f32.xlu0 %v134
    %v156 = vpop.xlane.xlu0 %155
    %157 = vadd.xlane.f32.xlu0 %v135
    %v158 = vpop.xlane.xlu0 %157
    %159 = vadd.xlane.f32.xlu0 %v136
    %v160 = vpop.xlane.xlu0 %159
    %161 = vadd.xlane.f32.xlu0 %v137
    %v162 = vpop.xlane.xlu0 %161
    %163 = vadd.xlane.f32.xlu0 %v138
    %v164 = vpop.xlane.xlu0 %163
    %165 = vadd.xlane.f32.xlu0 %v139
    %v166 = vpop.xlane.xlu0 %165
    %167 = vadd.xlane.f32.xlu0 %v140
    %v168 = vpop.xlane.xlu0 %167
    %169 = vadd.xlane.f32.xlu0 %v141
    %v170 = vpop.xlane.xlu0 %169
    %171 = vadd.xlane.f32.xlu0 %v142
    %v172 = vpop.xlane.xlu0 %171
    %173 = vadd.xlane.f32.xlu0 %v143
    %v174 = vpop.xlane.xlu0 %173
    %175 = vadd.xlane.f32.xlu0 %v144
    %v176 = vpop.xlane.xlu0 %175
    %177 = vadd.xlane.f32.xlu0 %v145
    %v178 = vpop.xlane.xlu0 %177
    %179 = vadd.xlane.f32.xlu0 %v146
    %v180 = vpop.xlane.xlu0 %179
    %v181 = vrcp.pop 128.0
    %v182 = vmul.f32 %v150, %v181
    %v183 = vmul.f32 %v152, %v181
    %v184 = vmul.f32 %v154, %v181
    %v185 = vmul.f32 %v156, %v181
    %v186 = vmul.f32 %v158, %v181
    %v187 = vmul.f32 %v160, %v181
    %v188 = vmul.f32 %v162, %v181
    %v189 = vmul.f32 %v164, %v181
    %v190 = vmul.f32 %v166, %v181
    %v191 = vmul.f32 %v168, %v181
    %v192 = vmul.f32 %v170, %v181
    %v193 = vmul.f32 %v172, %v181
    %v194 = vmul.f32 %v174, %v181
    %v195 = vmul.f32 %v176, %v181
    %v196 = vmul.f32 %v178, %v181
    %v197 = vmul.f32 %v180, %v181
    %v198 = vsub.f32 %v131, %v182
    %v199 = vsub.f32 %v132, %v183
    %v200 = vsub.f32 %v133, %v184
    %v201 = vsub.f32 %v134, %v185
    %v202 = vsub.f32 %v135, %v186
    %v203 = vsub.f32 %v136, %v187
    %v204 = vsub.f32 %v137, %v188
    %v205 = vsub.f32 %v138, %v189
    %v206 = vsub.f32 %v139, %v190
    %v207 = vsub.f32 %v140, %v191
    %v208 = vsub.f32 %v141, %v192
    %v209 = vsub.f32 %v142, %v193
    %v210 = vsub.f32 %v143, %v194
    %v211 = vsub.f32 %v144, %v195
    %v212 = vsub.f32 %v145, %v196
    %v213 = vsub.f32 %v146, %v197
    %v214 = vmul.f32 %v198, %v198
    %v215 = vmul.f32 %v199, %v199
    %v216 = vmul.f32 %v200, %v200
    %v217 = vmul.f32 %v201, %v201
    %v218 = vmul.f32 %v202, %v202
    %v219 = vmul.f32 %v203, %v203
    %v220 = vmul.f32 %v204, %v204
    %v221 = vmul.f32 %v205, %v205
    %v222 = vmul.f32 %v206, %v206
    %v223 = vmul.f32 %v207, %v207
    %v224 = vmul.f32 %v208, %v208
    %v225 = vmul.f32 %v209, %v209
    %v226 = vmul.f32 %v210, %v210
    %v227 = vmul.f32 %v211, %v211
    %v228 = vmul.f32 %v212, %v212
    %v229 = vmul.f32 %v213, %v213
    %230 = vadd.xlane.f32.xlu0 %v214
    %v231 = vpop.xlane.xlu0 %230
    %232 = vadd.xlane.f32.xlu0 %v215
    %v233 = vpop.xlane.xlu0 %232
    %234 = vadd.xlane.f32.xlu0 %v216
    %v235 = vpop.xlane.xlu0 %234
    %236 = vadd.xlane.f32.xlu0 %v217
    %v237 = vpop.xlane.xlu0 %236
    %238 = vadd.xlane.f32.xlu0 %v218
    %v239 = vpop.xlane.xlu0 %238
    %240 = vadd.xlane.f32.xlu0 %v219
    %v241 = vpop.xlane.xlu0 %240
    %242 = vadd.xlane.f32.xlu0 %v220
    %v243 = vpop.xlane.xlu0 %242
    %244 = vadd.xlane.f32.xlu0 %v221
    %v245 = vpop.xlane.xlu0 %244
    %246 = vadd.xlane.f32.xlu0 %v222
    %v247 = vpop.xlane.xlu0 %246
    %248 = vadd.xlane.f32.xlu0 %v223
    %v249 = vpop.xlane.xlu0 %248
    %250 = vadd.xlane.f32.xlu0 %v224
    %v251 = vpop.xlane.xlu0 %250
    %252 = vadd.xlane.f32.xlu0 %v225
    %v253 = vpop.xlane.xlu0 %252
    %254 = vadd.xlane.f32.xlu0 %v226
    %v255 = vpop.xlane.xlu0 %254
    %256 = vadd.xlane.f32.xlu0 %v227
    %v257 = vpop.xlane.xlu0 %256
    %258 = vadd.xlane.f32.xlu0 %v228
    %v259 = vpop.xlane.xlu0 %258
    %260 = vadd.xlane.f32.xlu0 %v229
    %v261 = vpop.xlane.xlu0 %260
    %v262 = vmul.f32 %v231, %v181
    %v263 = vmul.f32 %v233, %v181
    %v264 = vmul.f32 %v235, %v181
    %v265 = vmul.f32 %v237, %v181
    %v266 = vmul.f32 %v239, %v181
    %v267 = vmul.f32 %v241, %v181
    %v268 = vmul.f32 %v243, %v181
    %v269 = vmul.f32 %v245, %v181
    %v270 = vmul.f32 %v247, %v181
    %v271 = vmul.f32 %v249, %v181
    %v272 = vmul.f32 %v251, %v181
    %v273 = vmul.f32 %v253, %v181
    %v274 = vmul.f32 %v255, %v181
    %v275 = vmul.f32 %v257, %v181
    %v276 = vmul.f32 %v259, %v181
    %v277 = vmul.f32 %v261, %v181
    %v278 = vadd.f32 %v262, 1e-06
    %v279 = vadd.f32 %v263, 1e-06
    %v280 = vadd.f32 %v264, 1e-06
    %v281 = vadd.f32 %v265, 1e-06
    %v282 = vadd.f32 %v266, 1e-06
    %v283 = vadd.f32 %v267, 1e-06
    %v284 = vadd.f32 %v268, 1e-06
    %v285 = vadd.f32 %v269, 1e-06
    %v286 = vadd.f32 %v270, 1e-06
    %v287 = vadd.f32 %v271, 1e-06
    %v288 = vadd.f32 %v272, 1e-06
    %v289 = vadd.f32 %v273, 1e-06
    %v290 = vadd.f32 %v274, 1e-06
    %v291 = vadd.f32 %v275, 1e-06
    %v292 = vadd.f32 %v276, 1e-06
    %v293 = vadd.f32 %v277, 1e-06
    %v294 = vrsqrt.pop %v278
    %v295 = vrsqrt.pop %v279
    %v296 = vrsqrt.pop %v280
    %v297 = vrsqrt.pop %v281
    %v298 = vrsqrt.pop %v282
    %v299 = vrsqrt.pop %v283
    %v300 = vrsqrt.pop %v284
    %v301 = vrsqrt.pop %v285
    %v302 = vrsqrt.pop %v286
    %v303 = vrsqrt.pop %v287
    %v304 = vrsqrt.pop %v288
    %v305 = vrsqrt.pop %v289
    %v306 = vrsqrt.pop %v290
    %v307 = vrsqrt.pop %v291
    %v308 = vrsqrt.pop %v292
    %v309 = vrsqrt.pop %v293
    %v310 = vmul.f32 %v198, %v294
    %v311 = vmul.f32 %v199, %v295
    %v312 = vmul.f32 %v200, %v296
    %v313 = vmul.f32 %v201, %v297
    %v314 = vmul.f32 %v202, %v298
    %v315 = vmul.f32 %v203, %v299
    %v316 = vmul.f32 %v204, %v300
    %v317 = vmul.f32 %v205, %v301
    %v318 = vmul.f32 %v206, %v302
    %v319 = vmul.f32 %v207, %v303
    %v320 = vmul.f32 %v208, %v304
    %v321 = vmul.f32 %v209, %v305
    %v322 = vmul.f32 %v210, %v306
    %v323 = vmul.f32 %v211, %v307
    %v324 = vmul.f32 %v212, %v308
    %v325 = vmul.f32 %v213, %v309
    %v327 = vlaneseq
    %v328 = vshrl.u32 %v327, 7
    %v329 = vsub.s32 0, %v328
    %v330 = vrot.slane %v147, %v329
    %v332 = vmul.f32 %v310, %v330
    %v333 = vmul.f32 %v311, %v330
    %v334 = vmul.f32 %v312, %v330
    %v335 = vmul.f32 %v313, %v330
    %v336 = vmul.f32 %v314, %v330
    %v337 = vmul.f32 %v315, %v330
    %v338 = vmul.f32 %v316, %v330
    %v339 = vmul.f32 %v317, %v330
    %v340 = vmul.f32 %v318, %v330
    %v341 = vmul.f32 %v319, %v330
    %v342 = vmul.f32 %v320, %v330
    %v343 = vmul.f32 %v321, %v330
    %v344 = vmul.f32 %v322, %v330
    %v345 = vmul.f32 %v323, %v330
    %v346 = vmul.f32 %v324, %v330
    %v347 = vmul.f32 %v325, %v330
    %v349 = vlaneseq
    %v350 = vshrl.u32 %v349, 7
    %v351 = vsub.s32 0, %v350
    %v352 = vrot.slane %v148, %v351
    %v354 = vadd.f32 %v332, %v352
    %v355 = vadd.f32 %v333, %v352
    %v356 = vadd.f32 %v334, %v352
    %v357 = vadd.f32 %v335, %v352
    %v358 = vadd.f32 %v336, %v352
    %v359 = vadd.f32 %v337, %v352
    %v360 = vadd.f32 %v338, %v352
    %v361 = vadd.f32 %v339, %v352
    %v362 = vadd.f32 %v340, %v352
    %v363 = vadd.f32 %v341, %v352
    %v364 = vadd.f32 %v342, %v352
    %v365 = vadd.f32 %v343, %v352
    %v366 = vadd.f32 %v344, %v352
    %v367 = vadd.f32 %v345, %v352
    %v368 = vadd.f32 %v346, %v352
    %v369 = vadd.f32 %v347, %v352
    %v370 = vpack.c.bf16 %v355, %v354
    %v371 = vpack.c.bf16 %v357, %v356
    %v372 = vpack.c.bf16 %v359, %v358
    %v373 = vpack.c.bf16 %v361, %v360
    %v374 = vpack.c.bf16 %v363, %v362
    %v375 = vpack.c.bf16 %v365, %v364
    %v376 = vpack.c.bf16 %v367, %v366
    %v377 = vpack.c.bf16 %v369, %v368
    %v378 = vld [vmem:[#allocation7] sm:$0xff]
    %v379 = vld [vmem:[#allocation7 + $0x8] sm:$0xf]
    %v380 = vld [vmem:[#allocation7 + $0xc] sm:$0xff]
    %v381 = vld [vmem:[#allocation7 + $0x14] sm:$0xf]
    %v382 = vld [vmem:[#allocation7 + $0x18] sm:$0xff]
    %v383 = vld [vmem:[#allocation7 + $0x20] sm:$0xf]
    %v384 = vld [vmem:[#allocation7 + $0x24] sm:$0xff]
    %v385 = vld [vmem:[#allocation7 + $0x2c] sm:$0xf]
    %v386 = vld [vmem:[#allocation7 + $0x30] sm:$0xff]
    %v387 = vld [vmem:[#allocation7 + $0x38] sm:$0xf]
    %v388 = vld [vmem:[#allocation7 + $0x3c] sm:$0xff]
    %v389 = vld [vmem:[#allocation7 + $0x44] sm:$0xf]
    %v390 = vld [vmem:[#allocation7 + $0x48] sm:$0xff]
    %v391 = vld [vmem:[#allocation7 + $0x50] sm:$0xf]
    %v392 = vld [vmem:[#allocation7 + $0x54] sm:$0xff]
    %v393 = vld [vmem:[#allocation7 + $0x5c] sm:$0xf]
    %v394 = vld [vmem:[#allocation7 + $0x60] sm:$0xff]
    %v395 = vld [vmem:[#allocation7 + $0x68] sm:$0xf]
    %v396 = vld [vmem:[#allocation7 + $0x6c] sm:$0xff]
    %v397 = vld [vmem:[#allocation7 + $0x74] sm:$0xf]
    %v398 = vld [vmem:[#allocation7 + $0x78] sm:$0xff]
    %v399 = vld [vmem:[#allocation7 + $0x80] sm:$0xf]
    %v400 = vld [vmem:[#allocation7 + $0x84] sm:$0xff]
    %v401 = vld [vmem:[#allocation7 + $0x8c] sm:$0xf]
    %v402 = vld [vmem:[#allocation7 + $0x90] sm:$0xff]
    %v403 = vld [vmem:[#allocation7 + $0x98] sm:$0xf]
    %v404 = vld [vmem:[#allocation7 + $0x9c] sm:$0xff]
    %v405 = vld [vmem:[#allocation7 + $0xa4] sm:$0xf]
    %v406 = vld [vmem:[#allocation7 + $0xa8] sm:$0xff]
    %v407 = vld [vmem:[#allocation7 + $0xb0] sm:$0xf]
    %v408 = vld [vmem:[#allocation7 + $0xb4] sm:$0xff]
    %v409 = vld [vmem:[#allocation7 + $0xbc] sm:$0xf]
    %v410 = vld [vmem:[%s5] sm:$0x7]
    %v412 = vlaneseq
    %v413 = vshrl.u32 %v412, 7
    %v414 = vsub.s32 0, %v413
    %v415 = vrot.slane %v410, %v414
    %v416 = vlaneseq
    %v417 = vshrl.u32 %v416, 7
    %v418 = vsub.s32 1, %v417
    %v419 = vrot.slane %v410, %v418
    %v420 = vlaneseq
    %v421 = vshrl.u32 %v420, 7
    %v422 = vsub.s32 2, %v421
    %v423 = vrot.slane %v410, %v422
    %v459 = vunpack.c.l.b16 %v378
    %v460 = vunpack.c.h.b16 %v378
    %v461 = vunpack.c.l.b16 %v379
    %v462 = vunpack.c.l.b16 %v380
    %v463 = vunpack.c.h.b16 %v380
    %v464 = vunpack.c.l.b16 %v381
    %v465 = vunpack.c.l.b16 %v382
    %v466 = vunpack.c.h.b16 %v382
    %v467 = vunpack.c.l.b16 %v383
    %v468 = vunpack.c.l.b16 %v384
    %v469 = vunpack.c.h.b16 %v384
    %v470 = vunpack.c.l.b16 %v385
    %v471 = vunpack.c.l.b16 %v386
    %v472 = vunpack.c.h.b16 %v386
    %v473 = vunpack.c.l.b16 %v387
    %v474 = vunpack.c.l.b16 %v388
    %v475 = vunpack.c.h.b16 %v388
    %v476 = vunpack.c.l.b16 %v389
    %v477 = vunpack.c.l.b16 %v390
    %v478 = vunpack.c.h.b16 %v390
    %v479 = vunpack.c.l.b16 %v391
    %v480 = vunpack.c.l.b16 %v392
    %v481 = vunpack.c.h.b16 %v392
    %v482 = vunpack.c.l.b16 %v393
    %v483 = vunpack.c.l.b16 %v394
    %v484 = vunpack.c.h.b16 %v394
    %v485 = vunpack.c.l.b16 %v395
    %v486 = vunpack.c.l.b16 %v396
    %v487 = vunpack.c.h.b16 %v396
    %v488 = vunpack.c.l.b16 %v397
    %v489 = vunpack.c.l.b16 %v398
    %v490 = vunpack.c.h.b16 %v398
    %v491 = vunpack.c.l.b16 %v399
    %v492 = vunpack.c.l.b16 %v400
    %v493 = vunpack.c.h.b16 %v400
    %v494 = vunpack.c.l.b16 %v401
    %v495 = vunpack.c.l.b16 %v402
    %v496 = vunpack.c.h.b16 %v402
    %v497 = vunpack.c.l.b16 %v403
    %v498 = vunpack.c.l.b16 %v404
    %v499 = vunpack.c.h.b16 %v404
    %v500 = vunpack.c.l.b16 %v405
    %v501 = vunpack.c.l.b16 %v406
    %v502 = vunpack.c.h.b16 %v406
    %v503 = vunpack.c.l.b16 %v407
    %v504 = vunpack.c.l.b16 %v408
    %v505 = vunpack.c.h.b16 %v408
    %v506 = vunpack.c.l.b16 %v409
    %v507 = vpack.c.b16 %v462, %v459
    %v508 = vpack.c.b16 %v463, %v460
    %v509 = vpack.c.b16 %v464, %v461
    %v510 = vpack.c.b16 %v468, %v465
    %v511 = vpack.c.b16 %v469, %v466
    %v512 = vpack.c.b16 %v470, %v467
    %v513 = vpack.c.b16 %v474, %v471
    %v514 = vpack.c.b16 %v475, %v472
    %v515 = vpack.c.b16 %v476, %v473
    %v516 = vpack.c.b16 %v480, %v477
    %v517 = vpack.c.b16 %v481, %v478
    %v518 = vpack.c.b16 %v482, %v479
    %v519 = vpack.c.b16 %v486, %v483
    %v520 = vpack.c.b16 %v487, %v484
    %v521 = vpack.c.b16 %v488, %v485
    %v522 = vpack.c.b16 %v492, %v489
    %v523 = vpack.c.b16 %v493, %v490
    %v524 = vpack.c.b16 %v494, %v491
    %v525 = vpack.c.b16 %v498, %v495
    %v526 = vpack.c.b16 %v499, %v496
    %v527 = vpack.c.b16 %v500, %v497
    %v528 = vpack.c.b16 %v504, %v501
    %v529 = vpack.c.b16 %v505, %v502
    %v530 = vpack.c.b16 %v506, %v503
    %555 = vmatprep.subr.bf16.mxu0 %v508
    %556 = vmatpush1.bf16.msra.mxu0 %v507
    %557 = vmatprep.subr.bf16.mxu0 %v511
    %558 = vmatpush1.bf16.msra.mxu0 %v510
    %559 = vmatprep.subr.bf16.mxu0 %v514
    %560 = vmatpush1.bf16.msra.mxu0 %v513
    %561 = vmatprep.subr.bf16.mxu0 %v517
    %562 = vmatpush1.bf16.msra.mxu0 %v516
    %563 = vmatprep.subr.bf16.mxu0 %v520
    %564 = vmatpush1.bf16.msra.mxu0 %v519
    %565 = vmatprep.subr.bf16.mxu0 %v523
    %566 = vmatpush1.bf16.msra.mxu0 %v522
    %567 = vmatprep.subr.bf16.mxu0 %v526
    %568 = vmatpush1.bf16.msra.mxu0 %v525
    %569 = vmatprep.subr.bf16.mxu0 %v529
    %570 = vmatpush1.bf16.msra.mxu0 %v528
    %571 = vmatprep.subr.bf16.mxu0 0
    %572 = vmatpush1.bf16.msra.mxu0 0
    %573 = vmatprep.subr.bf16.mxu0 0
    %574 = vmatpush1.bf16.msra.mxu0 0
    %575 = vmatprep.subr.bf16.mxu0 0
    %576 = vmatpush1.bf16.msra.mxu0 0
    %577 = vmatprep.subr.bf16.mxu0 0
    %578 = vmatpush1.bf16.msra.mxu0 0
    %579 = vmatprep.subr.bf16.mxu0 0
    %580 = vmatpush1.bf16.msra.mxu0 0
    %581 = vmatprep.subr.bf16.mxu0 0
    %582 = vmatpush1.bf16.msra.mxu0 0
    %583 = vmatprep.subr.bf16.mxu0 0
    %584 = vmatpush1.bf16.msra.mxu0 0
    %585 = vmatprep.subr.bf16.mxu0 0
    %586 = vmatpush1.bf16.msra.mxu0 0
    %587 = vmatprep.mubr.bf16.mxu0 0
    %588 = vmatmul.mubr.bf16.gmra.mrb[0].mxu0 %v370
    %v589 = vpop.f32.mrb[0].mxu0
    %v590 = vadd.f32 %v415, %v589
    %v591 = vpop.f32.mrb[0].mxu0
    %v592 = vadd.f32 %v419, %v591
    %v593 = vpop.f32.mrb[0].mxu0
    %v594 = vadd.f32 %v415, %v593
    %v595 = vpop.f32.mrb[0].mxu0
    %v596 = vadd.f32 %v419, %v595
    %597 = vmatprep.mubr.bf16.mxu0 0
    %598 = vmatmul.mubr.bf16.gmra.mrb[0].mxu0 %v371
    %v599 = vpop.f32.mrb[0].mxu0
    %v600 = vadd.f32 %v415, %v599
    %v601 = vpop.f32.mrb[0].mxu0
    %v602 = vadd.f32 %v419, %v601
    %v603 = vpop.f32.mrb[0].mxu0
    %v604 = vadd.f32 %v415, %v603
    %v605 = vpop.f32.mrb[0].mxu0
    %v606 = vadd.f32 %v419, %v605
    %607 = vmatprep.mubr.bf16.mxu0 0
    %608 = vmatmul.mubr.bf16.gmra.mrb[0].mxu0 %v372
    %v609 = vpop.f32.mrb[0].mxu0
    %v610 = vadd.f32 %v415, %v609
    %v611 = vpop.f32.mrb[0].mxu0
    %v612 = vadd.f32 %v419, %v611
    %v613 = vpop.f32.mrb[0].mxu0
    %v614 = vadd.f32 %v415, %v613
    %v615 = vpop.f32.mrb[0].mxu0
    %v616 = vadd.f32 %v419, %v615
    %617 = vmatprep.mubr.bf16.mxu0 0
    %618 = vmatmul.mubr.bf16.gmra.mrb[0].mxu0 %v373
    %v619 = vpop.f32.mrb[0].mxu0
    %v620 = vadd.f32 %v415, %v619
    %v621 = vpop.f32.mrb[0].mxu0
    %v622 = vadd.f32 %v419, %v621
    %v623 = vpop.f32.mrb[0].mxu0
    %v624 = vadd.f32 %v415, %v623
    %v625 = vpop.f32.mrb[0].mxu0
    %v626 = vadd.f32 %v419, %v625
    %627 = vmatprep.mubr.bf16.mxu0 0
    %628 = vmatmul.mubr.bf16.gmra.mrb[0].mxu0 %v374
    %v629 = vpop.f32.mrb[0].mxu0
    %v630 = vadd.f32 %v415, %v629
    %v631 = vpop.f32.mrb[0].mxu0
    %v632 = vadd.f32 %v419, %v631
    %v633 = vpop.f32.mrb[0].mxu0
    %v634 = vadd.f32 %v415, %v633
    %v635 = vpop.f32.mrb[0].mxu0
    %v636 = vadd.f32 %v419, %v635
    %637 = vmatprep.mubr.bf16.mxu0 0
    %638 = vmatmul.mubr.bf16.gmra.mrb[0].mxu0 %v375
    %v639 = vpop.f32.mrb[0].mxu0
    %v640 = vadd.f32 %v415, %v639
    %v641 = vpop.f32.mrb[0].mxu0
    %v642 = vadd.f32 %v419, %v641
    %v643 = vpop.f32.mrb[0].mxu0
    %v644 = vadd.f32 %v415, %v643
    %v645 = vpop.f32.mrb[0].mxu0
    %v646 = vadd.f32 %v419, %v645
    %647 = vmatprep.mubr.bf16.mxu0 0
    %648 = vmatmul.mubr.bf16.gmra.mrb[0].mxu0 %v376
    %v649 = vpop.f32.mrb[0].mxu0
    %v650 = vadd.f32 %v415, %v649
    %v651 = vpop.f32.mrb[0].mxu0
    %v652 = vadd.f32 %v419, %v651
    %v653 = vpop.f32.mrb[0].mxu0
    %v654 = vadd.f32 %v415, %v653
    %v655 = vpop.f32.mrb[0].mxu0
    %v656 = vadd.f32 %v419, %v655
    %657 = vmatprep.mubr.bf16.mxu0 0
    %658 = vmatmul.mubr.bf16.gmra.mrb[0].mxu0 %v377
    %v659 = vpop.f32.mrb[0].mxu0
    %v660 = vadd.f32 %v415, %v659
    %v661 = vpop.f32.mrb[0].mxu0
    %v662 = vadd.f32 %v419, %v661
    %v663 = vpop.f32.mrb[0].mxu0
    %v664 = vadd.f32 %v415, %v663
    %v665 = vpop.f32.mrb[0].mxu0
    %v666 = vadd.f32 %v419, %v665
    %667 = vdwg.mxu0
    %668 = vmatprep.subr.bf16.mxu0 0
    %669 = vmatpush1.bf16.msra.mxu0 %v509
    %670 = vmatprep.subr.bf16.mxu0 0
    %671 = vmatpush1.bf16.msra.mxu0 %v512
    %672 = vmatprep.subr.bf16.mxu0 0
    %673 = vmatpush1.bf16.msra.mxu0 %v515
    %674 = vmatprep.subr.bf16.mxu0 0
    %675 = vmatpush1.bf16.msra.mxu0 %v518
    %676 = vmatprep.subr.bf16.mxu0 0
    %677 = vmatpush1.bf16.msra.mxu0 %v521
    %678 = vmatprep.subr.bf16.mxu0 0
    %679 = vmatpush1.bf16.msra.mxu0 %v524
    %680 = vmatprep.subr.bf16.mxu0 0
    %681 = vmatpush1.bf16.msra.mxu0 %v527
    %682 = vmatprep.subr.bf16.mxu0 0
    %683 = vmatpush1.bf16.msra.mxu0 %v530
    %684 = vmatprep.subr.bf16.mxu0 0
    %685 = vmatpush1.bf16.msra.mxu0 0
    %686 = vmatprep.subr.bf16.mxu0 0
    %687 = vmatpush1.bf16.msra.mxu0 0
    %688 = vmatprep.subr.bf16.mxu0 0
    %689 = vmatpush1.bf16.msra.mxu0 0
    %690 = vmatprep.subr.bf16.mxu0 0
    %691 = vmatpush1.bf16.msra.mxu0 0
    %692 = vmatprep.subr.bf16.mxu0 0
    %693 = vmatpush1.bf16.msra.mxu0 0
    %694 = vmatprep.subr.bf16.mxu0 0
    %695 = vmatpush1.bf16.msra.mxu0 0
    %696 = vmatprep.subr.bf16.mxu0 0
    %697 = vmatpush1.bf16.msra.mxu0 0
    %698 = vmatprep.subr.bf16.mxu0 0
    %699 = vmatpush1.bf16.msra.mxu0 0
    %700 = vmatprep.mubr.bf16.mxu0 0
    %701 = vmatmul.mubr.bf16.gmra.mrb[0].mxu0 %v370
    %v702 = vpop.f32.mrb[0].mxu0
    %v703 = vadd.f32 %v423, %v702
    %v704 = vpop.f32.mrb[0].mxu0
    %v705 = vpop.f32.mrb[0].mxu0
    %v706 = vadd.f32 %v423, %v705
    %v707 = vpop.f32.mrb[0].mxu0
    %708 = vmatprep.mubr.bf16.mxu0 0
    %709 = vmatmul.mubr.bf16.gmra.mrb[0].mxu0 %v371
    %v710 = vpop.f32.mrb[0].mxu0
    %v711 = vadd.f32 %v423, %v710
    %v712 = vpop.f32.mrb[0].mxu0
    %v713 = vpop.f32.mrb[0].mxu0
    %v714 = vadd.f32 %v423, %v713
    %v715 = vpop.f32.mrb[0].mxu0
    %716 = vmatprep.mubr.bf16.mxu0 0
    %717 = vmatmul.mubr.bf16.gmra.mrb[0].mxu0 %v372
    %v718 = vpop.f32.mrb[0].mxu0
    %v719 = vadd.f32 %v423, %v718
    %v720 = vpop.f32.mrb[0].mxu0
    %v721 = vpop.f32.mrb[0].mxu0
    %v722 = vadd.f32 %v423, %v721
    %v723 = vpop.f32.mrb[0].mxu0
    %724 = vmatprep.mubr.bf16.mxu0 0
    %725 = vmatmul.mubr.bf16.gmra.mrb[0].mxu0 %v373
    %v726 = vpop.f32.mrb[0].mxu0
    %v727 = vadd.f32 %v423, %v726
    %v728 = vpop.f32.mrb[0].mxu0
    %v729 = vpop.f32.mrb[0].mxu0
    %v730 = vadd.f32 %v423, %v729
    %v731 = vpop.f32.mrb[0].mxu0
    %732 = vmatprep.mubr.bf16.mxu0 0
    %733 = vmatmul.mubr.bf16.gmra.mrb[0].mxu0 %v374
    %v734 = vpop.f32.mrb[0].mxu0
    %v735 = vadd.f32 %v423, %v734
    %v736 = vpop.f32.mrb[0].mxu0
    %v737 = vpop.f32.mrb[0].mxu0
    %v738 = vadd.f32 %v423, %v737
    %v739 = vpop.f32.mrb[0].mxu0
    %740 = vmatprep.mubr.bf16.mxu0 0
    %741 = vmatmul.mubr.bf16.gmra.mrb[0].mxu0 %v375
    %v742 = vpop.f32.mrb[0].mxu0
    %v743 = vadd.f32 %v423, %v742
    %v744 = vpop.f32.mrb[0].mxu0
    %v745 = vpop.f32.mrb[0].mxu0
    %v746 = vadd.f32 %v423, %v745
    %v747 = vpop.f32.mrb[0].mxu0
    %748 = vmatprep.mubr.bf16.mxu0 0
    %749 = vmatmul.mubr.bf16.gmra.mrb[0].mxu0 %v376
    %v750 = vpop.f32.mrb[0].mxu0
    %v751 = vadd.f32 %v423, %v750
    %v752 = vpop.f32.mrb[0].mxu0
    %v753 = vpop.f32.mrb[0].mxu0
    %v754 = vadd.f32 %v423, %v753
    %v755 = vpop.f32.mrb[0].mxu0
    %756 = vmatprep.mubr.bf16.mxu0 0
    %757 = vmatmul.mubr.bf16.gmra.mrb[0].mxu0 %v377
    %v758 = vpop.f32.mrb[0].mxu0
    %v759 = vadd.f32 %v423, %v758
    %v760 = vpop.f32.mrb[0].mxu0
    %v761 = vpop.f32.mrb[0].mxu0
    %v762 = vadd.f32 %v423, %v761
    %v763 = vpop.f32.mrb[0].mxu0
    %764 = vdwg.mxu0
    %v765 = vld [vmem:[#allocation5] sm:$0xff]
    %v766 = vld [vmem:[#allocation5 + $0x8] sm:$0xff]
    %v767 = vld [vmem:[#allocation5 + $0x10] sm:$0xff]
    %v768 = vld [vmem:[#allocation5 + $0x18] sm:$0xff]
    %v769 = vld [vmem:[#allocation5 + $0x20] sm:$0xff]
    %v770 = vld [vmem:[#allocation5 + $0x28] sm:$0xff]
    %v771 = vld [vmem:[#allocation5 + $0x30] sm:$0xff]
    %v772 = vld [vmem:[#allocation5 + $0x38] sm:$0xff]
    %v773 = vld [vmem:[#allocation5 + $0x40] sm:$0xff]
    %v774 = vld [vmem:[#allocation5 + $0x48] sm:$0xff]
    %v775 = vld [vmem:[#allocation5 + $0x50] sm:$0xff]
    %v776 = vld [vmem:[#allocation5 + $0x58] sm:$0xff]
    %v777 = vld [vmem:[#allocation5 + $0x60] sm:$0xff]
    %v778 = vld [vmem:[#allocation5 + $0x68] sm:$0xff]
    %v779 = vld [vmem:[#allocation5 + $0x70] sm:$0xff]
    %v780 = vld [vmem:[#allocation5 + $0x78] sm:$0xff]
    %v781 = vpack.c.bf16 %v594, %v590
    %v782 = vpack.c.bf16 %v604, %v600
    %v783 = vpack.c.bf16 %v614, %v610
    %v784 = vpack.c.bf16 %v624, %v620
    %v785 = vpack.c.bf16 %v634, %v630
    %v786 = vpack.c.bf16 %v644, %v640
    %v787 = vpack.c.bf16 %v654, %v650
    %v788 = vpack.c.bf16 %v664, %v660
    %v789 = vpack.c.bf16 %v596, %v592
    %v790 = vpack.c.bf16 %v606, %v602
    %v791 = vpack.c.bf16 %v616, %v612
    %v792 = vpack.c.bf16 %v626, %v622
    %v793 = vpack.c.bf16 %v636, %v632
    %v794 = vpack.c.bf16 %v646, %v642
    %v795 = vpack.c.bf16 %v656, %v652
    %v796 = vpack.c.bf16 %v666, %v662
    %v797 = vpack.c.bf16 %v706, %v703
    %v798 = vpack.c.bf16 %v714, %v711
    %v799 = vpack.c.bf16 %v722, %v719
    %v800 = vpack.c.bf16 %v730, %v727
    %v801 = vpack.c.bf16 %v738, %v735
    %v802 = vpack.c.bf16 %v746, %v743
    %v803 = vpack.c.bf16 %v754, %v751
    %v804 = vpack.c.bf16 %v762, %v759
    %vm805 = vcmask 261120
    %v807 = vsel %vm805, %v781, 0
    %v810 = vsel %vm805, %v782, 0
    %v813 = vsel %vm805, %v783, 0
    %v816 = vsel %vm805, %v784, 0
    %v819 = vsel %vm805, %v785, 0
    %v822 = vsel %vm805, %v786, 0
    %v825 = vsel %vm805, %v787, 0
    %v828 = vsel %vm805, %v788, 0
    %v831 = vsel %vm805, %v789, 0
    %v834 = vsel %vm805, %v790, 0
    %v837 = vsel %vm805, %v791, 0
    %v840 = vsel %vm805, %v792, 0
    %v843 = vsel %vm805, %v793, 0
    %v846 = vsel %vm805, %v794, 0
    %v849 = vsel %vm805, %v795, 0
    %v852 = vsel %vm805, %v796, 0
    %854 = vmatprep.subr.bf16.mxu0 0
    %855 = vmatpush1.bf16.xpose.msra.mxu0 %v831
    %856 = vmatprep.subr.bf16.mxu0 0
    %857 = vmatpush1.bf16.xpose.msra.mxu0 %v834
    %858 = vmatprep.subr.bf16.mxu0 0
    %859 = vmatpush1.bf16.xpose.msra.mxu0 %v837
    %860 = vmatprep.subr.bf16.mxu0 0
    %861 = vmatpush1.bf16.xpose.msra.mxu0 %v840
    %862 = vmatprep.subr.bf16.mxu0 0
    %863 = vmatpush1.bf16.xpose.msra.mxu0 %v843
    %864 = vmatprep.subr.bf16.mxu0 0
    %865 = vmatpush1.bf16.xpose.msra.mxu0 %v846
    %866 = vmatprep.subr.bf16.mxu0 0
    %867 = vmatpush1.bf16.xpose.msra.mxu0 %v849
    %868 = vmatprep.subr.bf16.mxu0 0
    %869 = vmatpush1.bf16.xpose.msra.mxu0 %v852
    %870 = vmatprep.subr.bf16.mxu0 0
    %871 = vmatpush1.bf16.xpose.msra.mxu0 0
    %872 = vmatprep.subr.bf16.mxu0 0
    %873 = vmatpush1.bf16.xpose.msra.mxu0 0
    %874 = vmatprep.subr.bf16.mxu0 0
    %875 = vmatpush1.bf16.xpose.msra.mxu0 0
    %876 = vmatprep.subr.bf16.mxu0 0
    %877 = vmatpush1.bf16.xpose.msra.mxu0 0
    %878 = vmatprep.subr.bf16.mxu0 0
    %879 = vmatpush1.bf16.xpose.msra.mxu0 0
    %880 = vmatprep.subr.bf16.mxu0 0
    %881 = vmatpush1.bf16.xpose.msra.mxu0 0
    %882 = vmatprep.subr.bf16.mxu0 0
    %883 = vmatpush1.bf16.xpose.msra.mxu0 0
    %884 = vmatprep.subr.bf16.mxu0 0
    %885 = vmatpush1.bf16.xpose.msra.mxu0 0
    %886 = vmatprep.mubr.bf16.mxu0 0
    %887 = vmatmul.mubr.bf16.gmra.mrb[0].mxu0 %v807
    %v888 = vpop.f32.mrb[0].mxu0
    %v889 = vadd.f32 %v765, %v888
    %v890 = vpop.f32.mrb[0].mxu0
    %v891 = vpop.f32.mrb[0].mxu0
    %v892 = vadd.f32 %v766, %v891
    %v893 = vpop.f32.mrb[0].mxu0
    %894 = vmatprep.mubr.bf16.mxu0 0
    %895 = vmatmul.mubr.bf16.gmra.mrb[0].mxu0 %v810
    %v896 = vpop.f32.mrb[0].mxu0
    %v897 = vadd.f32 %v767, %v896
    %v898 = vpop.f32.mrb[0].mxu0
    %v899 = vpop.f32.mrb[0].mxu0
    %v900 = vadd.f32 %v768, %v899
    %v901 = vpop.f32.mrb[0].mxu0
    %902 = vmatprep.mubr.bf16.mxu0 0
    %903 = vmatmul.mubr.bf16.gmra.mrb[0].mxu0 %v813
    %v904 = vpop.f32.mrb[0].mxu0
    %v905 = vadd.f32 %v769, %v904
    %v906 = vpop.f32.mrb[0].mxu0
    %v907 = vpop.f32.mrb[0].mxu0
    %v908 = vadd.f32 %v770, %v907
    %v909 = vpop.f32.mrb[0].mxu0
    %910 = vmatprep.mubr.bf16.mxu0 0
    %911 = vmatmul.mubr.bf16.gmra.mrb[0].mxu0 %v816
    %v912 = vpop.f32.mrb[0].mxu0
    %v913 = vadd.f32 %v771, %v912
    %v914 = vpop.f32.mrb[0].mxu0
    %v915 = vpop.f32.mrb[0].mxu0
    %v916 = vadd.f32 %v772, %v915
    %v917 = vpop.f32.mrb[0].mxu0
    %918 = vmatprep.mubr.bf16.mxu0 0
    %919 = vmatmul.mubr.bf16.gmra.mrb[0].mxu0 %v819
    %v920 = vpop.f32.mrb[0].mxu0
    %v921 = vadd.f32 %v773, %v920
    %v922 = vpop.f32.mrb[0].mxu0
    %v923 = vpop.f32.mrb[0].mxu0
    %v924 = vadd.f32 %v774, %v923
    %v925 = vpop.f32.mrb[0].mxu0
    %926 = vmatprep.mubr.bf16.mxu0 0
    %927 = vmatmul.mubr.bf16.gmra.mrb[0].mxu0 %v822
    %v928 = vpop.f32.mrb[0].mxu0
    %v929 = vadd.f32 %v775, %v928
    %v930 = vpop.f32.mrb[0].mxu0
    %v931 = vpop.f32.mrb[0].mxu0
    %v932 = vadd.f32 %v776, %v931
    %v933 = vpop.f32.mrb[0].mxu0
    %934 = vmatprep.mubr.bf16.mxu0 0
    %935 = vmatmul.mubr.bf16.gmra.mrb[0].mxu0 %v825
    %v936 = vpop.f32.mrb[0].mxu0
    %v937 = vadd.f32 %v777, %v936
    %v938 = vpop.f32.mrb[0].mxu0
    %v939 = vpop.f32.mrb[0].mxu0
    %v940 = vadd.f32 %v778, %v939
    %v941 = vpop.f32.mrb[0].mxu0
    %942 = vmatprep.mubr.bf16.mxu0 0
    %943 = vmatmul.mubr.bf16.gmra.mrb[0].mxu0 %v828
    %v944 = vpop.f32.mrb[0].mxu0
    %v945 = vadd.f32 %v779, %v944
    %v946 = vpop.f32.mrb[0].mxu0
    %v947 = vpop.f32.mrb[0].mxu0
    %v948 = vadd.f32 %v780, %v947
    %v949 = vpop.f32.mrb[0].mxu0
    %950 = vdwg.mxu0
    %951 = vmax.xlane.f32.xlu0 %v889
    %v952 = vpop.xlane.xlu0 %951
    %953 = vmax.xlane.f32.xlu0 %v892
    %v954 = vpop.xlane.xlu0 %953
    %955 = vmax.xlane.f32.xlu0 %v897
    %v956 = vpop.xlane.xlu0 %955
    %957 = vmax.xlane.f32.xlu0 %v900
    %v958 = vpop.xlane.xlu0 %957
    %959 = vmax.xlane.f32.xlu0 %v905
    %v960 = vpop.xlane.xlu0 %959
    %961 = vmax.xlane.f32.xlu0 %v908
    %v962 = vpop.xlane.xlu0 %961
    %963 = vmax.xlane.f32.xlu0 %v913
    %v964 = vpop.xlane.xlu0 %963
    %965 = vmax.xlane.f32.xlu0 %v916
    %v966 = vpop.xlane.xlu0 %965
    %967 = vmax.xlane.f32.xlu0 %v921
    %v968 = vpop.xlane.xlu0 %967
    %969 = vmax.xlane.f32.xlu0 %v924
    %v970 = vpop.xlane.xlu0 %969
    %971 = vmax.xlane.f32.xlu0 %v929
    %v972 = vpop.xlane.xlu0 %971
    %973 = vmax.xlane.f32.xlu0 %v932
    %v974 = vpop.xlane.xlu0 %973
    %975 = vmax.xlane.f32.xlu0 %v937
    %v976 = vpop.xlane.xlu0 %975
    %977 = vmax.xlane.f32.xlu0 %v940
    %v978 = vpop.xlane.xlu0 %977
    %979 = vmax.xlane.f32.xlu0 %v945
    %v980 = vpop.xlane.xlu0 %979
    %981 = vmax.xlane.f32.xlu0 %v948
    %v982 = vpop.xlane.xlu0 %981
    %v983 = vsub.f32 %v889, %v952
    %v984 = vsub.f32 %v892, %v954
    %v985 = vsub.f32 %v897, %v956
    %v986 = vsub.f32 %v900, %v958
    %v987 = vsub.f32 %v905, %v960
    %v988 = vsub.f32 %v908, %v962
    %v989 = vsub.f32 %v913, %v964
    %v990 = vsub.f32 %v916, %v966
    %v991 = vsub.f32 %v921, %v968
    %v992 = vsub.f32 %v924, %v970
    %v993 = vsub.f32 %v929, %v972
    %v994 = vsub.f32 %v932, %v974
    %v995 = vsub.f32 %v937, %v976
    %v996 = vsub.f32 %v940, %v978
    %v997 = vsub.f32 %v945, %v980
    %v998 = vsub.f32 %v948, %v982
    %v999 = vmul.f32 %v983, 1.442695
    %v1000 = vpow.pop %v999
    %v1001 = vmul.f32 %v984, 1.442695
    %v1002 = vpow.pop %v1001
    %v1003 = vmul.f32 %v985, 1.442695
    %v1004 = vpow.pop %v1003
    %v1005 = vmul.f32 %v986, 1.442695
    %v1006 = vpow.pop %v1005
    %v1007 = vmul.f32 %v987, 1.442695
    %v1008 = vpow.pop %v1007
    %v1009 = vmul.f32 %v988, 1.442695
    %v1010 = vpow.pop %v1009
    %v1011 = vmul.f32 %v989, 1.442695
    %v1012 = vpow.pop %v1011
    %v1013 = vmul.f32 %v990, 1.442695
    %v1014 = vpow.pop %v1013
    %v1015 = vmul.f32 %v991, 1.442695
    %v1016 = vpow.pop %v1015
    %v1017 = vmul.f32 %v992, 1.442695
    %v1018 = vpow.pop %v1017
    %v1019 = vmul.f32 %v993, 1.442695
    %v1020 = vpow.pop %v1019
    %v1021 = vmul.f32 %v994, 1.442695
    %v1022 = vpow.pop %v1021
    %v1023 = vmul.f32 %v995, 1.442695
    %v1024 = vpow.pop %v1023
    %v1025 = vmul.f32 %v996, 1.442695
    %v1026 = vpow.pop %v1025
    %v1027 = vmul.f32 %v997, 1.442695
    %v1028 = vpow.pop %v1027
    %v1029 = vmul.f32 %v998, 1.442695
    %v1030 = vpow.pop %v1029
    %1031 = vadd.xlane.f32.xlu0 %v1000
    %v1032 = vpop.xlane.xlu0 %1031
    %1033 = vadd.xlane.f32.xlu0 %v1002
    %v1034 = vpop.xlane.xlu0 %1033
    %1035 = vadd.xlane.f32.xlu0 %v1004
    %v1036 = vpop.xlane.xlu0 %1035
    %1037 = vadd.xlane.f32.xlu0 %v1006
    %v1038 = vpop.xlane.xlu0 %1037
    %1039 = vadd.xlane.f32.xlu0 %v1008
    %v1040 = vpop.xlane.xlu0 %1039
    %1041 = vadd.xlane.f32.xlu0 %v1010
    %v1042 = vpop.xlane.xlu0 %1041
    %1043 = vadd.xlane.f32.xlu0 %v1012
    %v1044 = vpop.xlane.xlu0 %1043
    %1045 = vadd.xlane.f32.xlu0 %v1014
    %v1046 = vpop.xlane.xlu0 %1045
    %1047 = vadd.xlane.f32.xlu0 %v1016
    %v1048 = vpop.xlane.xlu0 %1047
    %1049 = vadd.xlane.f32.xlu0 %v1018
    %v1050 = vpop.xlane.xlu0 %1049
    %1051 = vadd.xlane.f32.xlu0 %v1020
    %v1052 = vpop.xlane.xlu0 %1051
    %1053 = vadd.xlane.f32.xlu0 %v1022
    %v1054 = vpop.xlane.xlu0 %1053
    %1055 = vadd.xlane.f32.xlu0 %v1024
    %v1056 = vpop.xlane.xlu0 %1055
    %1057 = vadd.xlane.f32.xlu0 %v1026
    %v1058 = vpop.xlane.xlu0 %1057
    %1059 = vadd.xlane.f32.xlu0 %v1028
    %v1060 = vpop.xlane.xlu0 %1059
    %1061 = vadd.xlane.f32.xlu0 %v1030
    %v1062 = vpop.xlane.xlu0 %1061
    %v1063 = vrcp.pop %v1032
    %v1064 = vrcp.pop %v1034
    %v1065 = vrcp.pop %v1036
    %v1066 = vrcp.pop %v1038
    %v1067 = vrcp.pop %v1040
    %v1068 = vrcp.pop %v1042
    %v1069 = vrcp.pop %v1044
    %v1070 = vrcp.pop %v1046
    %v1071 = vrcp.pop %v1048
    %v1072 = vrcp.pop %v1050
    %v1073 = vrcp.pop %v1052
    %v1074 = vrcp.pop %v1054
    %v1075 = vrcp.pop %v1056
    %v1076 = vrcp.pop %v1058
    %v1077 = vrcp.pop %v1060
    %v1078 = vrcp.pop %v1062
    %v1079 = vmul.f32 %v1000, %v1063
    %v1080 = vmul.f32 %v1002, %v1064
    %v1081 = vmul.f32 %v1004, %v1065
    %v1082 = vmul.f32 %v1006, %v1066
    %v1083 = vmul.f32 %v1008, %v1067
    %v1084 = vmul.f32 %v1010, %v1068
    %v1085 = vmul.f32 %v1012, %v1069
    %v1086 = vmul.f32 %v1014, %v1070
    %v1087 = vmul.f32 %v1016, %v1071
    %v1088 = vmul.f32 %v1018, %v1072
    %v1089 = vmul.f32 %v1020, %v1073
    %v1090 = vmul.f32 %v1022, %v1074
    %v1091 = vmul.f32 %v1024, %v1075
    %v1092 = vmul.f32 %v1026, %v1076
    %v1093 = vmul.f32 %v1028, %v1077
    %v1094 = vmul.f32 %v1030, %v1078
    %v1095 = vpack.c.bf16 %v1080, %v1079
    %v1096 = vpack.c.bf16 %v1082, %v1081
    %v1097 = vpack.c.bf16 %v1084, %v1083
    %v1098 = vpack.c.bf16 %v1086, %v1085
    %v1099 = vpack.c.bf16 %v1088, %v1087
    %v1100 = vpack.c.bf16 %v1090, %v1089
    %v1101 = vpack.c.bf16 %v1092, %v1091
    %v1102 = vpack.c.bf16 %v1094, %v1093
    %1103 = vmatprep.subr.bf16.mxu0 0
    %1104 = vmatpush1.bf16.msra.mxu0 %v797
    %1105 = vmatprep.subr.bf16.mxu0 0
    %1106 = vmatpush1.bf16.msra.mxu0 %v798
    %1107 = vmatprep.subr.bf16.mxu0 0
    %1108 = vmatpush1.bf16.msra.mxu0 %v799
    %1109 = vmatprep.subr.bf16.mxu0 0
    %1110 = vmatpush1.bf16.msra.mxu0 %v800
    %1111 = vmatprep.subr.bf16.mxu0 0
    %1112 = vmatpush1.bf16.msra.mxu0 %v801
    %1113 = vmatprep.subr.bf16.mxu0 0
    %1114 = vmatpush1.bf16.msra.mxu0 %v802
    %1115 = vmatprep.subr.bf16.mxu0 0
    %1116 = vmatpush1.bf16.msra.mxu0 %v803
    %1117 = vmatprep.subr.bf16.mxu0 0
    %1118 = vmatpush1.bf16.msra.mxu0 %v804
    %1119 = vmatprep.subr.bf16.mxu0 0
    %1120 = vmatpush1.bf16.msra.mxu0 0
    %1121 = vmatprep.subr.bf16.mxu0 0
    %1122 = vmatpush1.bf16.msra.mxu0 0
    %1123 = vmatprep.subr.bf16.mxu0 0
    %1124 = vmatpush1.bf16.msra.mxu0 0
    %1125 = vmatprep.subr.bf16.mxu0 0
    %1126 = vmatpush1.bf16.msra.mxu0 0
    %1127 = vmatprep.subr.bf16.mxu0 0
    %1128 = vmatpush1.bf16.msra.mxu0 0
    %1129 = vmatprep.subr.bf16.mxu0 0
    %1130 = vmatpush1.bf16.msra.mxu0 0
    %1131 = vmatprep.subr.bf16.mxu0 0
    %1132 = vmatpush1.bf16.msra.mxu0 0
    %1133 = vmatprep.subr.bf16.mxu0 0
    %1134 = vmatpush1.bf16.msra.mxu0 0
    %1135 = vmatprep.mubr.bf16.mxu0 0
    %1136 = vmatmul.mubr.bf16.gmra.mrb[0].mxu0 %v1095
    %v1137 = vpop.f32.mrb[0].mxu0
    %v1138 = vadd.f32 0.0, %v1137
    %v1139 = vpop.f32.mrb[0].mxu0
    %v1140 = vpop.f32.mrb[0].mxu0
    %v1141 = vadd.f32 0.0, %v1140
    %v1142 = vpop.f32.mrb[0].mxu0
    %1143 = vmatprep.mubr.bf16.mxu0 0
    %1144 = vmatmul.mubr.bf16.gmra.mrb[0].mxu0 %v1096
    %v1145 = vpop.f32.mrb[0].mxu0
    %v1146 = vadd.f32 0.0, %v1145
    %v1147 = vpop.f32.mrb[0].mxu0
    %v1148 = vpop.f32.mrb[0].mxu0
    %v1149 = vadd.f32 0.0, %v1148
    %v1150 = vpop.f32.mrb[0].mxu0
    %1151 = vmatprep.mubr.bf16.mxu0 0
    %1152 = vmatmul.mubr.bf16.gmra.mrb[0].mxu0 %v1097
    %v1153 = vpop.f32.mrb[0].mxu0
    %v1154 = vadd.f32 0.0, %v1153
    %v1155 = vpop.f32.mrb[0].mxu0
    %v1156 = vpop.f32.mrb[0].mxu0
    %v1157 = vadd.f32 0.0, %v1156
    %v1158 = vpop.f32.mrb[0].mxu0
    %1159 = vmatprep.mubr.bf16.mxu0 0
    %1160 = vmatmul.mubr.bf16.gmra.mrb[0].mxu0 %v1098
    %v1161 = vpop.f32.mrb[0].mxu0
    %v1162 = vadd.f32 0.0, %v1161
    %v1163 = vpop.f32.mrb[0].mxu0
    %v1164 = vpop.f32.mrb[0].mxu0
    %v1165 = vadd.f32 0.0, %v1164
    %v1166 = vpop.f32.mrb[0].mxu0
    %1167 = vmatprep.mubr.bf16.mxu0 0
    %1168 = vmatmul.mubr.bf16.gmra.mrb[0].mxu0 %v1099
    %v1169 = vpop.f32.mrb[0].mxu0
    %v1170 = vadd.f32 0.0, %v1169
    %v1171 = vpop.f32.mrb[0].mxu0
    %v1172 = vpop.f32.mrb[0].mxu0
    %v1173 = vadd.f32 0.0, %v1172
    %v1174 = vpop.f32.mrb[0].mxu0
    %1175 = vmatprep.mubr.bf16.mxu0 0
    %1176 = vmatmul.mubr.bf16.gmra.mrb[0].mxu0 %v1100
    %v1177 = vpop.f32.mrb[0].mxu0
    %v1178 = vadd.f32 0.0, %v1177
    %v1179 = vpop.f32.mrb[0].mxu0
    %v1180 = vpop.f32.mrb[0].mxu0
    %v1181 = vadd.f32 0.0, %v1180
    %v1182 = vpop.f32.mrb[0].mxu0
    %1183 = vmatprep.mubr.bf16.mxu0 0
    %1184 = vmatmul.mubr.bf16.gmra.mrb[0].mxu0 %v1101
    %v1185 = vpop.f32.mrb[0].mxu0
    %v1186 = vadd.f32 0.0, %v1185
    %v1187 = vpop.f32.mrb[0].mxu0
    %v1188 = vpop.f32.mrb[0].mxu0
    %v1189 = vadd.f32 0.0, %v1188
    %v1190 = vpop.f32.mrb[0].mxu0
    %1191 = vmatprep.mubr.bf16.mxu0 0
    %1192 = vmatmul.mubr.bf16.gmra.mrb[0].mxu0 %v1102
    %v1193 = vpop.f32.mrb[0].mxu0
    %v1194 = vadd.f32 0.0, %v1193
    %v1195 = vpop.f32.mrb[0].mxu0
    %v1196 = vpop.f32.mrb[0].mxu0
    %v1197 = vadd.f32 0.0, %v1196
    %v1198 = vpop.f32.mrb[0].mxu0
    %1199 = vdwg.mxu0
    %1208 = vrot.lane.b32.xlu0 %v781, 96
    %v1209 = vpop.permute.xlu0 %1208
    %1210 = vrot.lane.b32.xlu0 %v782, 96
    %v1211 = vpop.permute.xlu0 %1210
    %1212 = vrot.lane.b32.xlu0 %v783, 96
    %v1213 = vpop.permute.xlu0 %1212
    %1214 = vrot.lane.b32.xlu0 %v784, 96
    %v1215 = vpop.permute.xlu0 %1214
    %1216 = vrot.lane.b32.xlu0 %v785, 96
    %v1217 = vpop.permute.xlu0 %1216
    %1218 = vrot.lane.b32.xlu0 %v786, 96
    %v1219 = vpop.permute.xlu0 %1218
    %1220 = vrot.lane.b32.xlu0 %v787, 96
    %v1221 = vpop.permute.xlu0 %1220
    %1222 = vrot.lane.b32.xlu0 %v788, 96
    %v1223 = vpop.permute.xlu0 %1222
    %1232 = vrot.lane.b32.xlu0 %v789, 96
    %v1233 = vpop.permute.xlu0 %1232
    %1234 = vrot.lane.b32.xlu0 %v790, 96
    %v1235 = vpop.permute.xlu0 %1234
    %1236 = vrot.lane.b32.xlu0 %v791, 96
    %v1237 = vpop.permute.xlu0 %1236
    %1238 = vrot.lane.b32.xlu0 %v792, 96
    %v1239 = vpop.permute.xlu0 %1238
    %1240 = vrot.lane.b32.xlu0 %v793, 96
    %v1241 = vpop.permute.xlu0 %1240
    %1242 = vrot.lane.b32.xlu0 %v794, 96
    %v1243 = vpop.permute.xlu0 %1242
    %1244 = vrot.lane.b32.xlu0 %v795, 96
    %v1245 = vpop.permute.xlu0 %1244
    %1246 = vrot.lane.b32.xlu0 %v796, 96
    %v1247 = vpop.permute.xlu0 %1246
    %v1249 = vsel %vm805, %v1209, 0
    %v1252 = vsel %vm805, %v1211, 0
    %v1255 = vsel %vm805, %v1213, 0
    %v1258 = vsel %vm805, %v1215, 0
    %v1261 = vsel %vm805, %v1217, 0
    %v1264 = vsel %vm805, %v1219, 0
    %v1267 = vsel %vm805, %v1221, 0
    %v1270 = vsel %vm805, %v1223, 0
    %v1273 = vsel %vm805, %v1233, 0
    %v1276 = vsel %vm805, %v1235, 0
    %v1279 = vsel %vm805, %v1237, 0
    %v1282 = vsel %vm805, %v1239, 0
    %v1285 = vsel %vm805, %v1241, 0
    %v1288 = vsel %vm805, %v1243, 0
    %v1291 = vsel %vm805, %v1245, 0
    %v1294 = vsel %vm805, %v1247, 0
    %1296 = vmatprep.subr.bf16.mxu0 0
    %1297 = vmatpush1.bf16.xpose.msra.mxu0 %v1273
    %1298 = vmatprep.subr.bf16.mxu0 0
    %1299 = vmatpush1.bf16.xpose.msra.mxu0 %v1276
    %1300 = vmatprep.subr.bf16.mxu0 0
    %1301 = vmatpush1.bf16.xpose.msra.mxu0 %v1279
    %1302 = vmatprep.subr.bf16.mxu0 0
    %1303 = vmatpush1.bf16.xpose.msra.mxu0 %v1282
    %1304 = vmatprep.subr.bf16.mxu0 0
    %1305 = vmatpush1.bf16.xpose.msra.mxu0 %v1285
    %1306 = vmatprep.subr.bf16.mxu0 0
    %1307 = vmatpush1.bf16.xpose.msra.mxu0 %v1288
    %1308 = vmatprep.subr.bf16.mxu0 0
    %1309 = vmatpush1.bf16.xpose.msra.mxu0 %v1291
    %1310 = vmatprep.subr.bf16.mxu0 0
    %1311 = vmatpush1.bf16.xpose.msra.mxu0 %v1294
    %1312 = vmatprep.subr.bf16.mxu0 0
    %1313 = vmatpush1.bf16.xpose.msra.mxu0 0
    %1314 = vmatprep.subr.bf16.mxu0 0
    %1315 = vmatpush1.bf16.xpose.msra.mxu0 0
    %1316 = vmatprep.subr.bf16.mxu0 0
    %1317 = vmatpush1.bf16.xpose.msra.mxu0 0
    %1318 = vmatprep.subr.bf16.mxu0 0
    %1319 = vmatpush1.bf16.xpose.msra.mxu0 0
    %1320 = vmatprep.subr.bf16.mxu0 0
    %1321 = vmatpush1.bf16.xpose.msra.mxu0 0
    %1322 = vmatprep.subr.bf16.mxu0 0
    %1323 = vmatpush1.bf16.xpose.msra.mxu0 0
    %1324 = vmatprep.subr.bf16.mxu0 0
    %1325 = vmatpush1.bf16.xpose.msra.mxu0 0
    %1326 = vmatprep.subr.bf16.mxu0 0
    %1327 = vmatpush1.bf16.xpose.msra.mxu0 0
    %1328 = vmatprep.mubr.bf16.mxu0 0
    %1329 = vmatmul.mubr.bf16.gmra.mrb[0].mxu0 %v1249
    %v1330 = vpop.f32.mrb[0].mxu0
    %v1331 = vadd.f32 %v765, %v1330
    %v1332 = vpop.f32.mrb[0].mxu0
    %v1333 = vpop.f32.mrb[0].mxu0
    %v1334 = vadd.f32 %v766, %v1333
    %v1335 = vpop.f32.mrb[0].mxu0
    %1336 = vmatprep.mubr.bf16.mxu0 0
    %1337 = vmatmul.mubr.bf16.gmra.mrb[0].mxu0 %v1252
    %v1338 = vpop.f32.mrb[0].mxu0
    %v1339 = vadd.f32 %v767, %v1338
    %v1340 = vpop.f32.mrb[0].mxu0
    %v1341 = vpop.f32.mrb[0].mxu0
    %v1342 = vadd.f32 %v768, %v1341
    %v1343 = vpop.f32.mrb[0].mxu0
    %1344 = vmatprep.mubr.bf16.mxu0 0
    %1345 = vmatmul.mubr.bf16.gmra.mrb[0].mxu0 %v1255
    %v1346 = vpop.f32.mrb[0].mxu0
    %v1347 = vadd.f32 %v769, %v1346
    %v1348 = vpop.f32.mrb[0].mxu0
    %v1349 = vpop.f32.mrb[0].mxu0
    %v1350 = vadd.f32 %v770, %v1349
    %v1351 = vpop.f32.mrb[0].mxu0
    %1352 = vmatprep.mubr.bf16.mxu0 0
    %1353 = vmatmul.mubr.bf16.gmra.mrb[0].mxu0 %v1258
    %v1354 = vpop.f32.mrb[0].mxu0
    %v1355 = vadd.f32 %v771, %v1354
    %v1356 = vpop.f32.mrb[0].mxu0
    %v1357 = vpop.f32.mrb[0].mxu0
    %v1358 = vadd.f32 %v772, %v1357
    %v1359 = vpop.f32.mrb[0].mxu0
    %1360 = vmatprep.mubr.bf16.mxu0 0
    %1361 = vmatmul.mubr.bf16.gmra.mrb[0].mxu0 %v1261
    %v1362 = vpop.f32.mrb[0].mxu0
    %v1363 = vadd.f32 %v773, %v1362
    %v1364 = vpop.f32.mrb[0].mxu0
    %v1365 = vpop.f32.mrb[0].mxu0
    %v1366 = vadd.f32 %v774, %v1365
    %v1367 = vpop.f32.mrb[0].mxu0
    %1368 = vmatprep.mubr.bf16.mxu0 0
    %1369 = vmatmul.mubr.bf16.gmra.mrb[0].mxu0 %v1264
    %v1370 = vpop.f32.mrb[0].mxu0
    %v1371 = vadd.f32 %v775, %v1370
    %v1372 = vpop.f32.mrb[0].mxu0
    %v1373 = vpop.f32.mrb[0].mxu0
    %v1374 = vadd.f32 %v776, %v1373
    %v1375 = vpop.f32.mrb[0].mxu0
    %1376 = vmatprep.mubr.bf16.mxu0 0
    %1377 = vmatmul.mubr.bf16.gmra.mrb[0].mxu0 %v1267
    %v1378 = vpop.f32.mrb[0].mxu0
    %v1379 = vadd.f32 %v777, %v1378
    %v1380 = vpop.f32.mrb[0].mxu0
    %v1381 = vpop.f32.mrb[0].mxu0
    %v1382 = vadd.f32 %v778, %v1381
    %v1383 = vpop.f32.mrb[0].mxu0
    %1384 = vmatprep.mubr.bf16.mxu0 0
    %1385 = vmatmul.mubr.bf16.gmra.mrb[0].mxu0 %v1270
    %v1386 = vpop.f32.mrb[0].mxu0
    %v1387 = vadd.f32 %v779, %v1386
    %v1388 = vpop.f32.mrb[0].mxu0
    %v1389 = vpop.f32.mrb[0].mxu0
    %v1390 = vadd.f32 %v780, %v1389
    %v1391 = vpop.f32.mrb[0].mxu0
    %1392 = vdwg.mxu0
    %1393 = vmax.xlane.f32.xlu0 %v1331
    %v1394 = vpop.xlane.xlu0 %1393
    %1395 = vmax.xlane.f32.xlu0 %v1334
    %v1396 = vpop.xlane.xlu0 %1395
    %1397 = vmax.xlane.f32.xlu0 %v1339
    %v1398 = vpop.xlane.xlu0 %1397
    %1399 = vmax.xlane.f32.xlu0 %v1342
    %v1400 = vpop.xlane.xlu0 %1399
    %1401 = vmax.xlane.f32.xlu0 %v1347
    %v1402 = vpop.xlane.xlu0 %1401
    %1403 = vmax.xlane.f32.xlu0 %v1350
    %v1404 = vpop.xlane.xlu0 %1403
    %1405 = vmax.xlane.f32.xlu0 %v1355
    %v1406 = vpop.xlane.xlu0 %1405
    %1407 = vmax.xlane.f32.xlu0 %v1358
    %v1408 = vpop.xlane.xlu0 %1407
    %1409 = vmax.xlane.f32.xlu0 %v1363
    %v1410 = vpop.xlane.xlu0 %1409
    %1411 = vmax.xlane.f32.xlu0 %v1366
    %v1412 = vpop.xlane.xlu0 %1411
    %1413 = vmax.xlane.f32.xlu0 %v1371
    %v1414 = vpop.xlane.xlu0 %1413
    %1415 = vmax.xlane.f32.xlu0 %v1374
    %v1416 = vpop.xlane.xlu0 %1415
    %1417 = vmax.xlane.f32.xlu0 %v1379
    %v1418 = vpop.xlane.xlu0 %1417
    %1419 = vmax.xlane.f32.xlu0 %v1382
    %v1420 = vpop.xlane.xlu0 %1419
    %1421 = vmax.xlane.f32.xlu0 %v1387
    %v1422 = vpop.xlane.xlu0 %1421
    %1423 = vmax.xlane.f32.xlu0 %v1390
    %v1424 = vpop.xlane.xlu0 %1423
    %v1425 = vsub.f32 %v1331, %v1394
    %v1426 = vsub.f32 %v1334, %v1396
    %v1427 = vsub.f32 %v1339, %v1398
    %v1428 = vsub.f32 %v1342, %v1400
    %v1429 = vsub.f32 %v1347, %v1402
    %v1430 = vsub.f32 %v1350, %v1404
    %v1431 = vsub.f32 %v1355, %v1406
    %v1432 = vsub.f32 %v1358, %v1408
    %v1433 = vsub.f32 %v1363, %v1410
    %v1434 = vsub.f32 %v1366, %v1412
    %v1435 = vsub.f32 %v1371, %v1414
    %v1436 = vsub.f32 %v1374, %v1416
    %v1437 = vsub.f32 %v1379, %v1418
    %v1438 = vsub.f32 %v1382, %v1420
    %v1439 = vsub.f32 %v1387, %v1422
    %v1440 = vsub.f32 %v1390, %v1424
    %v1441 = vmul.f32 %v1425, 1.442695
    %v1442 = vpow.pop %v1441
    %v1443 = vmul.f32 %v1426, 1.442695
    %v1444 = vpow.pop %v1443
    %v1445 = vmul.f32 %v1427, 1.442695
    %v1446 = vpow.pop %v1445
    %v1447 = vmul.f32 %v1428, 1.442695
    %v1448 = vpow.pop %v1447
    %v1449 = vmul.f32 %v1429, 1.442695
    %v1450 = vpow.pop %v1449
    %v1451 = vmul.f32 %v1430, 1.442695
    %v1452 = vpow.pop %v1451
    %v1453 = vmul.f32 %v1431, 1.442695
    %v1454 = vpow.pop %v1453
    %v1455 = vmul.f32 %v1432, 1.442695
    %v1456 = vpow.pop %v1455
    %v1457 = vmul.f32 %v1433, 1.442695
    %v1458 = vpow.pop %v1457
    %v1459 = vmul.f32 %v1434, 1.442695
    %v1460 = vpow.pop %v1459
    %v1461 = vmul.f32 %v1435, 1.442695
    %v1462 = vpow.pop %v1461
    %v1463 = vmul.f32 %v1436, 1.442695
    %v1464 = vpow.pop %v1463
    %v1465 = vmul.f32 %v1437, 1.442695
    %v1466 = vpow.pop %v1465
    %v1467 = vmul.f32 %v1438, 1.442695
    %v1468 = vpow.pop %v1467
    %v1469 = vmul.f32 %v1439, 1.442695
    %v1470 = vpow.pop %v1469
    %v1471 = vmul.f32 %v1440, 1.442695
    %v1472 = vpow.pop %v1471
    %1473 = vadd.xlane.f32.xlu0 %v1442
    %v1474 = vpop.xlane.xlu0 %1473
    %1475 = vadd.xlane.f32.xlu0 %v1444
    %v1476 = vpop.xlane.xlu0 %1475
    %1477 = vadd.xlane.f32.xlu0 %v1446
    %v1478 = vpop.xlane.xlu0 %1477
    %1479 = vadd.xlane.f32.xlu0 %v1448
    %v1480 = vpop.xlane.xlu0 %1479
    %1481 = vadd.xlane.f32.xlu0 %v1450
    %v1482 = vpop.xlane.xlu0 %1481
    %1483 = vadd.xlane.f32.xlu0 %v1452
    %v1484 = vpop.xlane.xlu0 %1483
    %1485 = vadd.xlane.f32.xlu0 %v1454
    %v1486 = vpop.xlane.xlu0 %1485
    %1487 = vadd.xlane.f32.xlu0 %v1456
    %v1488 = vpop.xlane.xlu0 %1487
    %1489 = vadd.xlane.f32.xlu0 %v1458
    %v1490 = vpop.xlane.xlu0 %1489
    %1491 = vadd.xlane.f32.xlu0 %v1460
    %v1492 = vpop.xlane.xlu0 %1491
    %1493 = vadd.xlane.f32.xlu0 %v1462
    %v1494 = vpop.xlane.xlu0 %1493
    %1495 = vadd.xlane.f32.xlu0 %v1464
    %v1496 = vpop.xlane.xlu0 %1495
    %1497 = vadd.xlane.f32.xlu0 %v1466
    %v1498 = vpop.xlane.xlu0 %1497
    %1499 = vadd.xlane.f32.xlu0 %v1468
    %v1500 = vpop.xlane.xlu0 %1499
    %1501 = vadd.xlane.f32.xlu0 %v1470
    %v1502 = vpop.xlane.xlu0 %1501
    %1503 = vadd.xlane.f32.xlu0 %v1472
    %v1504 = vpop.xlane.xlu0 %1503
    %v1505 = vrcp.pop %v1474
    %v1506 = vrcp.pop %v1476
    %v1507 = vrcp.pop %v1478
    %v1508 = vrcp.pop %v1480
    %v1509 = vrcp.pop %v1482
    %v1510 = vrcp.pop %v1484
    %v1511 = vrcp.pop %v1486
    %v1512 = vrcp.pop %v1488
    %v1513 = vrcp.pop %v1490
    %v1514 = vrcp.pop %v1492
    %v1515 = vrcp.pop %v1494
    %v1516 = vrcp.pop %v1496
    %v1517 = vrcp.pop %v1498
    %v1518 = vrcp.pop %v1500
    %v1519 = vrcp.pop %v1502
    %v1520 = vrcp.pop %v1504
    %v1521 = vmul.f32 %v1442, %v1505
    %v1522 = vmul.f32 %v1444, %v1506
    %v1523 = vmul.f32 %v1446, %v1507
    %v1524 = vmul.f32 %v1448, %v1508
    %v1525 = vmul.f32 %v1450, %v1509
    %v1526 = vmul.f32 %v1452, %v1510
    %v1527 = vmul.f32 %v1454, %v1511
    %v1528 = vmul.f32 %v1456, %v1512
    %v1529 = vmul.f32 %v1458, %v1513
    %v1530 = vmul.f32 %v1460, %v1514
    %v1531 = vmul.f32 %v1462, %v1515
    %v1532 = vmul.f32 %v1464, %v1516
    %v1533 = vmul.f32 %v1466, %v1517
    %v1534 = vmul.f32 %v1468, %v1518
    %v1535 = vmul.f32 %v1470, %v1519
    %v1536 = vmul.f32 %v1472, %v1520
    %v1537 = vpack.c.bf16 %v1522, %v1521
    %v1538 = vpack.c.bf16 %v1524, %v1523
    %v1539 = vpack.c.bf16 %v1526, %v1525
    %v1540 = vpack.c.bf16 %v1528, %v1527
    %v1541 = vpack.c.bf16 %v1530, %v1529
    %v1542 = vpack.c.bf16 %v1532, %v1531
    %v1543 = vpack.c.bf16 %v1534, %v1533
    %v1544 = vpack.c.bf16 %v1536, %v1535
    %1553 = vrot.lane.b32.xlu0 %v797, 96
    %v1554 = vpop.permute.xlu0 %1553
    %1555 = vrot.lane.b32.xlu0 %v798, 96
    %v1556 = vpop.permute.xlu0 %1555
    %1557 = vrot.lane.b32.xlu0 %v799, 96
    %v1558 = vpop.permute.xlu0 %1557
    %1559 = vrot.lane.b32.xlu0 %v800, 96
    %v1560 = vpop.permute.xlu0 %1559
    %1561 = vrot.lane.b32.xlu0 %v801, 96
    %v1562 = vpop.permute.xlu0 %1561
    %1563 = vrot.lane.b32.xlu0 %v802, 96
    %v1564 = vpop.permute.xlu0 %1563
    %1565 = vrot.lane.b32.xlu0 %v803, 96
    %v1566 = vpop.permute.xlu0 %1565
    %1567 = vrot.lane.b32.xlu0 %v804, 96
    %v1568 = vpop.permute.xlu0 %1567
    %1577 = vmatprep.subr.bf16.mxu0 0
    %1578 = vmatpush1.bf16.msra.mxu0 %v1554
    %1579 = vmatprep.subr.bf16.mxu0 0
    %1580 = vmatpush1.bf16.msra.mxu0 %v1556
    %1581 = vmatprep.subr.bf16.mxu0 0
    %1582 = vmatpush1.bf16.msra.mxu0 %v1558
    %1583 = vmatprep.subr.bf16.mxu0 0
    %1584 = vmatpush1.bf16.msra.mxu0 %v1560
    %1585 = vmatprep.subr.bf16.mxu0 0
    %1586 = vmatpush1.bf16.msra.mxu0 %v1562
    %1587 = vmatprep.subr.bf16.mxu0 0
    %1588 = vmatpush1.bf16.msra.mxu0 %v1564
    %1589 = vmatprep.subr.bf16.mxu0 0
    %1590 = vmatpush1.bf16.msra.mxu0 %v1566
    %1591 = vmatprep.subr.bf16.mxu0 0
    %1592 = vmatpush1.bf16.msra.mxu0 %v1568
    %1593 = vmatprep.subr.bf16.mxu0 0
    %1594 = vmatpush1.bf16.msra.mxu0 0
    %1595 = vmatprep.subr.bf16.mxu0 0
    %1596 = vmatpush1.bf16.msra.mxu0 0
    %1597 = vmatprep.subr.bf16.mxu0 0
    %1598 = vmatpush1.bf16.msra.mxu0 0
    %1599 = vmatprep.subr.bf16.mxu0 0
    %1600 = vmatpush1.bf16.msra.mxu0 0
    %1601 = vmatprep.subr.bf16.mxu0 0
    %1602 = vmatpush1.bf16.msra.mxu0 0
    %1603 = vmatprep.subr.bf16.mxu0 0
    %1604 = vmatpush1.bf16.msra.mxu0 0
    %1605 = vmatprep.subr.bf16.mxu0 0
    %1606 = vmatpush1.bf16.msra.mxu0 0
    %1607 = vmatprep.subr.bf16.mxu0 0
    %1608 = vmatpush1.bf16.msra.mxu0 0
    %1609 = vmatprep.mubr.bf16.mxu0 0
    %1610 = vmatmul.mubr.bf16.gmra.mrb[0].mxu0 %v1537
    %v1611 = vpop.f32.mrb[0].mxu0
    %v1612 = vadd.f32 0.0, %v1611
    %v1613 = vpop.f32.mrb[0].mxu0
    %v1614 = vpop.f32.mrb[0].mxu0
    %v1615 = vadd.f32 0.0, %v1614
    %v1616 = vpop.f32.mrb[0].mxu0
    %1617 = vmatprep.mubr.bf16.mxu0 0
    %1618 = vmatmul.mubr.bf16.gmra.mrb[0].mxu0 %v1538
    %v1619 = vpop.f32.mrb[0].mxu0
    %v1620 = vadd.f32 0.0, %v1619
    %v1621 = vpop.f32.mrb[0].mxu0
    %v1622 = vpop.f32.mrb[0].mxu0
    %v1623 = vadd.f32 0.0, %v1622
    %v1624 = vpop.f32.mrb[0].mxu0
    %1625 = vmatprep.mubr.bf16.mxu0 0
    %1626 = vmatmul.mubr.bf16.gmra.mrb[0].mxu0 %v1539
    %v1627 = vpop.f32.mrb[0].mxu0
    %v1628 = vadd.f32 0.0, %v1627
    %v1629 = vpop.f32.mrb[0].mxu0
    %v1630 = vpop.f32.mrb[0].mxu0
    %v1631 = vadd.f32 0.0, %v1630
    %v1632 = vpop.f32.mrb[0].mxu0
    %1633 = vmatprep.mubr.bf16.mxu0 0
    %1634 = vmatmul.mubr.bf16.gmra.mrb[0].mxu0 %v1540
    %v1635 = vpop.f32.mrb[0].mxu0
    %v1636 = vadd.f32 0.0, %v1635
    %v1637 = vpop.f32.mrb[0].mxu0
    %v1638 = vpop.f32.mrb[0].mxu0
    %v1639 = vadd.f32 0.0, %v1638
    %v1640 = vpop.f32.mrb[0].mxu0
    %1641 = vmatprep.mubr.bf16.mxu0 0
    %1642 = vmatmul.mubr.bf16.gmra.mrb[0].mxu0 %v1541
    %v1643 = vpop.f32.mrb[0].mxu0
    %v1644 = vadd.f32 0.0, %v1643
    %v1645 = vpop.f32.mrb[0].mxu0
    %v1646 = vpop.f32.mrb[0].mxu0
    %v1647 = vadd.f32 0.0, %v1646
    %v1648 = vpop.f32.mrb[0].mxu0
    %1649 = vmatprep.mubr.bf16.mxu0 0
    %1650 = vmatmul.mubr.bf16.gmra.mrb[0].mxu0 %v1542
    %v1651 = vpop.f32.mrb[0].mxu0
    %v1652 = vadd.f32 0.0, %v1651
    %v1653 = vpop.f32.mrb[0].mxu0
    %v1654 = vpop.f32.mrb[0].mxu0
    %v1655 = vadd.f32 0.0, %v1654
    %v1656 = vpop.f32.mrb[0].mxu0
    %1657 = vmatprep.mubr.bf16.mxu0 0
    %1658 = vmatmul.mubr.bf16.gmra.mrb[0].mxu0 %v1543
    %v1659 = vpop.f32.mrb[0].mxu0
    %v1660 = vadd.f32 0.0, %v1659
    %v1661 = vpop.f32.mrb[0].mxu0
    %v1662 = vpop.f32.mrb[0].mxu0
    %v1663 = vadd.f32 0.0, %v1662
    %v1664 = vpop.f32.mrb[0].mxu0
    %1665 = vmatprep.mubr.bf16.mxu0 0
    %1666 = vmatmul.mubr.bf16.gmra.mrb[0].mxu0 %v1544
    %v1667 = vpop.f32.mrb[0].mxu0
    %v1668 = vadd.f32 0.0, %v1667
    %v1669 = vpop.f32.mrb[0].mxu0
    %v1670 = vpop.f32.mrb[0].mxu0
    %v1671 = vadd.f32 0.0, %v1670
    %v1672 = vpop.f32.mrb[0].mxu0
    %1673 = vdwg.mxu0
    %1674 = vrot.lane.b32.xlu0 %v781, 64
    %v1675 = vpop.permute.xlu0 %1674
    %1676 = vrot.lane.b32.xlu0 %v782, 64
    %v1677 = vpop.permute.xlu0 %1676
    %1678 = vrot.lane.b32.xlu0 %v783, 64
    %v1679 = vpop.permute.xlu0 %1678
    %1680 = vrot.lane.b32.xlu0 %v784, 64
    %v1681 = vpop.permute.xlu0 %1680
    %1682 = vrot.lane.b32.xlu0 %v785, 64
    %v1683 = vpop.permute.xlu0 %1682
    %1684 = vrot.lane.b32.xlu0 %v786, 64
    %v1685 = vpop.permute.xlu0 %1684
    %1686 = vrot.lane.b32.xlu0 %v787, 64
    %v1687 = vpop.permute.xlu0 %1686
    %1688 = vrot.lane.b32.xlu0 %v788, 64
    %v1689 = vpop.permute.xlu0 %1688
    %1690 = vrot.lane.b32.xlu0 %v789, 64
    %v1691 = vpop.permute.xlu0 %1690
    %1692 = vrot.lane.b32.xlu0 %v790, 64
    %v1693 = vpop.permute.xlu0 %1692
    %1694 = vrot.lane.b32.xlu0 %v791, 64
    %v1695 = vpop.permute.xlu0 %1694
    %1696 = vrot.lane.b32.xlu0 %v792, 64
    %v1697 = vpop.permute.xlu0 %1696
    %1698 = vrot.lane.b32.xlu0 %v793, 64
    %v1699 = vpop.permute.xlu0 %1698
    %1700 = vrot.lane.b32.xlu0 %v794, 64
    %v1701 = vpop.permute.xlu0 %1700
    %1702 = vrot.lane.b32.xlu0 %v795, 64
    %v1703 = vpop.permute.xlu0 %1702
    %1704 = vrot.lane.b32.xlu0 %v796, 64
    %v1705 = vpop.permute.xlu0 %1704
    %v1707 = vsel %vm805, %v1675, 0
    %v1710 = vsel %vm805, %v1677, 0
    %v1713 = vsel %vm805, %v1679, 0
    %v1716 = vsel %vm805, %v1681, 0
    %v1719 = vsel %vm805, %v1683, 0
    %v1722 = vsel %vm805, %v1685, 0
    %v1725 = vsel %vm805, %v1687, 0
    %v1728 = vsel %vm805, %v1689, 0
    %v1731 = vsel %vm805, %v1691, 0
    %v1734 = vsel %vm805, %v1693, 0
    %v1737 = vsel %vm805, %v1695, 0
    %v1740 = vsel %vm805, %v1697, 0
    %v1743 = vsel %vm805, %v1699, 0
    %v1746 = vsel %vm805, %v1701, 0
    %v1749 = vsel %vm805, %v1703, 0
    %v1752 = vsel %vm805, %v1705, 0
    %1754 = vmatprep.subr.bf16.mxu0 0
    %1755 = vmatpush1.bf16.xpose.msra.mxu0 %v1731
    %1756 = vmatprep.subr.bf16.mxu0 0
    %1757 = vmatpush1.bf16.xpose.msra.mxu0 %v1734
    %1758 = vmatprep.subr.bf16.mxu0 0
    %1759 = vmatpush1.bf16.xpose.msra.mxu0 %v1737
    %1760 = vmatprep.subr.bf16.mxu0 0
    %1761 = vmatpush1.bf16.xpose.msra.mxu0 %v1740
    %1762 = vmatprep.subr.bf16.mxu0 0
    %1763 = vmatpush1.bf16.xpose.msra.mxu0 %v1743
    %1764 = vmatprep.subr.bf16.mxu0 0
    %1765 = vmatpush1.bf16.xpose.msra.mxu0 %v1746
    %1766 = vmatprep.subr.bf16.mxu0 0
    %1767 = vmatpush1.bf16.xpose.msra.mxu0 %v1749
    %1768 = vmatprep.subr.bf16.mxu0 0
    %1769 = vmatpush1.bf16.xpose.msra.mxu0 %v1752
    %1770 = vmatprep.subr.bf16.mxu0 0
    %1771 = vmatpush1.bf16.xpose.msra.mxu0 0
    %1772 = vmatprep.subr.bf16.mxu0 0
    %1773 = vmatpush1.bf16.xpose.msra.mxu0 0
    %1774 = vmatprep.subr.bf16.mxu0 0
    %1775 = vmatpush1.bf16.xpose.msra.mxu0 0
    %1776 = vmatprep.subr.bf16.mxu0 0
    %1777 = vmatpush1.bf16.xpose.msra.mxu0 0
    %1778 = vmatprep.subr.bf16.mxu0 0
    %1779 = vmatpush1.bf16.xpose.msra.mxu0 0
    %1780 = vmatprep.subr.bf16.mxu0 0
    %1781 = vmatpush1.bf16.xpose.msra.mxu0 0
    %1782 = vmatprep.subr.bf16.mxu0 0
    %1783 = vmatpush1.bf16.xpose.msra.mxu0 0
    %1784 = vmatprep.subr.bf16.mxu0 0
    %1785 = vmatpush1.bf16.xpose.msra.mxu0 0
    %1786 = vmatprep.mubr.bf16.mxu0 0
    %1787 = vmatmul.mubr.bf16.gmra.mrb[0].mxu0 %v1707
    %v1788 = vpop.f32.mrb[0].mxu0
    %v1789 = vadd.f32 %v765, %v1788
    %v1790 = vpop.f32.mrb[0].mxu0
    %v1791 = vpop.f32.mrb[0].mxu0
    %v1792 = vadd.f32 %v766, %v1791
    %v1793 = vpop.f32.mrb[0].mxu0
    %1794 = vmatprep.mubr.bf16.mxu0 0
    %1795 = vmatmul.mubr.bf16.gmra.mrb[0].mxu0 %v1710
    %v1796 = vpop.f32.mrb[0].mxu0
    %v1797 = vadd.f32 %v767, %v1796
    %v1798 = vpop.f32.mrb[0].mxu0
    %v1799 = vpop.f32.mrb[0].mxu0
    %v1800 = vadd.f32 %v768, %v1799
    %v1801 = vpop.f32.mrb[0].mxu0
    %1802 = vmatprep.mubr.bf16.mxu0 0
    %1803 = vmatmul.mubr.bf16.gmra.mrb[0].mxu0 %v1713
    %v1804 = vpop.f32.mrb[0].mxu0
    %v1805 = vadd.f32 %v769, %v1804
    %v1806 = vpop.f32.mrb[0].mxu0
    %v1807 = vpop.f32.mrb[0].mxu0
    %v1808 = vadd.f32 %v770, %v1807
    %v1809 = vpop.f32.mrb[0].mxu0
    %1810 = vmatprep.mubr.bf16.mxu0 0
    %1811 = vmatmul.mubr.bf16.gmra.mrb[0].mxu0 %v1716
    %v1812 = vpop.f32.mrb[0].mxu0
    %v1813 = vadd.f32 %v771, %v1812
    %v1814 = vpop.f32.mrb[0].mxu0
    %v1815 = vpop.f32.mrb[0].mxu0
    %v1816 = vadd.f32 %v772, %v1815
    %v1817 = vpop.f32.mrb[0].mxu0
    %1818 = vmatprep.mubr.bf16.mxu0 0
    %1819 = vmatmul.mubr.bf16.gmra.mrb[0].mxu0 %v1719
    %v1820 = vpop.f32.mrb[0].mxu0
    %v1821 = vadd.f32 %v773, %v1820
    %v1822 = vpop.f32.mrb[0].mxu0
    %v1823 = vpop.f32.mrb[0].mxu0
    %v1824 = vadd.f32 %v774, %v1823
    %v1825 = vpop.f32.mrb[0].mxu0
    %1826 = vmatprep.mubr.bf16.mxu0 0
    %1827 = vmatmul.mubr.bf16.gmra.mrb[0].mxu0 %v1722
    %v1828 = vpop.f32.mrb[0].mxu0
    %v1829 = vadd.f32 %v775, %v1828
    %v1830 = vpop.f32.mrb[0].mxu0
    %v1831 = vpop.f32.mrb[0].mxu0
    %v1832 = vadd.f32 %v776, %v1831
    %v1833 = vpop.f32.mrb[0].mxu0
    %1834 = vmatprep.mubr.bf16.mxu0 0
    %1835 = vmatmul.mubr.bf16.gmra.mrb[0].mxu0 %v1725
    %v1836 = vpop.f32.mrb[0].mxu0
    %v1837 = vadd.f32 %v777, %v1836
    %v1838 = vpop.f32.mrb[0].mxu0
    %v1839 = vpop.f32.mrb[0].mxu0
    %v1840 = vadd.f32 %v778, %v1839
    %v1841 = vpop.f32.mrb[0].mxu0
    %1842 = vmatprep.mubr.bf16.mxu0 0
    %1843 = vmatmul.mubr.bf16.gmra.mrb[0].mxu0 %v1728
    %v1844 = vpop.f32.mrb[0].mxu0
    %v1845 = vadd.f32 %v779, %v1844
    %v1846 = vpop.f32.mrb[0].mxu0
    %v1847 = vpop.f32.mrb[0].mxu0
    %v1848 = vadd.f32 %v780, %v1847
    %v1849 = vpop.f32.mrb[0].mxu0
    %1850 = vdwg.mxu0
    %1851 = vmax.xlane.f32.xlu0 %v1789
    %v1852 = vpop.xlane.xlu0 %1851
    %1853 = vmax.xlane.f32.xlu0 %v1792
    %v1854 = vpop.xlane.xlu0 %1853
    %1855 = vmax.xlane.f32.xlu0 %v1797
    %v1856 = vpop.xlane.xlu0 %1855
    %1857 = vmax.xlane.f32.xlu0 %v1800
    %v1858 = vpop.xlane.xlu0 %1857
    %1859 = vmax.xlane.f32.xlu0 %v1805
    %v1860 = vpop.xlane.xlu0 %1859
    %1861 = vmax.xlane.f32.xlu0 %v1808
    %v1862 = vpop.xlane.xlu0 %1861
    %1863 = vmax.xlane.f32.xlu0 %v1813
    %v1864 = vpop.xlane.xlu0 %1863
    %1865 = vmax.xlane.f32.xlu0 %v1816
    %v1866 = vpop.xlane.xlu0 %1865
    %1867 = vmax.xlane.f32.xlu0 %v1821
    %v1868 = vpop.xlane.xlu0 %1867
    %1869 = vmax.xlane.f32.xlu0 %v1824
    %v1870 = vpop.xlane.xlu0 %1869
    %1871 = vmax.xlane.f32.xlu0 %v1829
    %v1872 = vpop.xlane.xlu0 %1871
    %1873 = vmax.xlane.f32.xlu0 %v1832
    %v1874 = vpop.xlane.xlu0 %1873
    %1875 = vmax.xlane.f32.xlu0 %v1837
    %v1876 = vpop.xlane.xlu0 %1875
    %1877 = vmax.xlane.f32.xlu0 %v1840
    %v1878 = vpop.xlane.xlu0 %1877
    %1879 = vmax.xlane.f32.xlu0 %v1845
    %v1880 = vpop.xlane.xlu0 %1879
    %1881 = vmax.xlane.f32.xlu0 %v1848
    %v1882 = vpop.xlane.xlu0 %1881
    %v1883 = vsub.f32 %v1789, %v1852
    %v1884 = vsub.f32 %v1792, %v1854
    %v1885 = vsub.f32 %v1797, %v1856
    %v1886 = vsub.f32 %v1800, %v1858
    %v1887 = vsub.f32 %v1805, %v1860
    %v1888 = vsub.f32 %v1808, %v1862
    %v1889 = vsub.f32 %v1813, %v1864
    %v1890 = vsub.f32 %v1816, %v1866
    %v1891 = vsub.f32 %v1821, %v1868
    %v1892 = vsub.f32 %v1824, %v1870
    %v1893 = vsub.f32 %v1829, %v1872
    %v1894 = vsub.f32 %v1832, %v1874
    %v1895 = vsub.f32 %v1837, %v1876
    %v1896 = vsub.f32 %v1840, %v1878
    %v1897 = vsub.f32 %v1845, %v1880
    %v1898 = vsub.f32 %v1848, %v1882
    %v1899 = vmul.f32 %v1883, 1.442695
    %v1900 = vpow.pop %v1899
    %v1901 = vmul.f32 %v1884, 1.442695
    %v1902 = vpow.pop %v1901
    %v1903 = vmul.f32 %v1885, 1.442695
    %v1904 = vpow.pop %v1903
    %v1905 = vmul.f32 %v1886, 1.442695
    %v1906 = vpow.pop %v1905
    %v1907 = vmul.f32 %v1887, 1.442695
    %v1908 = vpow.pop %v1907
    %v1909 = vmul.f32 %v1888, 1.442695
    %v1910 = vpow.pop %v1909
    %v1911 = vmul.f32 %v1889, 1.442695
    %v1912 = vpow.pop %v1911
    %v1913 = vmul.f32 %v1890, 1.442695
    %v1914 = vpow.pop %v1913
    %v1915 = vmul.f32 %v1891, 1.442695
    %v1916 = vpow.pop %v1915
    %v1917 = vmul.f32 %v1892, 1.442695
    %v1918 = vpow.pop %v1917
    %v1919 = vmul.f32 %v1893, 1.442695
    %v1920 = vpow.pop %v1919
    %v1921 = vmul.f32 %v1894, 1.442695
    %v1922 = vpow.pop %v1921
    %v1923 = vmul.f32 %v1895, 1.442695
    %v1924 = vpow.pop %v1923
    %v1925 = vmul.f32 %v1896, 1.442695
    %v1926 = vpow.pop %v1925
    %v1927 = vmul.f32 %v1897, 1.442695
    %v1928 = vpow.pop %v1927
    %v1929 = vmul.f32 %v1898, 1.442695
    %v1930 = vpow.pop %v1929
    %1931 = vadd.xlane.f32.xlu0 %v1900
    %v1932 = vpop.xlane.xlu0 %1931
    %1933 = vadd.xlane.f32.xlu0 %v1902
    %v1934 = vpop.xlane.xlu0 %1933
    %1935 = vadd.xlane.f32.xlu0 %v1904
    %v1936 = vpop.xlane.xlu0 %1935
    %1937 = vadd.xlane.f32.xlu0 %v1906
    %v1938 = vpop.xlane.xlu0 %1937
    %1939 = vadd.xlane.f32.xlu0 %v1908
    %v1940 = vpop.xlane.xlu0 %1939
    %1941 = vadd.xlane.f32.xlu0 %v1910
    %v1942 = vpop.xlane.xlu0 %1941
    %1943 = vadd.xlane.f32.xlu0 %v1912
    %v1944 = vpop.xlane.xlu0 %1943
    %1945 = vadd.xlane.f32.xlu0 %v1914
    %v1946 = vpop.xlane.xlu0 %1945
    %1947 = vadd.xlane.f32.xlu0 %v1916
    %v1948 = vpop.xlane.xlu0 %1947
    %1949 = vadd.xlane.f32.xlu0 %v1918
    %v1950 = vpop.xlane.xlu0 %1949
    %1951 = vadd.xlane.f32.xlu0 %v1920
    %v1952 = vpop.xlane.xlu0 %1951
    %1953 = vadd.xlane.f32.xlu0 %v1922
    %v1954 = vpop.xlane.xlu0 %1953
    %1955 = vadd.xlane.f32.xlu0 %v1924
    %v1956 = vpop.xlane.xlu0 %1955
    %1957 = vadd.xlane.f32.xlu0 %v1926
    %v1958 = vpop.xlane.xlu0 %1957
    %1959 = vadd.xlane.f32.xlu0 %v1928
    %v1960 = vpop.xlane.xlu0 %1959
    %1961 = vadd.xlane.f32.xlu0 %v1930
    %v1962 = vpop.xlane.xlu0 %1961
    %v1963 = vrcp.pop %v1932
    %v1964 = vrcp.pop %v1934
    %v1965 = vrcp.pop %v1936
    %v1966 = vrcp.pop %v1938
    %v1967 = vrcp.pop %v1940
    %v1968 = vrcp.pop %v1942
    %v1969 = vrcp.pop %v1944
    %v1970 = vrcp.pop %v1946
    %v1971 = vrcp.pop %v1948
    %v1972 = vrcp.pop %v1950
    %v1973 = vrcp.pop %v1952
    %v1974 = vrcp.pop %v1954
    %v1975 = vrcp.pop %v1956
    %v1976 = vrcp.pop %v1958
    %v1977 = vrcp.pop %v1960
    %v1978 = vrcp.pop %v1962
    %v1979 = vmul.f32 %v1900, %v1963
    %v1980 = vmul.f32 %v1902, %v1964
    %v1981 = vmul.f32 %v1904, %v1965
    %v1982 = vmul.f32 %v1906, %v1966
    %v1983 = vmul.f32 %v1908, %v1967
    %v1984 = vmul.f32 %v1910, %v1968
    %v1985 = vmul.f32 %v1912, %v1969
    %v1986 = vmul.f32 %v1914, %v1970
    %v1987 = vmul.f32 %v1916, %v1971
    %v1988 = vmul.f32 %v1918, %v1972
    %v1989 = vmul.f32 %v1920, %v1973
    %v1990 = vmul.f32 %v1922, %v1974
    %v1991 = vmul.f32 %v1924, %v1975
    %v1992 = vmul.f32 %v1926, %v1976
    %v1993 = vmul.f32 %v1928, %v1977
    %v1994 = vmul.f32 %v1930, %v1978
    %v1995 = vpack.c.bf16 %v1980, %v1979
    %v1996 = vpack.c.bf16 %v1982, %v1981
    %v1997 = vpack.c.bf16 %v1984, %v1983
    %v1998 = vpack.c.bf16 %v1986, %v1985
    %v1999 = vpack.c.bf16 %v1988, %v1987
    %v2000 = vpack.c.bf16 %v1990, %v1989
    %v2001 = vpack.c.bf16 %v1992, %v1991
    %v2002 = vpack.c.bf16 %v1994, %v1993
    %2003 = vrot.lane.b32.xlu0 %v797, 64
    %v2004 = vpop.permute.xlu0 %2003
    %2005 = vrot.lane.b32.xlu0 %v798, 64
    %v2006 = vpop.permute.xlu0 %2005
    %2007 = vrot.lane.b32.xlu0 %v799, 64
    %v2008 = vpop.permute.xlu0 %2007
    %2009 = vrot.lane.b32.xlu0 %v800, 64
    %v2010 = vpop.permute.xlu0 %2009
    %2011 = vrot.lane.b32.xlu0 %v801, 64
    %v2012 = vpop.permute.xlu0 %2011
    %2013 = vrot.lane.b32.xlu0 %v802, 64
    %v2014 = vpop.permute.xlu0 %2013
    %2015 = vrot.lane.b32.xlu0 %v803, 64
    %v2016 = vpop.permute.xlu0 %2015
    %2017 = vrot.lane.b32.xlu0 %v804, 64
    %v2018 = vpop.permute.xlu0 %2017
    %2027 = vmatprep.subr.bf16.mxu0 0
    %2028 = vmatpush1.bf16.msra.mxu0 %v2004
    %2029 = vmatprep.subr.bf16.mxu0 0
    %2030 = vmatpush1.bf16.msra.mxu0 %v2006
    %2031 = vmatprep.subr.bf16.mxu0 0
    %2032 = vmatpush1.bf16.msra.mxu0 %v2008
    %2033 = vmatprep.subr.bf16.mxu0 0
    %2034 = vmatpush1.bf16.msra.mxu0 %v2010
    %2035 = vmatprep.subr.bf16.mxu0 0
    %2036 = vmatpush1.bf16.msra.mxu0 %v2012
    %2037 = vmatprep.subr.bf16.mxu0 0
    %2038 = vmatpush1.bf16.msra.mxu0 %v2014
    %2039 = vmatprep.subr.bf16.mxu0 0
    %2040 = vmatpush1.bf16.msra.mxu0 %v2016
    %2041 = vmatprep.subr.bf16.mxu0 0
    %2042 = vmatpush1.bf16.msra.mxu0 %v2018
    %2043 = vmatprep.subr.bf16.mxu0 0
    %2044 = vmatpush1.bf16.msra.mxu0 0
    %2045 = vmatprep.subr.bf16.mxu0 0
    %2046 = vmatpush1.bf16.msra.mxu0 0
    %2047 = vmatprep.subr.bf16.mxu0 0
    %2048 = vmatpush1.bf16.msra.mxu0 0
    %2049 = vmatprep.subr.bf16.mxu0 0
    %2050 = vmatpush1.bf16.msra.mxu0 0
    %2051 = vmatprep.subr.bf16.mxu0 0
    %2052 = vmatpush1.bf16.msra.mxu0 0
    %2053 = vmatprep.subr.bf16.mxu0 0
    %2054 = vmatpush1.bf16.msra.mxu0 0
    %2055 = vmatprep.subr.bf16.mxu0 0
    %2056 = vmatpush1.bf16.msra.mxu0 0
    %2057 = vmatprep.subr.bf16.mxu0 0
    %2058 = vmatpush1.bf16.msra.mxu0 0
    %2059 = vmatprep.mubr.bf16.mxu0 0
    %2060 = vmatmul.mubr.bf16.gmra.mrb[0].mxu0 %v1995
    %v2061 = vpop.f32.mrb[0].mxu0
    %v2062 = vadd.f32 0.0, %v2061
    %v2063 = vpop.f32.mrb[0].mxu0
    %v2064 = vpop.f32.mrb[0].mxu0
    %v2065 = vadd.f32 0.0, %v2064
    %v2066 = vpop.f32.mrb[0].mxu0
    %2067 = vmatprep.mubr.bf16.mxu0 0
    %2068 = vmatmul.mubr.bf16.gmra.mrb[0].mxu0 %v1996
    %v2069 = vpop.f32.mrb[0].mxu0
    %v2070 = vadd.f32 0.0, %v2069
    %v2071 = vpop.f32.mrb[0].mxu0
    %v2072 = vpop.f32.mrb[0].mxu0
    %v2073 = vadd.f32 0.0, %v2072
    %v2074 = vpop.f32.mrb[0].mxu0
    %2075 = vmatprep.mubr.bf16.mxu0 0
    %2076 = vmatmul.mubr.bf16.gmra.mrb[0].mxu0 %v1997
    %v2077 = vpop.f32.mrb[0].mxu0
    %v2078 = vadd.f32 0.0, %v2077
    %v2079 = vpop.f32.mrb[0].mxu0
    %v2080 = vpop.f32.mrb[0].mxu0
    %v2081 = vadd.f32 0.0, %v2080
    %v2082 = vpop.f32.mrb[0].mxu0
    %2083 = vmatprep.mubr.bf16.mxu0 0
    %2084 = vmatmul.mubr.bf16.gmra.mrb[0].mxu0 %v1998
    %v2085 = vpop.f32.mrb[0].mxu0
    %v2086 = vadd.f32 0.0, %v2085
    %v2087 = vpop.f32.mrb[0].mxu0
    %v2088 = vpop.f32.mrb[0].mxu0
    %v2089 = vadd.f32 0.0, %v2088
    %v2090 = vpop.f32.mrb[0].mxu0
    %2091 = vmatprep.mubr.bf16.mxu0 0
    %2092 = vmatmul.mubr.bf16.gmra.mrb[0].mxu0 %v1999
    %v2093 = vpop.f32.mrb[0].mxu0
    %v2094 = vadd.f32 0.0, %v2093
    %v2095 = vpop.f32.mrb[0].mxu0
    %v2096 = vpop.f32.mrb[0].mxu0
    %v2097 = vadd.f32 0.0, %v2096
    %v2098 = vpop.f32.mrb[0].mxu0
    %2099 = vmatprep.mubr.bf16.mxu0 0
    %2100 = vmatmul.mubr.bf16.gmra.mrb[0].mxu0 %v2000
    %v2101 = vpop.f32.mrb[0].mxu0
    %v2102 = vadd.f32 0.0, %v2101
    %v2103 = vpop.f32.mrb[0].mxu0
    %v2104 = vpop.f32.mrb[0].mxu0
    %v2105 = vadd.f32 0.0, %v2104
    %v2106 = vpop.f32.mrb[0].mxu0
    %2107 = vmatprep.mubr.bf16.mxu0 0
    %2108 = vmatmul.mubr.bf16.gmra.mrb[0].mxu0 %v2001
    %v2109 = vpop.f32.mrb[0].mxu0
    %v2110 = vadd.f32 0.0, %v2109
    %v2111 = vpop.f32.mrb[0].mxu0
    %v2112 = vpop.f32.mrb[0].mxu0
    %v2113 = vadd.f32 0.0, %v2112
    %v2114 = vpop.f32.mrb[0].mxu0
    %2115 = vmatprep.mubr.bf16.mxu0 0
    %2116 = vmatmul.mubr.bf16.gmra.mrb[0].mxu0 %v2002
    %v2117 = vpop.f32.mrb[0].mxu0
    %v2118 = vadd.f32 0.0, %v2117
    %v2119 = vpop.f32.mrb[0].mxu0
    %v2120 = vpop.f32.mrb[0].mxu0
    %v2121 = vadd.f32 0.0, %v2120
    %v2122 = vpop.f32.mrb[0].mxu0
    %2123 = vdwg.mxu0
    %2124 = vrot.lane.b32.xlu0 %v781, 32
    %v2125 = vpop.permute.xlu0 %2124
    %2126 = vrot.lane.b32.xlu0 %v782, 32
    %v2127 = vpop.permute.xlu0 %2126
    %2128 = vrot.lane.b32.xlu0 %v783, 32
    %v2129 = vpop.permute.xlu0 %2128
    %2130 = vrot.lane.b32.xlu0 %v784, 32
    %v2131 = vpop.permute.xlu0 %2130
    %2132 = vrot.lane.b32.xlu0 %v785, 32
    %v2133 = vpop.permute.xlu0 %2132
    %2134 = vrot.lane.b32.xlu0 %v786, 32
    %v2135 = vpop.permute.xlu0 %2134
    %2136 = vrot.lane.b32.xlu0 %v787, 32
    %v2137 = vpop.permute.xlu0 %2136
    %2138 = vrot.lane.b32.xlu0 %v788, 32
    %v2139 = vpop.permute.xlu0 %2138
    %2140 = vrot.lane.b32.xlu0 %v789, 32
    %v2141 = vpop.permute.xlu0 %2140
    %2142 = vrot.lane.b32.xlu0 %v790, 32
    %v2143 = vpop.permute.xlu0 %2142
    %2144 = vrot.lane.b32.xlu0 %v791, 32
    %v2145 = vpop.permute.xlu0 %2144
    %2146 = vrot.lane.b32.xlu0 %v792, 32
    %v2147 = vpop.permute.xlu0 %2146
    %2148 = vrot.lane.b32.xlu0 %v793, 32
    %v2149 = vpop.permute.xlu0 %2148
    %2150 = vrot.lane.b32.xlu0 %v794, 32
    %v2151 = vpop.permute.xlu0 %2150
    %2152 = vrot.lane.b32.xlu0 %v795, 32
    %v2153 = vpop.permute.xlu0 %2152
    %2154 = vrot.lane.b32.xlu0 %v796, 32
    %v2155 = vpop.permute.xlu0 %2154
    %v2157 = vsel %vm805, %v2125, 0
    %v2160 = vsel %vm805, %v2127, 0
    %v2163 = vsel %vm805, %v2129, 0
    %v2166 = vsel %vm805, %v2131, 0
    %v2169 = vsel %vm805, %v2133, 0
    %v2172 = vsel %vm805, %v2135, 0
    %v2175 = vsel %vm805, %v2137, 0
    %v2178 = vsel %vm805, %v2139, 0
    %v2181 = vsel %vm805, %v2141, 0
    %v2184 = vsel %vm805, %v2143, 0
    %v2187 = vsel %vm805, %v2145, 0
    %v2190 = vsel %vm805, %v2147, 0
    %v2193 = vsel %vm805, %v2149, 0
    %v2196 = vsel %vm805, %v2151, 0
    %v2199 = vsel %vm805, %v2153, 0
    %v2202 = vsel %vm805, %v2155, 0
    %2204 = vmatprep.subr.bf16.mxu0 0
    %2205 = vmatpush1.bf16.xpose.msra.mxu0 %v2181
    %2206 = vmatprep.subr.bf16.mxu0 0
    %2207 = vmatpush1.bf16.xpose.msra.mxu0 %v2184
    %2208 = vmatprep.subr.bf16.mxu0 0
    %2209 = vmatpush1.bf16.xpose.msra.mxu0 %v2187
    %2210 = vmatprep.subr.bf16.mxu0 0
    %2211 = vmatpush1.bf16.xpose.msra.mxu0 %v2190
    %2212 = vmatprep.subr.bf16.mxu0 0
    %2213 = vmatpush1.bf16.xpose.msra.mxu0 %v2193
    %2214 = vmatprep.subr.bf16.mxu0 0
    %2215 = vmatpush1.bf16.xpose.msra.mxu0 %v2196
    %2216 = vmatprep.subr.bf16.mxu0 0
    %2217 = vmatpush1.bf16.xpose.msra.mxu0 %v2199
    %2218 = vmatprep.subr.bf16.mxu0 0
    %2219 = vmatpush1.bf16.xpose.msra.mxu0 %v2202
    %2220 = vmatprep.subr.bf16.mxu0 0
    %2221 = vmatpush1.bf16.xpose.msra.mxu0 0
    %2222 = vmatprep.subr.bf16.mxu0 0
    %2223 = vmatpush1.bf16.xpose.msra.mxu0 0
    %2224 = vmatprep.subr.bf16.mxu0 0
    %2225 = vmatpush1.bf16.xpose.msra.mxu0 0
    %2226 = vmatprep.subr.bf16.mxu0 0
    %2227 = vmatpush1.bf16.xpose.msra.mxu0 0
    %2228 = vmatprep.subr.bf16.mxu0 0
    %2229 = vmatpush1.bf16.xpose.msra.mxu0 0
    %2230 = vmatprep.subr.bf16.mxu0 0
    %2231 = vmatpush1.bf16.xpose.msra.mxu0 0
    %2232 = vmatprep.subr.bf16.mxu0 0
    %2233 = vmatpush1.bf16.xpose.msra.mxu0 0
    %2234 = vmatprep.subr.bf16.mxu0 0
    %2235 = vmatpush1.bf16.xpose.msra.mxu0 0
    %2236 = vmatprep.mubr.bf16.mxu0 0
    %2237 = vmatmul.mubr.bf16.gmra.mrb[0].mxu0 %v2157
    %v2238 = vpop.f32.mrb[0].mxu0
    %v2239 = vadd.f32 %v765, %v2238
    %v2240 = vpop.f32.mrb[0].mxu0
    %v2241 = vpop.f32.mrb[0].mxu0
    %v2242 = vadd.f32 %v766, %v2241
    %v2243 = vpop.f32.mrb[0].mxu0
    %2244 = vmatprep.mubr.bf16.mxu0 0
    %2245 = vmatmul.mubr.bf16.gmra.mrb[0].mxu0 %v2160
    %v2246 = vpop.f32.mrb[0].mxu0
    %v2247 = vadd.f32 %v767, %v2246
    %v2248 = vpop.f32.mrb[0].mxu0
    %v2249 = vpop.f32.mrb[0].mxu0
    %v2250 = vadd.f32 %v768, %v2249
    %v2251 = vpop.f32.mrb[0].mxu0
    %2252 = vmatprep.mubr.bf16.mxu0 0
    %2253 = vmatmul.mubr.bf16.gmra.mrb[0].mxu0 %v2163
    %v2254 = vpop.f32.mrb[0].mxu0
    %v2255 = vadd.f32 %v769, %v2254
    %v2256 = vpop.f32.mrb[0].mxu0
    %v2257 = vpop.f32.mrb[0].mxu0
    %v2258 = vadd.f32 %v770, %v2257
    %v2259 = vpop.f32.mrb[0].mxu0
    %2260 = vmatprep.mubr.bf16.mxu0 0
    %2261 = vmatmul.mubr.bf16.gmra.mrb[0].mxu0 %v2166
    %v2262 = vpop.f32.mrb[0].mxu0
    %v2263 = vadd.f32 %v771, %v2262
    %v2264 = vpop.f32.mrb[0].mxu0
    %v2265 = vpop.f32.mrb[0].mxu0
    %v2266 = vadd.f32 %v772, %v2265
    %v2267 = vpop.f32.mrb[0].mxu0
    %2268 = vmatprep.mubr.bf16.mxu0 0
    %2269 = vmatmul.mubr.bf16.gmra.mrb[0].mxu0 %v2169
    %v2270 = vpop.f32.mrb[0].mxu0
    %v2271 = vadd.f32 %v773, %v2270
    %v2272 = vpop.f32.mrb[0].mxu0
    %v2273 = vpop.f32.mrb[0].mxu0
    %v2274 = vadd.f32 %v774, %v2273
    %v2275 = vpop.f32.mrb[0].mxu0
    %2276 = vmatprep.mubr.bf16.mxu0 0
    %2277 = vmatmul.mubr.bf16.gmra.mrb[0].mxu0 %v2172
    %v2278 = vpop.f32.mrb[0].mxu0
    %v2279 = vadd.f32 %v775, %v2278
    %v2280 = vpop.f32.mrb[0].mxu0
    %v2281 = vpop.f32.mrb[0].mxu0
    %v2282 = vadd.f32 %v776, %v2281
    %v2283 = vpop.f32.mrb[0].mxu0
    %2284 = vmatprep.mubr.bf16.mxu0 0
    %2285 = vmatmul.mubr.bf16.gmra.mrb[0].mxu0 %v2175
    %v2286 = vpop.f32.mrb[0].mxu0
    %v2287 = vadd.f32 %v777, %v2286
    %v2288 = vpop.f32.mrb[0].mxu0
    %v2289 = vpop.f32.mrb[0].mxu0
    %v2290 = vadd.f32 %v778, %v2289
    %v2291 = vpop.f32.mrb[0].mxu0
    %2292 = vmatprep.mubr.bf16.mxu0 0
    %2293 = vmatmul.mubr.bf16.gmra.mrb[0].mxu0 %v2178
    %v2294 = vpop.f32.mrb[0].mxu0
    %v2295 = vadd.f32 %v779, %v2294
    %v2296 = vpop.f32.mrb[0].mxu0
    %v2297 = vpop.f32.mrb[0].mxu0
    %v2298 = vadd.f32 %v780, %v2297
    %v2299 = vpop.f32.mrb[0].mxu0
    %2300 = vdwg.mxu0
    %2301 = vmax.xlane.f32.xlu0 %v2239
    %v2302 = vpop.xlane.xlu0 %2301
    %2303 = vmax.xlane.f32.xlu0 %v2242
    %v2304 = vpop.xlane.xlu0 %2303
    %2305 = vmax.xlane.f32.xlu0 %v2247
    %v2306 = vpop.xlane.xlu0 %2305
    %2307 = vmax.xlane.f32.xlu0 %v2250
    %v2308 = vpop.xlane.xlu0 %2307
    %2309 = vmax.xlane.f32.xlu0 %v2255
    %v2310 = vpop.xlane.xlu0 %2309
    %2311 = vmax.xlane.f32.xlu0 %v2258
    %v2312 = vpop.xlane.xlu0 %2311
    %2313 = vmax.xlane.f32.xlu0 %v2263
    %v2314 = vpop.xlane.xlu0 %2313
    %2315 = vmax.xlane.f32.xlu0 %v2266
    %v2316 = vpop.xlane.xlu0 %2315
    %2317 = vmax.xlane.f32.xlu0 %v2271
    %v2318 = vpop.xlane.xlu0 %2317
    %2319 = vmax.xlane.f32.xlu0 %v2274
    %v2320 = vpop.xlane.xlu0 %2319
    %2321 = vmax.xlane.f32.xlu0 %v2279
    %v2322 = vpop.xlane.xlu0 %2321
    %2323 = vmax.xlane.f32.xlu0 %v2282
    %v2324 = vpop.xlane.xlu0 %2323
    %2325 = vmax.xlane.f32.xlu0 %v2287
    %v2326 = vpop.xlane.xlu0 %2325
    %2327 = vmax.xlane.f32.xlu0 %v2290
    %v2328 = vpop.xlane.xlu0 %2327
    %2329 = vmax.xlane.f32.xlu0 %v2295
    %v2330 = vpop.xlane.xlu0 %2329
    %2331 = vmax.xlane.f32.xlu0 %v2298
    %v2332 = vpop.xlane.xlu0 %2331
    %v2333 = vsub.f32 %v2239, %v2302
    %v2334 = vsub.f32 %v2242, %v2304
    %v2335 = vsub.f32 %v2247, %v2306
    %v2336 = vsub.f32 %v2250, %v2308
    %v2337 = vsub.f32 %v2255, %v2310
    %v2338 = vsub.f32 %v2258, %v2312
    %v2339 = vsub.f32 %v2263, %v2314
    %v2340 = vsub.f32 %v2266, %v2316
    %v2341 = vsub.f32 %v2271, %v2318
    %v2342 = vsub.f32 %v2274, %v2320
    %v2343 = vsub.f32 %v2279, %v2322
    %v2344 = vsub.f32 %v2282, %v2324
    %v2345 = vsub.f32 %v2287, %v2326
    %v2346 = vsub.f32 %v2290, %v2328
    %v2347 = vsub.f32 %v2295, %v2330
    %v2348 = vsub.f32 %v2298, %v2332
    %v2349 = vmul.f32 %v2333, 1.442695
    %v2350 = vpow.pop %v2349
    %v2351 = vmul.f32 %v2334, 1.442695
    %v2352 = vpow.pop %v2351
    %v2353 = vmul.f32 %v2335, 1.442695
    %v2354 = vpow.pop %v2353
    %v2355 = vmul.f32 %v2336, 1.442695
    %v2356 = vpow.pop %v2355
    %v2357 = vmul.f32 %v2337, 1.442695
    %v2358 = vpow.pop %v2357
    %v2359 = vmul.f32 %v2338, 1.442695
    %v2360 = vpow.pop %v2359
    %v2361 = vmul.f32 %v2339, 1.442695
    %v2362 = vpow.pop %v2361
    %v2363 = vmul.f32 %v2340, 1.442695
    %v2364 = vpow.pop %v2363
    %v2365 = vmul.f32 %v2341, 1.442695
    %v2366 = vpow.pop %v2365
    %v2367 = vmul.f32 %v2342, 1.442695
    %v2368 = vpow.pop %v2367
    %v2369 = vmul.f32 %v2343, 1.442695
    %v2370 = vpow.pop %v2369
    %v2371 = vmul.f32 %v2344, 1.442695
    %v2372 = vpow.pop %v2371
    %v2373 = vmul.f32 %v2345, 1.442695
    %v2374 = vpow.pop %v2373
    %v2375 = vmul.f32 %v2346, 1.442695
    %v2376 = vpow.pop %v2375
    %v2377 = vmul.f32 %v2347, 1.442695
    %v2378 = vpow.pop %v2377
    %v2379 = vmul.f32 %v2348, 1.442695
    %v2380 = vpow.pop %v2379
    %2381 = vadd.xlane.f32.xlu0 %v2350
    %v2382 = vpop.xlane.xlu0 %2381
    %2383 = vadd.xlane.f32.xlu0 %v2352
    %v2384 = vpop.xlane.xlu0 %2383
    %2385 = vadd.xlane.f32.xlu0 %v2354
    %v2386 = vpop.xlane.xlu0 %2385
    %2387 = vadd.xlane.f32.xlu0 %v2356
    %v2388 = vpop.xlane.xlu0 %2387
    %2389 = vadd.xlane.f32.xlu0 %v2358
    %v2390 = vpop.xlane.xlu0 %2389
    %2391 = vadd.xlane.f32.xlu0 %v2360
    %v2392 = vpop.xlane.xlu0 %2391
    %2393 = vadd.xlane.f32.xlu0 %v2362
    %v2394 = vpop.xlane.xlu0 %2393
    %2395 = vadd.xlane.f32.xlu0 %v2364
    %v2396 = vpop.xlane.xlu0 %2395
    %2397 = vadd.xlane.f32.xlu0 %v2366
    %v2398 = vpop.xlane.xlu0 %2397
    %2399 = vadd.xlane.f32.xlu0 %v2368
    %v2400 = vpop.xlane.xlu0 %2399
    %2401 = vadd.xlane.f32.xlu0 %v2370
    %v2402 = vpop.xlane.xlu0 %2401
    %2403 = vadd.xlane.f32.xlu0 %v2372
    %v2404 = vpop.xlane.xlu0 %2403
    %2405 = vadd.xlane.f32.xlu0 %v2374
    %v2406 = vpop.xlane.xlu0 %2405
    %2407 = vadd.xlane.f32.xlu0 %v2376
    %v2408 = vpop.xlane.xlu0 %2407
    %2409 = vadd.xlane.f32.xlu0 %v2378
    %v2410 = vpop.xlane.xlu0 %2409
    %2411 = vadd.xlane.f32.xlu0 %v2380
    %v2412 = vpop.xlane.xlu0 %2411
    %v2413 = vrcp.pop %v2382
    %v2414 = vrcp.pop %v2384
    %v2415 = vrcp.pop %v2386
    %v2416 = vrcp.pop %v2388
    %v2417 = vrcp.pop %v2390
    %v2418 = vrcp.pop %v2392
    %v2419 = vrcp.pop %v2394
    %v2420 = vrcp.pop %v2396
    %v2421 = vrcp.pop %v2398
    %v2422 = vrcp.pop %v2400
    %v2423 = vrcp.pop %v2402
    %v2424 = vrcp.pop %v2404
    %v2425 = vrcp.pop %v2406
    %v2426 = vrcp.pop %v2408
    %v2427 = vrcp.pop %v2410
    %v2428 = vrcp.pop %v2412
    %v2429 = vmul.f32 %v2350, %v2413
    %v2430 = vmul.f32 %v2352, %v2414
    %v2431 = vmul.f32 %v2354, %v2415
    %v2432 = vmul.f32 %v2356, %v2416
    %v2433 = vmul.f32 %v2358, %v2417
    %v2434 = vmul.f32 %v2360, %v2418
    %v2435 = vmul.f32 %v2362, %v2419
    %v2436 = vmul.f32 %v2364, %v2420
    %v2437 = vmul.f32 %v2366, %v2421
    %v2438 = vmul.f32 %v2368, %v2422
    %v2439 = vmul.f32 %v2370, %v2423
    %v2440 = vmul.f32 %v2372, %v2424
    %v2441 = vmul.f32 %v2374, %v2425
    %v2442 = vmul.f32 %v2376, %v2426
    %v2443 = vmul.f32 %v2378, %v2427
    %v2444 = vmul.f32 %v2380, %v2428
    %v2445 = vpack.c.bf16 %v2430, %v2429
    %v2446 = vpack.c.bf16 %v2432, %v2431
    %v2447 = vpack.c.bf16 %v2434, %v2433
    %v2448 = vpack.c.bf16 %v2436, %v2435
    %v2449 = vpack.c.bf16 %v2438, %v2437
    %v2450 = vpack.c.bf16 %v2440, %v2439
    %v2451 = vpack.c.bf16 %v2442, %v2441
    %v2452 = vpack.c.bf16 %v2444, %v2443
    %2453 = vrot.lane.b32.xlu0 %v797, 32
    %v2454 = vpop.permute.xlu0 %2453
    %2455 = vrot.lane.b32.xlu0 %v798, 32
    %v2456 = vpop.permute.xlu0 %2455
    %2457 = vrot.lane.b32.xlu0 %v799, 32
    %v2458 = vpop.permute.xlu0 %2457
    %2459 = vrot.lane.b32.xlu0 %v800, 32
    %v2460 = vpop.permute.xlu0 %2459
    %2461 = vrot.lane.b32.xlu0 %v801, 32
    %v2462 = vpop.permute.xlu0 %2461
    %2463 = vrot.lane.b32.xlu0 %v802, 32
    %v2464 = vpop.permute.xlu0 %2463
    %2465 = vrot.lane.b32.xlu0 %v803, 32
    %v2466 = vpop.permute.xlu0 %2465
    %2467 = vrot.lane.b32.xlu0 %v804, 32
    %v2468 = vpop.permute.xlu0 %2467
    %2477 = vmatprep.subr.bf16.mxu0 0
    %2478 = vmatpush1.bf16.msra.mxu0 %v2454
    %2479 = vmatprep.subr.bf16.mxu0 0
    %2480 = vmatpush1.bf16.msra.mxu0 %v2456
    %2481 = vmatprep.subr.bf16.mxu0 0
    %2482 = vmatpush1.bf16.msra.mxu0 %v2458
    %2483 = vmatprep.subr.bf16.mxu0 0
    %2484 = vmatpush1.bf16.msra.mxu0 %v2460
    %2485 = vmatprep.subr.bf16.mxu0 0
    %2486 = vmatpush1.bf16.msra.mxu0 %v2462
    %2487 = vmatprep.subr.bf16.mxu0 0
    %2488 = vmatpush1.bf16.msra.mxu0 %v2464
    %2489 = vmatprep.subr.bf16.mxu0 0
    %2490 = vmatpush1.bf16.msra.mxu0 %v2466
    %2491 = vmatprep.subr.bf16.mxu0 0
    %2492 = vmatpush1.bf16.msra.mxu0 %v2468
    %2493 = vmatprep.subr.bf16.mxu0 0
    %2494 = vmatpush1.bf16.msra.mxu0 0
    %2495 = vmatprep.subr.bf16.mxu0 0
    %2496 = vmatpush1.bf16.msra.mxu0 0
    %2497 = vmatprep.subr.bf16.mxu0 0
    %2498 = vmatpush1.bf16.msra.mxu0 0
    %2499 = vmatprep.subr.bf16.mxu0 0
    %2500 = vmatpush1.bf16.msra.mxu0 0
    %2501 = vmatprep.subr.bf16.mxu0 0
    %2502 = vmatpush1.bf16.msra.mxu0 0
    %2503 = vmatprep.subr.bf16.mxu0 0
    %2504 = vmatpush1.bf16.msra.mxu0 0
    %2505 = vmatprep.subr.bf16.mxu0 0
    %2506 = vmatpush1.bf16.msra.mxu0 0
    %2507 = vmatprep.subr.bf16.mxu0 0
    %2508 = vmatpush1.bf16.msra.mxu0 0
    %2509 = vmatprep.mubr.bf16.mxu0 0
    %2510 = vmatmul.mubr.bf16.gmra.mrb[0].mxu0 %v2445
    %v2511 = vpop.f32.mrb[0].mxu0
    %v2512 = vadd.f32 0.0, %v2511
    %v2513 = vpop.f32.mrb[0].mxu0
    %v2514 = vpop.f32.mrb[0].mxu0
    %v2515 = vadd.f32 0.0, %v2514
    %v2516 = vpop.f32.mrb[0].mxu0
    %2517 = vmatprep.mubr.bf16.mxu0 0
    %2518 = vmatmul.mubr.bf16.gmra.mrb[0].mxu0 %v2446
    %v2519 = vpop.f32.mrb[0].mxu0
    %v2520 = vadd.f32 0.0, %v2519
    %v2521 = vpop.f32.mrb[0].mxu0
    %v2522 = vpop.f32.mrb[0].mxu0
    %v2523 = vadd.f32 0.0, %v2522
    %v2524 = vpop.f32.mrb[0].mxu0
    %2525 = vmatprep.mubr.bf16.mxu0 0
    %2526 = vmatmul.mubr.bf16.gmra.mrb[0].mxu0 %v2447
    %v2527 = vpop.f32.mrb[0].mxu0
    %v2528 = vadd.f32 0.0, %v2527
    %v2529 = vpop.f32.mrb[0].mxu0
    %v2530 = vpop.f32.mrb[0].mxu0
    %v2531 = vadd.f32 0.0, %v2530
    %v2532 = vpop.f32.mrb[0].mxu0
    %2533 = vmatprep.mubr.bf16.mxu0 0
    %2534 = vmatmul.mubr.bf16.gmra.mrb[0].mxu0 %v2448
    %v2535 = vpop.f32.mrb[0].mxu0
    %v2536 = vadd.f32 0.0, %v2535
    %v2537 = vpop.f32.mrb[0].mxu0
    %v2538 = vpop.f32.mrb[0].mxu0
    %v2539 = vadd.f32 0.0, %v2538
    %v2540 = vpop.f32.mrb[0].mxu0
    %2541 = vmatprep.mubr.bf16.mxu0 0
    %2542 = vmatmul.mubr.bf16.gmra.mrb[0].mxu0 %v2449
    %v2543 = vpop.f32.mrb[0].mxu0
    %v2544 = vadd.f32 0.0, %v2543
    %v2545 = vpop.f32.mrb[0].mxu0
    %v2546 = vpop.f32.mrb[0].mxu0
    %v2547 = vadd.f32 0.0, %v2546
    %v2548 = vpop.f32.mrb[0].mxu0
    %2549 = vmatprep.mubr.bf16.mxu0 0
    %2550 = vmatmul.mubr.bf16.gmra.mrb[0].mxu0 %v2450
    %v2551 = vpop.f32.mrb[0].mxu0
    %v2552 = vadd.f32 0.0, %v2551
    %v2553 = vpop.f32.mrb[0].mxu0
    %v2554 = vpop.f32.mrb[0].mxu0
    %v2555 = vadd.f32 0.0, %v2554
    %v2556 = vpop.f32.mrb[0].mxu0
    %2557 = vmatprep.mubr.bf16.mxu0 0
    %2558 = vmatmul.mubr.bf16.gmra.mrb[0].mxu0 %v2451
    %v2559 = vpop.f32.mrb[0].mxu0
    %v2560 = vadd.f32 0.0, %v2559
    %v2561 = vpop.f32.mrb[0].mxu0
    %v2562 = vpop.f32.mrb[0].mxu0
    %v2563 = vadd.f32 0.0, %v2562
    %v2564 = vpop.f32.mrb[0].mxu0
    %2565 = vmatprep.mubr.bf16.mxu0 0
    %2566 = vmatmul.mubr.bf16.gmra.mrb[0].mxu0 %v2452
    %v2567 = vpop.f32.mrb[0].mxu0
    %v2568 = vadd.f32 0.0, %v2567
    %v2569 = vpop.f32.mrb[0].mxu0
    %v2570 = vpop.f32.mrb[0].mxu0
    %v2571 = vadd.f32 0.0, %v2570
    %v2572 = vpop.f32.mrb[0].mxu0
    %2573 = vdwg.mxu0
    %2590 = vrot.lane.b32.xlu0 %v1612, 32
    %v2591 = vpop.permute.xlu0 %2590
    %2592 = vrot.lane.b32.xlu0 %v1615, 32
    %v2593 = vpop.permute.xlu0 %2592
    %2594 = vrot.lane.b32.xlu0 %v1620, 32
    %v2595 = vpop.permute.xlu0 %2594
    %2596 = vrot.lane.b32.xlu0 %v1623, 32
    %v2597 = vpop.permute.xlu0 %2596
    %2598 = vrot.lane.b32.xlu0 %v1628, 32
    %v2599 = vpop.permute.xlu0 %2598
    %2600 = vrot.lane.b32.xlu0 %v1631, 32
    %v2601 = vpop.permute.xlu0 %2600
    %2602 = vrot.lane.b32.xlu0 %v1636, 32
    %v2603 = vpop.permute.xlu0 %2602
    %2604 = vrot.lane.b32.xlu0 %v1639, 32
    %v2605 = vpop.permute.xlu0 %2604
    %2606 = vrot.lane.b32.xlu0 %v1644, 32
    %v2607 = vpop.permute.xlu0 %2606
    %2608 = vrot.lane.b32.xlu0 %v1647, 32
    %v2609 = vpop.permute.xlu0 %2608
    %2610 = vrot.lane.b32.xlu0 %v1652, 32
    %v2611 = vpop.permute.xlu0 %2610
    %2612 = vrot.lane.b32.xlu0 %v1655, 32
    %v2613 = vpop.permute.xlu0 %2612
    %2614 = vrot.lane.b32.xlu0 %v1660, 32
    %v2615 = vpop.permute.xlu0 %2614
    %2616 = vrot.lane.b32.xlu0 %v1663, 32
    %v2617 = vpop.permute.xlu0 %2616
    %2618 = vrot.lane.b32.xlu0 %v1668, 32
    %v2619 = vpop.permute.xlu0 %2618
    %2620 = vrot.lane.b32.xlu0 %v1671, 32
    %v2621 = vpop.permute.xlu0 %2620
    %2654 = vrot.lane.b32.xlu0 %v2062, 64
    %v2655 = vpop.permute.xlu0 %2654
    %2656 = vrot.lane.b32.xlu0 %v2065, 64
    %v2657 = vpop.permute.xlu0 %2656
    %2658 = vrot.lane.b32.xlu0 %v2070, 64
    %v2659 = vpop.permute.xlu0 %2658
    %2660 = vrot.lane.b32.xlu0 %v2073, 64
    %v2661 = vpop.permute.xlu0 %2660
    %2662 = vrot.lane.b32.xlu0 %v2078, 64
    %v2663 = vpop.permute.xlu0 %2662
    %2664 = vrot.lane.b32.xlu0 %v2081, 64
    %v2665 = vpop.permute.xlu0 %2664
    %2666 = vrot.lane.b32.xlu0 %v2086, 64
    %v2667 = vpop.permute.xlu0 %2666
    %2668 = vrot.lane.b32.xlu0 %v2089, 64
    %v2669 = vpop.permute.xlu0 %2668
    %2670 = vrot.lane.b32.xlu0 %v2094, 64
    %v2671 = vpop.permute.xlu0 %2670
    %2672 = vrot.lane.b32.xlu0 %v2097, 64
    %v2673 = vpop.permute.xlu0 %2672
    %2674 = vrot.lane.b32.xlu0 %v2102, 64
    %v2675 = vpop.permute.xlu0 %2674
    %2676 = vrot.lane.b32.xlu0 %v2105, 64
    %v2677 = vpop.permute.xlu0 %2676
    %2678 = vrot.lane.b32.xlu0 %v2110, 64
    %v2679 = vpop.permute.xlu0 %2678
    %2680 = vrot.lane.b32.xlu0 %v2113, 64
    %v2681 = vpop.permute.xlu0 %2680
    %2682 = vrot.lane.b32.xlu0 %v2118, 64
    %v2683 = vpop.permute.xlu0 %2682
    %2684 = vrot.lane.b32.xlu0 %v2121, 64
    %v2685 = vpop.permute.xlu0 %2684
    %2718 = vrot.lane.b32.xlu0 %v2512, 96
    %v2719 = vpop.permute.xlu0 %2718
    %2720 = vrot.lane.b32.xlu0 %v2515, 96
    %v2721 = vpop.permute.xlu0 %2720
    %2722 = vrot.lane.b32.xlu0 %v2520, 96
    %v2723 = vpop.permute.xlu0 %2722
    %2724 = vrot.lane.b32.xlu0 %v2523, 96
    %v2725 = vpop.permute.xlu0 %2724
    %2726 = vrot.lane.b32.xlu0 %v2528, 96
    %v2727 = vpop.permute.xlu0 %2726
    %2728 = vrot.lane.b32.xlu0 %v2531, 96
    %v2729 = vpop.permute.xlu0 %2728
    %2730 = vrot.lane.b32.xlu0 %v2536, 96
    %v2731 = vpop.permute.xlu0 %2730
    %2732 = vrot.lane.b32.xlu0 %v2539, 96
    %v2733 = vpop.permute.xlu0 %2732
    %2734 = vrot.lane.b32.xlu0 %v2544, 96
    %v2735 = vpop.permute.xlu0 %2734
    %2736 = vrot.lane.b32.xlu0 %v2547, 96
    %v2737 = vpop.permute.xlu0 %2736
    %2738 = vrot.lane.b32.xlu0 %v2552, 96
    %v2739 = vpop.permute.xlu0 %2738
    %2740 = vrot.lane.b32.xlu0 %v2555, 96
    %v2741 = vpop.permute.xlu0 %2740
    %2742 = vrot.lane.b32.xlu0 %v2560, 96
    %v2743 = vpop.permute.xlu0 %2742
    %2744 = vrot.lane.b32.xlu0 %v2563, 96
    %v2745 = vpop.permute.xlu0 %2744
    %2746 = vrot.lane.b32.xlu0 %v2568, 96
    %v2747 = vpop.permute.xlu0 %2746
    %2748 = vrot.lane.b32.xlu0 %v2571, 96
    %v2749 = vpop.permute.xlu0 %2748
    %v2766 = vsel %vm805, %v1138, %v2591
    %v2767 = vsel %vm805, %v1141, %v2593
    %v2768 = vsel %vm805, %v1146, %v2595
    %v2769 = vsel %vm805, %v1149, %v2597
    %v2770 = vsel %vm805, %v1154, %v2599
    %v2771 = vsel %vm805, %v1157, %v2601
    %v2772 = vsel %vm805, %v1162, %v2603
    %v2773 = vsel %vm805, %v1165, %v2605
    %v2774 = vsel %vm805, %v1170, %v2607
    %v2775 = vsel %vm805, %v1173, %v2609
    %v2776 = vsel %vm805, %v1178, %v2611
    %v2777 = vsel %vm805, %v1181, %v2613
    %v2778 = vsel %vm805, %v1186, %v2615
    %v2779 = vsel %vm805, %v1189, %v2617
    %v2780 = vsel %vm805, %v1194, %v2619
    %v2781 = vsel %vm805, %v1197, %v2621
    %vm2782 = vcmask 523264
    %v2783 = vsel %vm2782, %v2766, %v2655
    %v2784 = vsel %vm2782, %v2767, %v2657
    %v2785 = vsel %vm2782, %v2768, %v2659
    %v2786 = vsel %vm2782, %v2769, %v2661
    %v2787 = vsel %vm2782, %v2770, %v2663
    %v2788 = vsel %vm2782, %v2771, %v2665
    %v2789 = vsel %vm2782, %v2772, %v2667
    %v2790 = vsel %vm2782, %v2773, %v2669
    %v2791 = vsel %vm2782, %v2774, %v2671
    %v2792 = vsel %vm2782, %v2775, %v2673
    %v2793 = vsel %vm2782, %v2776, %v2675
    %v2794 = vsel %vm2782, %v2777, %v2677
    %v2795 = vsel %vm2782, %v2778, %v2679
    %v2796 = vsel %vm2782, %v2779, %v2681
    %v2797 = vsel %vm2782, %v2780, %v2683
    %v2798 = vsel %vm2782, %v2781, %v2685
    %vm2799 = vcmask 785408
    %v2800 = vsel %vm2799, %v2783, %v2719
    %v2801 = vsel %vm2799, %v2784, %v2721
    %v2802 = vsel %vm2799, %v2785, %v2723
    %v2803 = vsel %vm2799, %v2786, %v2725
    %v2804 = vsel %vm2799, %v2787, %v2727
    %v2805 = vsel %vm2799, %v2788, %v2729
    %v2806 = vsel %vm2799, %v2789, %v2731
    %v2807 = vsel %vm2799, %v2790, %v2733
    %v2808 = vsel %vm2799, %v2791, %v2735
    %v2809 = vsel %vm2799, %v2792, %v2737
    %v2810 = vsel %vm2799, %v2793, %v2739
    %v2811 = vsel %vm2799, %v2794, %v2741
    %v2812 = vsel %vm2799, %v2795, %v2743
    %v2813 = vsel %vm2799, %v2796, %v2745
    %v2814 = vsel %vm2799, %v2797, %v2747
    %v2815 = vsel %vm2799, %v2798, %v2749
    %v2816 = vpack.c.bf16 %v2801, %v2800
    %v2817 = vpack.c.bf16 %v2803, %v2802
    %v2818 = vpack.c.bf16 %v2805, %v2804
    %v2819 = vpack.c.bf16 %v2807, %v2806
    %v2820 = vpack.c.bf16 %v2809, %v2808
    %v2821 = vpack.c.bf16 %v2811, %v2810
    %v2822 = vpack.c.bf16 %v2813, %v2812
    %v2823 = vpack.c.bf16 %v2815, %v2814
    %v2824 = vld [vmem:[#allocation8] sm:$0xf]
    %v2825 = vld [vmem:[#allocation8 + $0x4] sm:$0xf]
    %v2826 = vld [vmem:[#allocation8 + $0x8] sm:$0xf]
    %v2827 = vld [vmem:[#allocation8 + $0xc] sm:$0xf]
    %v2828 = vld [vmem:[#allocation8 + $0x10] sm:$0xf]
    %v2829 = vld [vmem:[#allocation8 + $0x14] sm:$0xf]
    %v2830 = vld [vmem:[#allocation8 + $0x18] sm:$0xf]
    %v2831 = vld [vmem:[#allocation8 + $0x1c] sm:$0xf]
    %v2832 = vld [vmem:[#allocation8 + $0x20] sm:$0xf]
    %v2833 = vld [vmem:[#allocation8 + $0x24] sm:$0xf]
    %v2834 = vld [vmem:[#allocation8 + $0x28] sm:$0xf]
    %v2835 = vld [vmem:[#allocation8 + $0x2c] sm:$0xf]
    %v2836 = vld [vmem:[#allocation8 + $0x30] sm:$0xf]
    %v2837 = vld [vmem:[#allocation8 + $0x34] sm:$0xf]
    %v2838 = vld [vmem:[#allocation8 + $0x38] sm:$0xf]
    %v2839 = vld [vmem:[#allocation8 + $0x3c] sm:$0xf]
    %v2840 = vld [vmem:[%s7] sm:$0x1]
    %v2842 = vlaneseq
    %v2843 = vshrl.u32 %v2842, 7
    %v2844 = vsub.s32 0, %v2843
    %v2845 = vrot.slane %v2840, %v2844
    %v2863 = vunpack.c.l.b16 %v2824
    %v2864 = vunpack.c.l.b16 %v2825
    %v2865 = vunpack.c.l.b16 %v2826
    %v2866 = vunpack.c.l.b16 %v2827
    %v2867 = vunpack.c.l.b16 %v2828
    %v2868 = vunpack.c.l.b16 %v2829
    %v2869 = vunpack.c.l.b16 %v2830
    %v2870 = vunpack.c.l.b16 %v2831
    %v2871 = vunpack.c.l.b16 %v2832
    %v2872 = vunpack.c.l.b16 %v2833
    %v2873 = vunpack.c.l.b16 %v2834
    %v2874 = vunpack.c.l.b16 %v2835
    %v2875 = vunpack.c.l.b16 %v2836
    %v2876 = vunpack.c.l.b16 %v2837
    %v2877 = vunpack.c.l.b16 %v2838
    %v2878 = vunpack.c.l.b16 %v2839
    %v2879 = vpack.c.b16 %v2864, %v2863
    %v2880 = vpack.c.b16 %v2866, %v2865
    %v2881 = vpack.c.b16 %v2868, %v2867
    %v2882 = vpack.c.b16 %v2870, %v2869
    %v2883 = vpack.c.b16 %v2872, %v2871
    %v2884 = vpack.c.b16 %v2874, %v2873
    %v2885 = vpack.c.b16 %v2876, %v2875
    %v2886 = vpack.c.b16 %v2878, %v2877
    %2895 = vmatprep.subr.bf16.mxu0 0
    %2896 = vmatpush1.bf16.msra.mxu0 %v2879
    %2897 = vmatprep.subr.bf16.mxu0 0
    %2898 = vmatpush1.bf16.msra.mxu0 %v2880
    %2899 = vmatprep.subr.bf16.mxu0 0
    %2900 = vmatpush1.bf16.msra.mxu0 %v2881
    %2901 = vmatprep.subr.bf16.mxu0 0
    %2902 = vmatpush1.bf16.msra.mxu0 %v2882
    %2903 = vmatprep.subr.bf16.mxu0 0
    %2904 = vmatpush1.bf16.msra.mxu0 %v2883
    %2905 = vmatprep.subr.bf16.mxu0 0
    %2906 = vmatpush1.bf16.msra.mxu0 %v2884
    %2907 = vmatprep.subr.bf16.mxu0 0
    %2908 = vmatpush1.bf16.msra.mxu0 %v2885
    %2909 = vmatprep.subr.bf16.mxu0 0
    %2910 = vmatpush1.bf16.msra.mxu0 %v2886
    %2911 = vmatprep.subr.bf16.mxu0 0
    %2912 = vmatpush1.bf16.msra.mxu0 0
    %2913 = vmatprep.subr.bf16.mxu0 0
    %2914 = vmatpush1.bf16.msra.mxu0 0
    %2915 = vmatprep.subr.bf16.mxu0 0
    %2916 = vmatpush1.bf16.msra.mxu0 0
    %2917 = vmatprep.subr.bf16.mxu0 0
    %2918 = vmatpush1.bf16.msra.mxu0 0
    %2919 = vmatprep.subr.bf16.mxu0 0
    %2920 = vmatpush1.bf16.msra.mxu0 0
    %2921 = vmatprep.subr.bf16.mxu0 0
    %2922 = vmatpush1.bf16.msra.mxu0 0
    %2923 = vmatprep.subr.bf16.mxu0 0
    %2924 = vmatpush1.bf16.msra.mxu0 0
    %2925 = vmatprep.subr.bf16.mxu0 0
    %2926 = vmatpush1.bf16.msra.mxu0 0
    %2927 = vmatprep.mubr.bf16.mxu0 0
    %2928 = vmatmul.mubr.bf16.gmra.mrb[0].mxu0 %v2816
    %v2929 = vpop.f32.mrb[0].mxu0
    %v2930 = vadd.f32 %v2845, %v2929
    %v2931 = vpop.f32.mrb[0].mxu0
    %v2932 = vpop.f32.mrb[0].mxu0
    %v2933 = vadd.f32 %v2845, %v2932
    %v2934 = vpop.f32.mrb[0].mxu0
    %2935 = vmatprep.mubr.bf16.mxu0 0
    %2936 = vmatmul.mubr.bf16.gmra.mrb[0].mxu0 %v2817
    %v2937 = vpop.f32.mrb[0].mxu0
    %v2938 = vadd.f32 %v2845, %v2937
    %v2939 = vpop.f32.mrb[0].mxu0
    %v2940 = vpop.f32.mrb[0].mxu0
    %v2941 = vadd.f32 %v2845, %v2940
    %v2942 = vpop.f32.mrb[0].mxu0
    %2943 = vmatprep.mubr.bf16.mxu0 0
    %2944 = vmatmul.mubr.bf16.gmra.mrb[0].mxu0 %v2818
    %v2945 = vpop.f32.mrb[0].mxu0
    %v2946 = vadd.f32 %v2845, %v2945
    %v2947 = vpop.f32.mrb[0].mxu0
    %v2948 = vpop.f32.mrb[0].mxu0
    %v2949 = vadd.f32 %v2845, %v2948
    %v2950 = vpop.f32.mrb[0].mxu0
    %2951 = vmatprep.mubr.bf16.mxu0 0
    %2952 = vmatmul.mubr.bf16.gmra.mrb[0].mxu0 %v2819
    %v2953 = vpop.f32.mrb[0].mxu0
    %v2954 = vadd.f32 %v2845, %v2953
    %v2955 = vpop.f32.mrb[0].mxu0
    %v2956 = vpop.f32.mrb[0].mxu0
    %v2957 = vadd.f32 %v2845, %v2956
    %v2958 = vpop.f32.mrb[0].mxu0
    %2959 = vmatprep.mubr.bf16.mxu0 0
    %2960 = vmatmul.mubr.bf16.gmra.mrb[0].mxu0 %v2820
    %v2961 = vpop.f32.mrb[0].mxu0
    %v2962 = vadd.f32 %v2845, %v2961
    %v2963 = vpop.f32.mrb[0].mxu0
    %v2964 = vpop.f32.mrb[0].mxu0
    %v2965 = vadd.f32 %v2845, %v2964
    %v2966 = vpop.f32.mrb[0].mxu0
    %2967 = vmatprep.mubr.bf16.mxu0 0
    %2968 = vmatmul.mubr.bf16.gmra.mrb[0].mxu0 %v2821
    %v2969 = vpop.f32.mrb[0].mxu0
    %v2970 = vadd.f32 %v2845, %v2969
    %v2971 = vpop.f32.mrb[0].mxu0
    %v2972 = vpop.f32.mrb[0].mxu0
    %v2973 = vadd.f32 %v2845, %v2972
    %v2974 = vpop.f32.mrb[0].mxu0
    %2975 = vmatprep.mubr.bf16.mxu0 0
    %2976 = vmatmul.mubr.bf16.gmra.mrb[0].mxu0 %v2822
    %v2977 = vpop.f32.mrb[0].mxu0
    %v2978 = vadd.f32 %v2845, %v2977
    %v2979 = vpop.f32.mrb[0].mxu0
    %v2980 = vpop.f32.mrb[0].mxu0
    %v2981 = vadd.f32 %v2845, %v2980
    %v2982 = vpop.f32.mrb[0].mxu0
    %2983 = vmatprep.mubr.bf16.mxu0 0
    %2984 = vmatmul.mubr.bf16.gmra.mrb[0].mxu0 %v2823
    %v2985 = vpop.f32.mrb[0].mxu0
    %v2986 = vadd.f32 %v2845, %v2985
    %v2987 = vpop.f32.mrb[0].mxu0
    %v2988 = vpop.f32.mrb[0].mxu0
    %v2989 = vadd.f32 %v2845, %v2988
    %v2990 = vpop.f32.mrb[0].mxu0
    %2991 = vdwg.mxu0
    %v2992 = vadd.f32 %v131, %v2930
    %v2993 = vadd.f32 %v132, %v2933
    %v2994 = vadd.f32 %v133, %v2938
    %v2995 = vadd.f32 %v134, %v2941
    %v2996 = vadd.f32 %v135, %v2946
    %v2997 = vadd.f32 %v136, %v2949
    %v2998 = vadd.f32 %v137, %v2954
    %v2999 = vadd.f32 %v138, %v2957
    %v3000 = vadd.f32 %v139, %v2962
    %v3001 = vadd.f32 %v140, %v2965
    %v3002 = vadd.f32 %v141, %v2970
    %v3003 = vadd.f32 %v142, %v2973
    %v3004 = vadd.f32 %v143, %v2978
    %v3005 = vadd.f32 %v144, %v2981
    %v3006 = vadd.f32 %v145, %v2986
    %v3007 = vadd.f32 %v146, %v2989
    %v3008 = vld [vmem:[%s8] sm:$0x1]
    %v3009 = vld [vmem:[%s9] sm:$0x1]
    %3010 = vadd.xlane.f32.xlu0 %v2992
    %v3011 = vpop.xlane.xlu0 %3010
    %3012 = vadd.xlane.f32.xlu0 %v2993
    %v3013 = vpop.xlane.xlu0 %3012
    %3014 = vadd.xlane.f32.xlu0 %v2994
    %v3015 = vpop.xlane.xlu0 %3014
    %3016 = vadd.xlane.f32.xlu0 %v2995
    %v3017 = vpop.xlane.xlu0 %3016
    %3018 = vadd.xlane.f32.xlu0 %v2996
    %v3019 = vpop.xlane.xlu0 %3018
    %3020 = vadd.xlane.f32.xlu0 %v2997
    %v3021 = vpop.xlane.xlu0 %3020
    %3022 = vadd.xlane.f32.xlu0 %v2998
    %v3023 = vpop.xlane.xlu0 %3022
    %3024 = vadd.xlane.f32.xlu0 %v2999
    %v3025 = vpop.xlane.xlu0 %3024
    %3026 = vadd.xlane.f32.xlu0 %v3000
    %v3027 = vpop.xlane.xlu0 %3026
    %3028 = vadd.xlane.f32.xlu0 %v3001
    %v3029 = vpop.xlane.xlu0 %3028
    %3030 = vadd.xlane.f32.xlu0 %v3002
    %v3031 = vpop.xlane.xlu0 %3030
    %3032 = vadd.xlane.f32.xlu0 %v3003
    %v3033 = vpop.xlane.xlu0 %3032
    %3034 = vadd.xlane.f32.xlu0 %v3004
    %v3035 = vpop.xlane.xlu0 %3034
    %3036 = vadd.xlane.f32.xlu0 %v3005
    %v3037 = vpop.xlane.xlu0 %3036
    %3038 = vadd.xlane.f32.xlu0 %v3006
    %v3039 = vpop.xlane.xlu0 %3038
    %3040 = vadd.xlane.f32.xlu0 %v3007
    %v3041 = vpop.xlane.xlu0 %3040
    %v3042 = vmul.f32 %v3011, %v181
    %v3043 = vmul.f32 %v3013, %v181
    %v3044 = vmul.f32 %v3015, %v181
    %v3045 = vmul.f32 %v3017, %v181
    %v3046 = vmul.f32 %v3019, %v181
    %v3047 = vmul.f32 %v3021, %v181
    %v3048 = vmul.f32 %v3023, %v181
    %v3049 = vmul.f32 %v3025, %v181
    %v3050 = vmul.f32 %v3027, %v181
    %v3051 = vmul.f32 %v3029, %v181
    %v3052 = vmul.f32 %v3031, %v181
    %v3053 = vmul.f32 %v3033, %v181
    %v3054 = vmul.f32 %v3035, %v181
    %v3055 = vmul.f32 %v3037, %v181
    %v3056 = vmul.f32 %v3039, %v181
    %v3057 = vmul.f32 %v3041, %v181
    %v3058 = vsub.f32 %v2992, %v3042
    %v3059 = vsub.f32 %v2993, %v3043
    %v3060 = vsub.f32 %v2994, %v3044
    %v3061 = vsub.f32 %v2995, %v3045
    %v3062 = vsub.f32 %v2996, %v3046
    %v3063 = vsub.f32 %v2997, %v3047
    %v3064 = vsub.f32 %v2998, %v3048
    %v3065 = vsub.f32 %v2999, %v3049
    %v3066 = vsub.f32 %v3000, %v3050
    %v3067 = vsub.f32 %v3001, %v3051
    %v3068 = vsub.f32 %v3002, %v3052
    %v3069 = vsub.f32 %v3003, %v3053
    %v3070 = vsub.f32 %v3004, %v3054
    %v3071 = vsub.f32 %v3005, %v3055
    %v3072 = vsub.f32 %v3006, %v3056
    %v3073 = vsub.f32 %v3007, %v3057
    %v3074 = vmul.f32 %v3058, %v3058
    %v3075 = vmul.f32 %v3059, %v3059
    %v3076 = vmul.f32 %v3060, %v3060
    %v3077 = vmul.f32 %v3061, %v3061
    %v3078 = vmul.f32 %v3062, %v3062
    %v3079 = vmul.f32 %v3063, %v3063
    %v3080 = vmul.f32 %v3064, %v3064
    %v3081 = vmul.f32 %v3065, %v3065
    %v3082 = vmul.f32 %v3066, %v3066
    %v3083 = vmul.f32 %v3067, %v3067
    %v3084 = vmul.f32 %v3068, %v3068
    %v3085 = vmul.f32 %v3069, %v3069
    %v3086 = vmul.f32 %v3070, %v3070
    %v3087 = vmul.f32 %v3071, %v3071
    %v3088 = vmul.f32 %v3072, %v3072
    %v3089 = vmul.f32 %v3073, %v3073
    %3090 = vadd.xlane.f32.xlu0 %v3074
    %v3091 = vpop.xlane.xlu0 %3090
    %3092 = vadd.xlane.f32.xlu0 %v3075
    %v3093 = vpop.xlane.xlu0 %3092
    %3094 = vadd.xlane.f32.xlu0 %v3076
    %v3095 = vpop.xlane.xlu0 %3094
    %3096 = vadd.xlane.f32.xlu0 %v3077
    %v3097 = vpop.xlane.xlu0 %3096
    %3098 = vadd.xlane.f32.xlu0 %v3078
    %v3099 = vpop.xlane.xlu0 %3098
    %3100 = vadd.xlane.f32.xlu0 %v3079
    %v3101 = vpop.xlane.xlu0 %3100
    %3102 = vadd.xlane.f32.xlu0 %v3080
    %v3103 = vpop.xlane.xlu0 %3102
    %3104 = vadd.xlane.f32.xlu0 %v3081
    %v3105 = vpop.xlane.xlu0 %3104
    %3106 = vadd.xlane.f32.xlu0 %v3082
    %v3107 = vpop.xlane.xlu0 %3106
    %3108 = vadd.xlane.f32.xlu0 %v3083
    %v3109 = vpop.xlane.xlu0 %3108
    %3110 = vadd.xlane.f32.xlu0 %v3084
    %v3111 = vpop.xlane.xlu0 %3110
    %3112 = vadd.xlane.f32.xlu0 %v3085
    %v3113 = vpop.xlane.xlu0 %3112
    %3114 = vadd.xlane.f32.xlu0 %v3086
    %v3115 = vpop.xlane.xlu0 %3114
    %3116 = vadd.xlane.f32.xlu0 %v3087
    %v3117 = vpop.xlane.xlu0 %3116
    %3118 = vadd.xlane.f32.xlu0 %v3088
    %v3119 = vpop.xlane.xlu0 %3118
    %3120 = vadd.xlane.f32.xlu0 %v3089
    %v3121 = vpop.xlane.xlu0 %3120
    %v3122 = vmul.f32 %v3091, %v181
    %v3123 = vmul.f32 %v3093, %v181
    %v3124 = vmul.f32 %v3095, %v181
    %v3125 = vmul.f32 %v3097, %v181
    %v3126 = vmul.f32 %v3099, %v181
    %v3127 = vmul.f32 %v3101, %v181
    %v3128 = vmul.f32 %v3103, %v181
    %v3129 = vmul.f32 %v3105, %v181
    %v3130 = vmul.f32 %v3107, %v181
    %v3131 = vmul.f32 %v3109, %v181
    %v3132 = vmul.f32 %v3111, %v181
    %v3133 = vmul.f32 %v3113, %v181
    %v3134 = vmul.f32 %v3115, %v181
    %v3135 = vmul.f32 %v3117, %v181
    %v3136 = vmul.f32 %v3119, %v181
    %v3137 = vmul.f32 %v3121, %v181
    %v3138 = vadd.f32 %v3122, 1e-06
    %v3139 = vadd.f32 %v3123, 1e-06
    %v3140 = vadd.f32 %v3124, 1e-06
    %v3141 = vadd.f32 %v3125, 1e-06
    %v3142 = vadd.f32 %v3126, 1e-06
    %v3143 = vadd.f32 %v3127, 1e-06
    %v3144 = vadd.f32 %v3128, 1e-06
    %v3145 = vadd.f32 %v3129, 1e-06
    %v3146 = vadd.f32 %v3130, 1e-06
    %v3147 = vadd.f32 %v3131, 1e-06
    %v3148 = vadd.f32 %v3132, 1e-06
    %v3149 = vadd.f32 %v3133, 1e-06
    %v3150 = vadd.f32 %v3134, 1e-06
    %v3151 = vadd.f32 %v3135, 1e-06
    %v3152 = vadd.f32 %v3136, 1e-06
    %v3153 = vadd.f32 %v3137, 1e-06
    %v3154 = vrsqrt.pop %v3138
    %v3155 = vrsqrt.pop %v3139
    %v3156 = vrsqrt.pop %v3140
    %v3157 = vrsqrt.pop %v3141
    %v3158 = vrsqrt.pop %v3142
    %v3159 = vrsqrt.pop %v3143
    %v3160 = vrsqrt.pop %v3144
    %v3161 = vrsqrt.pop %v3145
    %v3162 = vrsqrt.pop %v3146
    %v3163 = vrsqrt.pop %v3147
    %v3164 = vrsqrt.pop %v3148
    %v3165 = vrsqrt.pop %v3149
    %v3166 = vrsqrt.pop %v3150
    %v3167 = vrsqrt.pop %v3151
    %v3168 = vrsqrt.pop %v3152
    %v3169 = vrsqrt.pop %v3153
    %v3170 = vmul.f32 %v3058, %v3154
    %v3171 = vmul.f32 %v3059, %v3155
    %v3172 = vmul.f32 %v3060, %v3156
    %v3173 = vmul.f32 %v3061, %v3157
    %v3174 = vmul.f32 %v3062, %v3158
    %v3175 = vmul.f32 %v3063, %v3159
    %v3176 = vmul.f32 %v3064, %v3160
    %v3177 = vmul.f32 %v3065, %v3161
    %v3178 = vmul.f32 %v3066, %v3162
    %v3179 = vmul.f32 %v3067, %v3163
    %v3180 = vmul.f32 %v3068, %v3164
    %v3181 = vmul.f32 %v3069, %v3165
    %v3182 = vmul.f32 %v3070, %v3166
    %v3183 = vmul.f32 %v3071, %v3167
    %v3184 = vmul.f32 %v3072, %v3168
    %v3185 = vmul.f32 %v3073, %v3169
    %v3187 = vlaneseq
    %v3188 = vshrl.u32 %v3187, 7
    %v3189 = vsub.s32 0, %v3188
    %v3190 = vrot.slane %v3008, %v3189
    %v3192 = vmul.f32 %v3170, %v3190
    %v3193 = vmul.f32 %v3171, %v3190
    %v3194 = vmul.f32 %v3172, %v3190
    %v3195 = vmul.f32 %v3173, %v3190
    %v3196 = vmul.f32 %v3174, %v3190
    %v3197 = vmul.f32 %v3175, %v3190
    %v3198 = vmul.f32 %v3176, %v3190
    %v3199 = vmul.f32 %v3177, %v3190
    %v3200 = vmul.f32 %v3178, %v3190
    %v3201 = vmul.f32 %v3179, %v3190
    %v3202 = vmul.f32 %v3180, %v3190
    %v3203 = vmul.f32 %v3181, %v3190
    %v3204 = vmul.f32 %v3182, %v3190
    %v3205 = vmul.f32 %v3183, %v3190
    %v3206 = vmul.f32 %v3184, %v3190
    %v3207 = vmul.f32 %v3185, %v3190
    %v3209 = vlaneseq
    %v3210 = vshrl.u32 %v3209, 7
    %v3211 = vsub.s32 0, %v3210
    %v3212 = vrot.slane %v3009, %v3211
    %v3214 = vadd.f32 %v3192, %v3212
    %v3215 = vadd.f32 %v3193, %v3212
    %v3216 = vadd.f32 %v3194, %v3212
    %v3217 = vadd.f32 %v3195, %v3212
    %v3218 = vadd.f32 %v3196, %v3212
    %v3219 = vadd.f32 %v3197, %v3212
    %v3220 = vadd.f32 %v3198, %v3212
    %v3221 = vadd.f32 %v3199, %v3212
    %v3222 = vadd.f32 %v3200, %v3212
    %v3223 = vadd.f32 %v3201, %v3212
    %v3224 = vadd.f32 %v3202, %v3212
    %v3225 = vadd.f32 %v3203, %v3212
    %v3226 = vadd.f32 %v3204, %v3212
    %v3227 = vadd.f32 %v3205, %v3212
    %v3228 = vadd.f32 %v3206, %v3212
    %v3229 = vadd.f32 %v3207, %v3212
    %v3230 = vpack.c.bf16 %v3215, %v3214
    %v3231 = vpack.c.bf16 %v3217, %v3216
    %v3232 = vpack.c.bf16 %v3219, %v3218
    %v3233 = vpack.c.bf16 %v3221, %v3220
    %v3234 = vpack.c.bf16 %v3223, %v3222
    %v3235 = vpack.c.bf16 %v3225, %v3224
    %v3236 = vpack.c.bf16 %v3227, %v3226
    %v3237 = vpack.c.bf16 %v3229, %v3228
    %v3238 = vld [vmem:[#allocation10] sm:$0xff]
    %v3239 = vld [vmem:[#allocation10 + $0x8] sm:$0xff]
    %v3240 = vld [vmem:[#allocation10 + $0x10] sm:$0xff]
    %v3241 = vld [vmem:[#allocation10 + $0x18] sm:$0xff]
    %v3242 = vld [vmem:[#allocation10 + $0x20] sm:$0xff]
    %v3243 = vld [vmem:[#allocation10 + $0x28] sm:$0xff]
    %v3244 = vld [vmem:[#allocation10 + $0x30] sm:$0xff]
    %v3245 = vld [vmem:[#allocation10 + $0x38] sm:$0xff]
    %v3246 = vld [vmem:[#allocation10 + $0x40] sm:$0xff]
    %v3247 = vld [vmem:[#allocation10 + $0x48] sm:$0xff]
    %v3248 = vld [vmem:[#allocation10 + $0x50] sm:$0xff]
    %v3249 = vld [vmem:[#allocation10 + $0x58] sm:$0xff]
    %v3250 = vld [vmem:[#allocation10 + $0x60] sm:$0xff]
    %v3251 = vld [vmem:[#allocation10 + $0x68] sm:$0xff]
    %v3252 = vld [vmem:[#allocation10 + $0x70] sm:$0xff]
    %v3253 = vld [vmem:[#allocation10 + $0x78] sm:$0xff]
    %v3254 = vld [vmem:[%s11] sm:$0x3]
    %v3256 = vlaneseq
    %v3257 = vshrl.u32 %v3256, 7
    %v3258 = vsub.s32 0, %v3257
    %v3259 = vrot.slane %v3254, %v3258
    %v3260 = vlaneseq
    %v3261 = vshrl.u32 %v3260, 7
    %v3262 = vsub.s32 1, %v3261
    %v3263 = vrot.slane %v3254, %v3262
    %v3282 = vunpack.c.l.b16 %v3238
    %v3283 = vunpack.c.h.b16 %v3238
    %v3284 = vunpack.c.l.b16 %v3239
    %v3285 = vunpack.c.h.b16 %v3239
    %v3286 = vunpack.c.l.b16 %v3240
    %v3287 = vunpack.c.h.b16 %v3240
    %v3288 = vunpack.c.l.b16 %v3241
    %v3289 = vunpack.c.h.b16 %v3241
    %v3290 = vunpack.c.l.b16 %v3242
    %v3291 = vunpack.c.h.b16 %v3242
    %v3292 = vunpack.c.l.b16 %v3243
    %v3293 = vunpack.c.h.b16 %v3243
    %v3294 = vunpack.c.l.b16 %v3244
    %v3295 = vunpack.c.h.b16 %v3244
    %v3296 = vunpack.c.l.b16 %v3245
    %v3297 = vunpack.c.h.b16 %v3245
    %v3298 = vunpack.c.l.b16 %v3246
    %v3299 = vunpack.c.h.b16 %v3246
    %v3300 = vunpack.c.l.b16 %v3247
    %v3301 = vunpack.c.h.b16 %v3247
    %v3302 = vunpack.c.l.b16 %v3248
    %v3303 = vunpack.c.h.b16 %v3248
    %v3304 = vunpack.c.l.b16 %v3249
    %v3305 = vunpack.c.h.b16 %v3249
    %v3306 = vunpack.c.l.b16 %v3250
    %v3307 = vunpack.c.h.b16 %v3250
    %v3308 = vunpack.c.l.b16 %v3251
    %v3309 = vunpack.c.h.b16 %v3251
    %v3310 = vunpack.c.l.b16 %v3252
    %v3311 = vunpack.c.h.b16 %v3252
    %v3312 = vunpack.c.l.b16 %v3253
    %v3313 = vunpack.c.h.b16 %v3253
    %v3314 = vpack.c.b16 %v3284, %v3282
    %v3315 = vpack.c.b16 %v3285, %v3283
    %v3316 = vpack.c.b16 %v3288, %v3286
    %v3317 = vpack.c.b16 %v3289, %v3287
    %v3318 = vpack.c.b16 %v3292, %v3290
    %v3319 = vpack.c.b16 %v3293, %v3291
    %v3320 = vpack.c.b16 %v3296, %v3294
    %v3321 = vpack.c.b16 %v3297, %v3295
    %v3322 = vpack.c.b16 %v3300, %v3298
    %v3323 = vpack.c.b16 %v3301, %v3299
    %v3324 = vpack.c.b16 %v3304, %v3302
    %v3325 = vpack.c.b16 %v3305, %v3303
    %v3326 = vpack.c.b16 %v3308, %v3306
    %v3327 = vpack.c.b16 %v3309, %v3307
    %v3328 = vpack.c.b16 %v3312, %v3310
    %v3329 = vpack.c.b16 %v3313, %v3311
    %3346 = vmatprep.subr.bf16.mxu0 %v3315
    %3347 = vmatpush1.bf16.msra.mxu0 %v3314
    %3348 = vmatprep.subr.bf16.mxu0 %v3317
    %3349 = vmatpush1.bf16.msra.mxu0 %v3316
    %3350 = vmatprep.subr.bf16.mxu0 %v3319
    %3351 = vmatpush1.bf16.msra.mxu0 %v3318
    %3352 = vmatprep.subr.bf16.mxu0 %v3321
    %3353 = vmatpush1.bf16.msra.mxu0 %v3320
    %3354 = vmatprep.subr.bf16.mxu0 %v3323
    %3355 = vmatpush1.bf16.msra.mxu0 %v3322
    %3356 = vmatprep.subr.bf16.mxu0 %v3325
    %3357 = vmatpush1.bf16.msra.mxu0 %v3324
    %3358 = vmatprep.subr.bf16.mxu0 %v3327
    %3359 = vmatpush1.bf16.msra.mxu0 %v3326
    %3360 = vmatprep.subr.bf16.mxu0 %v3329
    %3361 = vmatpush1.bf16.msra.mxu0 %v3328
    %3362 = vmatprep.subr.bf16.mxu0 0
    %3363 = vmatpush1.bf16.msra.mxu0 0
    %3364 = vmatprep.subr.bf16.mxu0 0
    %3365 = vmatpush1.bf16.msra.mxu0 0
    %3366 = vmatprep.subr.bf16.mxu0 0
    %3367 = vmatpush1.bf16.msra.mxu0 0
    %3368 = vmatprep.subr.bf16.mxu0 0
    %3369 = vmatpush1.bf16.msra.mxu0 0
    %3370 = vmatprep.subr.bf16.mxu0 0
    %3371 = vmatpush1.bf16.msra.mxu0 0
    %3372 = vmatprep.subr.bf16.mxu0 0
    %3373 = vmatpush1.bf16.msra.mxu0 0
    %3374 = vmatprep.subr.bf16.mxu0 0
    %3375 = vmatpush1.bf16.msra.mxu0 0
    %3376 = vmatprep.subr.bf16.mxu0 0
    %3377 = vmatpush1.bf16.msra.mxu0 0
    %3378 = vmatprep.mubr.bf16.mxu0 0
    %3379 = vmatmul.mubr.bf16.gmra.mrb[0].mxu0 %v3230
    %v3380 = vpop.f32.mrb[0].mxu0
    %v3381 = vadd.f32 %v3259, %v3380
    %v3382 = vpop.f32.mrb[0].mxu0
    %v3383 = vadd.f32 %v3263, %v3382
    %v3384 = vpop.f32.mrb[0].mxu0
    %v3385 = vadd.f32 %v3259, %v3384
    %v3386 = vpop.f32.mrb[0].mxu0
    %v3387 = vadd.f32 %v3263, %v3386
    %3388 = vmatprep.mubr.bf16.mxu0 0
    %3389 = vmatmul.mubr.bf16.gmra.mrb[0].mxu0 %v3231
    %v3390 = vpop.f32.mrb[0].mxu0
    %v3391 = vadd.f32 %v3259, %v3390
    %v3392 = vpop.f32.mrb[0].mxu0
    %v3393 = vadd.f32 %v3263, %v3392
    %v3394 = vpop.f32.mrb[0].mxu0
    %v3395 = vadd.f32 %v3259, %v3394
    %v3396 = vpop.f32.mrb[0].mxu0
    %v3397 = vadd.f32 %v3263, %v3396
    %3398 = vmatprep.mubr.bf16.mxu0 0
    %3399 = vmatmul.mubr.bf16.gmra.mrb[0].mxu0 %v3232
    %v3400 = vpop.f32.mrb[0].mxu0
    %v3401 = vadd.f32 %v3259, %v3400
    %v3402 = vpop.f32.mrb[0].mxu0
    %v3403 = vadd.f32 %v3263, %v3402
    %v3404 = vpop.f32.mrb[0].mxu0
    %v3405 = vadd.f32 %v3259, %v3404
    %v3406 = vpop.f32.mrb[0].mxu0
    %v3407 = vadd.f32 %v3263, %v3406
    %3408 = vmatprep.mubr.bf16.mxu0 0
    %3409 = vmatmul.mubr.bf16.gmra.mrb[0].mxu0 %v3233
    %v3410 = vpop.f32.mrb[0].mxu0
    %v3411 = vadd.f32 %v3259, %v3410
    %v3412 = vpop.f32.mrb[0].mxu0
    %v3413 = vadd.f32 %v3263, %v3412
    %v3414 = vpop.f32.mrb[0].mxu0
    %v3415 = vadd.f32 %v3259, %v3414
    %v3416 = vpop.f32.mrb[0].mxu0
    %v3417 = vadd.f32 %v3263, %v3416
    %3418 = vmatprep.mubr.bf16.mxu0 0
    %3419 = vmatmul.mubr.bf16.gmra.mrb[0].mxu0 %v3234
    %v3420 = vpop.f32.mrb[0].mxu0
    %v3421 = vadd.f32 %v3259, %v3420
    %v3422 = vpop.f32.mrb[0].mxu0
    %v3423 = vadd.f32 %v3263, %v3422
    %v3424 = vpop.f32.mrb[0].mxu0
    %v3425 = vadd.f32 %v3259, %v3424
    %v3426 = vpop.f32.mrb[0].mxu0
    %v3427 = vadd.f32 %v3263, %v3426
    %3428 = vmatprep.mubr.bf16.mxu0 0
    %3429 = vmatmul.mubr.bf16.gmra.mrb[0].mxu0 %v3235
    %v3430 = vpop.f32.mrb[0].mxu0
    %v3431 = vadd.f32 %v3259, %v3430
    %v3432 = vpop.f32.mrb[0].mxu0
    %v3433 = vadd.f32 %v3263, %v3432
    %v3434 = vpop.f32.mrb[0].mxu0
    %v3435 = vadd.f32 %v3259, %v3434
    %v3436 = vpop.f32.mrb[0].mxu0
    %v3437 = vadd.f32 %v3263, %v3436
    %3438 = vmatprep.mubr.bf16.mxu0 0
    %3439 = vmatmul.mubr.bf16.gmra.mrb[0].mxu0 %v3236
    %v3440 = vpop.f32.mrb[0].mxu0
    %v3441 = vadd.f32 %v3259, %v3440
    %v3442 = vpop.f32.mrb[0].mxu0
    %v3443 = vadd.f32 %v3263, %v3442
    %v3444 = vpop.f32.mrb[0].mxu0
    %v3445 = vadd.f32 %v3259, %v3444
    %v3446 = vpop.f32.mrb[0].mxu0
    %v3447 = vadd.f32 %v3263, %v3446
    %3448 = vmatprep.mubr.bf16.mxu0 0
    %3449 = vmatmul.mubr.bf16.gmra.mrb[0].mxu0 %v3237
    %v3450 = vpop.f32.mrb[0].mxu0
    %v3451 = vadd.f32 %v3259, %v3450
    %v3452 = vpop.f32.mrb[0].mxu0
    %v3453 = vadd.f32 %v3263, %v3452
    %v3454 = vpop.f32.mrb[0].mxu0
    %v3455 = vadd.f32 %v3259, %v3454
    %v3456 = vpop.f32.mrb[0].mxu0
    %v3457 = vadd.f32 %v3263, %v3456
    %3458 = vdwg.mxu0
    %v3459 = vmul.f32 %v3381, 0.5
    %v3460 = vmul.f32 %v3383, 0.5
    %v3461 = vmul.f32 %v3385, 0.5
    %v3462 = vmul.f32 %v3387, 0.5
    %v3463 = vmul.f32 %v3391, 0.5
    %v3464 = vmul.f32 %v3393, 0.5
    %v3465 = vmul.f32 %v3395, 0.5
    %v3466 = vmul.f32 %v3397, 0.5
    %v3467 = vmul.f32 %v3401, 0.5
    %v3468 = vmul.f32 %v3403, 0.5
    %v3469 = vmul.f32 %v3405, 0.5
    %v3470 = vmul.f32 %v3407, 0.5
    %v3471 = vmul.f32 %v3411, 0.5
    %v3472 = vmul.f32 %v3413, 0.5
    %v3473 = vmul.f32 %v3415, 0.5
    %v3474 = vmul.f32 %v3417, 0.5
    %v3475 = vmul.f32 %v3421, 0.5
    %v3476 = vmul.f32 %v3423, 0.5
    %v3477 = vmul.f32 %v3425, 0.5
    %v3478 = vmul.f32 %v3427, 0.5
    %v3479 = vmul.f32 %v3431, 0.5
    %v3480 = vmul.f32 %v3433, 0.5
    %v3481 = vmul.f32 %v3435, 0.5
    %v3482 = vmul.f32 %v3437, 0.5
    %v3483 = vmul.f32 %v3441, 0.5
    %v3484 = vmul.f32 %v3443, 0.5
    %v3485 = vmul.f32 %v3445, 0.5
    %v3486 = vmul.f32 %v3447, 0.5
    %v3487 = vmul.f32 %v3451, 0.5
    %v3488 = vmul.f32 %v3453, 0.5
    %v3489 = vmul.f32 %v3455, 0.5
    %v3490 = vmul.f32 %v3457, 0.5
    %v3491 = vmul.f32 %v3381, 0.044715
    %v3492 = vmul.f32 %v3383, 0.044715
    %v3493 = vmul.f32 %v3385, 0.044715
    %v3494 = vmul.f32 %v3387, 0.044715
    %v3495 = vmul.f32 %v3391, 0.044715
    %v3496 = vmul.f32 %v3393, 0.044715
    %v3497 = vmul.f32 %v3395, 0.044715
    %v3498 = vmul.f32 %v3397, 0.044715
    %v3499 = vmul.f32 %v3401, 0.044715
    %v3500 = vmul.f32 %v3403, 0.044715
    %v3501 = vmul.f32 %v3405, 0.044715
    %v3502 = vmul.f32 %v3407, 0.044715
    %v3503 = vmul.f32 %v3411, 0.044715
    %v3504 = vmul.f32 %v3413, 0.044715
    %v3505 = vmul.f32 %v3415, 0.044715
    %v3506 = vmul.f32 %v3417, 0.044715
    %v3507 = vmul.f32 %v3421, 0.044715
    %v3508 = vmul.f32 %v3423, 0.044715
    %v3509 = vmul.f32 %v3425, 0.044715
    %v3510 = vmul.f32 %v3427, 0.044715
    %v3511 = vmul.f32 %v3431, 0.044715
    %v3512 = vmul.f32 %v3433, 0.044715
    %v3513 = vmul.f32 %v3435, 0.044715
    %v3514 = vmul.f32 %v3437, 0.044715
    %v3515 = vmul.f32 %v3441, 0.044715
    %v3516 = vmul.f32 %v3443, 0.044715
    %v3517 = vmul.f32 %v3445, 0.044715
    %v3518 = vmul.f32 %v3447, 0.044715
    %v3519 = vmul.f32 %v3451, 0.044715
    %v3520 = vmul.f32 %v3453, 0.044715
    %v3521 = vmul.f32 %v3455, 0.044715
    %v3522 = vmul.f32 %v3457, 0.044715
    %v3523 = vmul.f32 %v3491, %v3381
    %v3524 = vmul.f32 %v3492, %v3383
    %v3525 = vmul.f32 %v3493, %v3385
    %v3526 = vmul.f32 %v3494, %v3387
    %v3527 = vmul.f32 %v3495, %v3391
    %v3528 = vmul.f32 %v3496, %v3393
    %v3529 = vmul.f32 %v3497, %v3395
    %v3530 = vmul.f32 %v3498, %v3397
    %v3531 = vmul.f32 %v3499, %v3401
    %v3532 = vmul.f32 %v3500, %v3403
    %v3533 = vmul.f32 %v3501, %v3405
    %v3534 = vmul.f32 %v3502, %v3407
    %v3535 = vmul.f32 %v3503, %v3411
    %v3536 = vmul.f32 %v3504, %v3413
    %v3537 = vmul.f32 %v3505, %v3415
    %v3538 = vmul.f32 %v3506, %v3417
    %v3539 = vmul.f32 %v3507, %v3421
    %v3540 = vmul.f32 %v3508, %v3423
    %v3541 = vmul.f32 %v3509, %v3425
    %v3542 = vmul.f32 %v3510, %v3427
    %v3543 = vmul.f32 %v3511, %v3431
    %v3544 = vmul.f32 %v3512, %v3433
    %v3545 = vmul.f32 %v3513, %v3435
    %v3546 = vmul.f32 %v3514, %v3437
    %v3547 = vmul.f32 %v3515, %v3441
    %v3548 = vmul.f32 %v3516, %v3443
    %v3549 = vmul.f32 %v3517, %v3445
    %v3550 = vmul.f32 %v3518, %v3447
    %v3551 = vmul.f32 %v3519, %v3451
    %v3552 = vmul.f32 %v3520, %v3453
    %v3553 = vmul.f32 %v3521, %v3455
    %v3554 = vmul.f32 %v3522, %v3457
    %v3555 = vmul.f32 %v3523, %v3381
    %v3556 = vmul.f32 %v3524, %v3383
    %v3557 = vmul.f32 %v3525, %v3385
    %v3558 = vmul.f32 %v3526, %v3387
    %v3559 = vmul.f32 %v3527, %v3391
    %v3560 = vmul.f32 %v3528, %v3393
    %v3561 = vmul.f32 %v3529, %v3395
    %v3562 = vmul.f32 %v3530, %v3397
    %v3563 = vmul.f32 %v3531, %v3401
    %v3564 = vmul.f32 %v3532, %v3403
    %v3565 = vmul.f32 %v3533, %v3405
    %v3566 = vmul.f32 %v3534, %v3407
    %v3567 = vmul.f32 %v3535, %v3411
    %v3568 = vmul.f32 %v3536, %v3413
    %v3569 = vmul.f32 %v3537, %v3415
    %v3570 = vmul.f32 %v3538, %v3417
    %v3571 = vmul.f32 %v3539, %v3421
    %v3572 = vmul.f32 %v3540, %v3423
    %v3573 = vmul.f32 %v3541, %v3425
    %v3574 = vmul.f32 %v3542, %v3427
    %v3575 = vmul.f32 %v3543, %v3431
    %v3576 = vmul.f32 %v3544, %v3433
    %v3577 = vmul.f32 %v3545, %v3435
    %v3578 = vmul.f32 %v3546, %v3437
    %v3579 = vmul.f32 %v3547, %v3441
    %v3580 = vmul.f32 %v3548, %v3443
    %v3581 = vmul.f32 %v3549, %v3445
    %v3582 = vmul.f32 %v3550, %v3447
    %v3583 = vmul.f32 %v3551, %v3451
    %v3584 = vmul.f32 %v3552, %v3453
    %v3585 = vmul.f32 %v3553, %v3455
    %v3586 = vmul.f32 %v3554, %v3457
    %v3587 = vadd.f32 %v3381, %v3555
    %v3588 = vadd.f32 %v3383, %v3556
    %v3589 = vadd.f32 %v3385, %v3557
    %v3590 = vadd.f32 %v3387, %v3558
    %v3591 = vadd.f32 %v3391, %v3559
    %v3592 = vadd.f32 %v3393, %v3560
    %v3593 = vadd.f32 %v3395, %v3561
    %v3594 = vadd.f32 %v3397, %v3562
    %v3595 = vadd.f32 %v3401, %v3563
    %v3596 = vadd.f32 %v3403, %v3564
    %v3597 = vadd.f32 %v3405, %v3565
    %v3598 = vadd.f32 %v3407, %v3566
    %v3599 = vadd.f32 %v3411, %v3567
    %v3600 = vadd.f32 %v3413, %v3568
    %v3601 = vadd.f32 %v3415, %v3569
    %v3602 = vadd.f32 %v3417, %v3570
    %v3603 = vadd.f32 %v3421, %v3571
    %v3604 = vadd.f32 %v3423, %v3572
    %v3605 = vadd.f32 %v3425, %v3573
    %v3606 = vadd.f32 %v3427, %v3574
    %v3607 = vadd.f32 %v3431, %v3575
    %v3608 = vadd.f32 %v3433, %v3576
    %v3609 = vadd.f32 %v3435, %v3577
    %v3610 = vadd.f32 %v3437, %v3578
    %v3611 = vadd.f32 %v3441, %v3579
    %v3612 = vadd.f32 %v3443, %v3580
    %v3613 = vadd.f32 %v3445, %v3581
    %v3614 = vadd.f32 %v3447, %v3582
    %v3615 = vadd.f32 %v3451, %v3583
    %v3616 = vadd.f32 %v3453, %v3584
    %v3617 = vadd.f32 %v3455, %v3585
    %v3618 = vadd.f32 %v3457, %v3586
    %v3619 = vmul.f32 %v3587, 0.7978846
    %v3620 = vmul.f32 %v3588, 0.7978846
    %v3621 = vmul.f32 %v3589, 0.7978846
    %v3622 = vmul.f32 %v3590, 0.7978846
    %v3623 = vmul.f32 %v3591, 0.7978846
    %v3624 = vmul.f32 %v3592, 0.7978846
    %v3625 = vmul.f32 %v3593, 0.7978846
    %v3626 = vmul.f32 %v3594, 0.7978846
    %v3627 = vmul.f32 %v3595, 0.7978846
    %v3628 = vmul.f32 %v3596, 0.7978846
    %v3629 = vmul.f32 %v3597, 0.7978846
    %v3630 = vmul.f32 %v3598, 0.7978846
    %v3631 = vmul.f32 %v3599, 0.7978846
    %v3632 = vmul.f32 %v3600, 0.7978846
    %v3633 = vmul.f32 %v3601, 0.7978846
    %v3634 = vmul.f32 %v3602, 0.7978846
    %v3635 = vmul.f32 %v3603, 0.7978846
    %v3636 = vmul.f32 %v3604, 0.7978846
    %v3637 = vmul.f32 %v3605, 0.7978846
    %v3638 = vmul.f32 %v3606, 0.7978846
    %v3639 = vmul.f32 %v3607, 0.7978846
    %v3640 = vmul.f32 %v3608, 0.7978846
    %v3641 = vmul.f32 %v3609, 0.7978846
    %v3642 = vmul.f32 %v3610, 0.7978846
    %v3643 = vmul.f32 %v3611, 0.7978846
    %v3644 = vmul.f32 %v3612, 0.7978846
    %v3645 = vmul.f32 %v3613, 0.7978846
    %v3646 = vmul.f32 %v3614, 0.7978846
    %v3647 = vmul.f32 %v3615, 0.7978846
    %v3648 = vmul.f32 %v3616, 0.7978846
    %v3649 = vmul.f32 %v3617, 0.7978846
    %v3650 = vmul.f32 %v3618, 0.7978846
    %v3651 = vtanh.pop %v3619
    %v3652 = vtanh.pop %v3620
    %v3653 = vtanh.pop %v3621
    %v3654 = vtanh.pop %v3622
    %v3655 = vtanh.pop %v3623
    %v3656 = vtanh.pop %v3624
    %v3657 = vtanh.pop %v3625
    %v3658 = vtanh.pop %v3626
    %v3659 = vtanh.pop %v3627
    %v3660 = vtanh.pop %v3628
    %v3661 = vtanh.pop %v3629
    %v3662 = vtanh.pop %v3630
    %v3663 = vtanh.pop %v3631
    %v3664 = vtanh.pop %v3632
    %v3665 = vtanh.pop %v3633
    %v3666 = vtanh.pop %v3634
    %v3667 = vtanh.pop %v3635
    %v3668 = vtanh.pop %v3636
    %v3669 = vtanh.pop %v3637
    %v3670 = vtanh.pop %v3638
    %v3671 = vtanh.pop %v3639
    %v3672 = vtanh.pop %v3640
    %v3673 = vtanh.pop %v3641
    %v3674 = vtanh.pop %v3642
    %v3675 = vtanh.pop %v3643
    %v3676 = vtanh.pop %v3644
    %v3677 = vtanh.pop %v3645
    %v3678 = vtanh.pop %v3646
    %v3679 = vtanh.pop %v3647
    %v3680 = vtanh.pop %v3648
    %v3681 = vtanh.pop %v3649
    %v3682 = vtanh.pop %v3650
    %v3683 = vadd.f32 %v3651, 1.0
    %v3684 = vadd.f32 %v3652, 1.0
    %v3685 = vadd.f32 %v3653, 1.0
    %v3686 = vadd.f32 %v3654, 1.0
    %v3687 = vadd.f32 %v3655, 1.0
    %v3688 = vadd.f32 %v3656, 1.0
    %v3689 = vadd.f32 %v3657, 1.0
    %v3690 = vadd.f32 %v3658, 1.0
    %v3691 = vadd.f32 %v3659, 1.0
    %v3692 = vadd.f32 %v3660, 1.0
    %v3693 = vadd.f32 %v3661, 1.0
    %v3694 = vadd.f32 %v3662, 1.0
    %v3695 = vadd.f32 %v3663, 1.0
    %v3696 = vadd.f32 %v3664, 1.0
    %v3697 = vadd.f32 %v3665, 1.0
    %v3698 = vadd.f32 %v3666, 1.0
    %v3699 = vadd.f32 %v3667, 1.0
    %v3700 = vadd.f32 %v3668, 1.0
    %v3701 = vadd.f32 %v3669, 1.0
    %v3702 = vadd.f32 %v3670, 1.0
    %v3703 = vadd.f32 %v3671, 1.0
    %v3704 = vadd.f32 %v3672, 1.0
    %v3705 = vadd.f32 %v3673, 1.0
    %v3706 = vadd.f32 %v3674, 1.0
    %v3707 = vadd.f32 %v3675, 1.0
    %v3708 = vadd.f32 %v3676, 1.0
    %v3709 = vadd.f32 %v3677, 1.0
    %v3710 = vadd.f32 %v3678, 1.0
    %v3711 = vadd.f32 %v3679, 1.0
    %v3712 = vadd.f32 %v3680, 1.0
    %v3713 = vadd.f32 %v3681, 1.0
    %v3714 = vadd.f32 %v3682, 1.0
    %v3715 = vmul.f32 %v3459, %v3683
    %v3716 = vmul.f32 %v3460, %v3684
    %v3717 = vmul.f32 %v3461, %v3685
    %v3718 = vmul.f32 %v3462, %v3686
    %v3719 = vmul.f32 %v3463, %v3687
    %v3720 = vmul.f32 %v3464, %v3688
    %v3721 = vmul.f32 %v3465, %v3689
    %v3722 = vmul.f32 %v3466, %v3690
    %v3723 = vmul.f32 %v3467, %v3691
    %v3724 = vmul.f32 %v3468, %v3692
    %v3725 = vmul.f32 %v3469, %v3693
    %v3726 = vmul.f32 %v3470, %v3694
    %v3727 = vmul.f32 %v3471, %v3695
    %v3728 = vmul.f32 %v3472, %v3696
    %v3729 = vmul.f32 %v3473, %v3697
    %v3730 = vmul.f32 %v3474, %v3698
    %v3731 = vmul.f32 %v3475, %v3699
    %v3732 = vmul.f32 %v3476, %v3700
    %v3733 = vmul.f32 %v3477, %v3701
    %v3734 = vmul.f32 %v3478, %v3702
    %v3735 = vmul.f32 %v3479, %v3703
    %v3736 = vmul.f32 %v3480, %v3704
    %v3737 = vmul.f32 %v3481, %v3705
    %v3738 = vmul.f32 %v3482, %v3706
    %v3739 = vmul.f32 %v3483, %v3707
    %v3740 = vmul.f32 %v3484, %v3708
    %v3741 = vmul.f32 %v3485, %v3709
    %v3742 = vmul.f32 %v3486, %v3710
    %v3743 = vmul.f32 %v3487, %v3711
    %v3744 = vmul.f32 %v3488, %v3712
    %v3745 = vmul.f32 %v3489, %v3713
    %v3746 = vmul.f32 %v3490, %v3714
    %v3747 = vpack.c.bf16 %v3717, %v3715
    %v3748 = vpack.c.bf16 %v3718, %v3716
    %v3749 = vpack.c.bf16 %v3721, %v3719
    %v3750 = vpack.c.bf16 %v3722, %v3720
    %v3751 = vpack.c.bf16 %v3725, %v3723
    %v3752 = vpack.c.bf16 %v3726, %v3724
    %v3753 = vpack.c.bf16 %v3729, %v3727
    %v3754 = vpack.c.bf16 %v3730, %v3728
    %v3755 = vpack.c.bf16 %v3733, %v3731
    %v3756 = vpack.c.bf16 %v3734, %v3732
    %v3757 = vpack.c.bf16 %v3737, %v3735
    %v3758 = vpack.c.bf16 %v3738, %v3736
    %v3759 = vpack.c.bf16 %v3741, %v3739
    %v3760 = vpack.c.bf16 %v3742, %v3740
    %v3761 = vpack.c.bf16 %v3745, %v3743
    %v3762 = vpack.c.bf16 %v3746, %v3744
    %v3763 = vld [vmem:[#allocation11] sm:$0xf]
    %v3764 = vld [vmem:[#allocation11 + $0x4] sm:$0xf]
    %v3765 = vld [vmem:[#allocation11 + $0x8] sm:$0xf]
    %v3766 = vld [vmem:[#allocation11 + $0xc] sm:$0xf]
    %v3767 = vld [vmem:[#allocation11 + $0x10] sm:$0xf]
    %v3768 = vld [vmem:[#allocation11 + $0x14] sm:$0xf]
    %v3769 = vld [vmem:[#allocation11 + $0x18] sm:$0xf]
    %v3770 = vld [vmem:[#allocation11 + $0x1c] sm:$0xf]
    %v3771 = vld [vmem:[#allocation11 + $0x20] sm:$0xf]
    %v3772 = vld [vmem:[#allocation11 + $0x24] sm:$0xf]
    %v3773 = vld [vmem:[#allocation11 + $0x28] sm:$0xf]
    %v3774 = vld [vmem:[#allocation11 + $0x2c] sm:$0xf]
    %v3775 = vld [vmem:[#allocation11 + $0x30] sm:$0xf]
    %v3776 = vld [vmem:[#allocation11 + $0x34] sm:$0xf]
    %v3777 = vld [vmem:[#allocation11 + $0x38] sm:$0xf]
    %v3778 = vld [vmem:[#allocation11 + $0x3c] sm:$0xf]
    %v3779 = vld [vmem:[#allocation11 + $0x40] sm:$0xf]
    %v3780 = vld [vmem:[#allocation11 + $0x44] sm:$0xf]
    %v3781 = vld [vmem:[#allocation11 + $0x48] sm:$0xf]
    %v3782 = vld [vmem:[#allocation11 + $0x4c] sm:$0xf]
    %v3783 = vld [vmem:[#allocation11 + $0x50] sm:$0xf]
    %v3784 = vld [vmem:[#allocation11 + $0x54] sm:$0xf]
    %v3785 = vld [vmem:[#allocation11 + $0x58] sm:$0xf]
    %v3786 = vld [vmem:[#allocation11 + $0x5c] sm:$0xf]
    %v3787 = vld [vmem:[#allocation11 + $0x60] sm:$0xf]
    %v3788 = vld [vmem:[#allocation11 + $0x64] sm:$0xf]
    %v3789 = vld [vmem:[#allocation11 + $0x68] sm:$0xf]
    %v3790 = vld [vmem:[#allocation11 + $0x6c] sm:$0xf]
    %v3791 = vld [vmem:[#allocation11 + $0x70] sm:$0xf]
    %v3792 = vld [vmem:[#allocation11 + $0x74] sm:$0xf]
    %v3793 = vld [vmem:[#allocation11 + $0x78] sm:$0xf]
    %v3794 = vld [vmem:[#allocation11 + $0x7c] sm:$0xf]
    %v3795 = vld [vmem:[%s13] sm:$0x1]
    %v3797 = vlaneseq
    %v3798 = vshrl.u32 %v3797, 7
    %v3799 = vsub.s32 0, %v3798
    %v3800 = vrot.slane %v3795, %v3799
    %v3834 = vunpack.c.l.b16 %v3763
    %v3835 = vunpack.c.l.b16 %v3764
    %v3836 = vunpack.c.l.b16 %v3765
    %v3837 = vunpack.c.l.b16 %v3766
    %v3838 = vunpack.c.l.b16 %v3767
    %v3839 = vunpack.c.l.b16 %v3768
    %v3840 = vunpack.c.l.b16 %v3769
    %v3841 = vunpack.c.l.b16 %v3770
    %v3842 = vunpack.c.l.b16 %v3771
    %v3843 = vunpack.c.l.b16 %v3772
    %v3844 = vunpack.c.l.b16 %v3773
    %v3845 = vunpack.c.l.b16 %v3774
    %v3846 = vunpack.c.l.b16 %v3775
    %v3847 = vunpack.c.l.b16 %v3776
    %v3848 = vunpack.c.l.b16 %v3777
    %v3849 = vunpack.c.l.b16 %v3778
    %v3850 = vunpack.c.l.b16 %v3779
    %v3851 = vunpack.c.l.b16 %v3780
    %v3852 = vunpack.c.l.b16 %v3781
    %v3853 = vunpack.c.l.b16 %v3782
    %v3854 = vunpack.c.l.b16 %v3783
    %v3855 = vunpack.c.l.b16 %v3784
    %v3856 = vunpack.c.l.b16 %v3785
    %v3857 = vunpack.c.l.b16 %v3786
    %v3858 = vunpack.c.l.b16 %v3787
    %v3859 = vunpack.c.l.b16 %v3788
    %v3860 = vunpack.c.l.b16 %v3789
    %v3861 = vunpack.c.l.b16 %v3790
    %v3862 = vunpack.c.l.b16 %v3791
    %v3863 = vunpack.c.l.b16 %v3792
    %v3864 = vunpack.c.l.b16 %v3793
    %v3865 = vunpack.c.l.b16 %v3794
    %v3866 = vpack.c.b16 %v3835, %v3834
    %v3867 = vpack.c.b16 %v3837, %v3836
    %v3868 = vpack.c.b16 %v3839, %v3838
    %v3869 = vpack.c.b16 %v3841, %v3840
    %v3870 = vpack.c.b16 %v3843, %v3842
    %v3871 = vpack.c.b16 %v3845, %v3844
    %v3872 = vpack.c.b16 %v3847, %v3846
    %v3873 = vpack.c.b16 %v3849, %v3848
    %v3874 = vpack.c.b16 %v3851, %v3850
    %v3875 = vpack.c.b16 %v3853, %v3852
    %v3876 = vpack.c.b16 %v3855, %v3854
    %v3877 = vpack.c.b16 %v3857, %v3856
    %v3878 = vpack.c.b16 %v3859, %v3858
    %v3879 = vpack.c.b16 %v3861, %v3860
    %v3880 = vpack.c.b16 %v3863, %v3862
    %v3881 = vpack.c.b16 %v3865, %v3864
    %3898 = vmatprep.subr.bf16.mxu0 0
    %3899 = vmatpush1.bf16.msra.mxu0 %v3866
    %3900 = vmatprep.subr.bf16.mxu0 0
    %3901 = vmatpush1.bf16.msra.mxu0 %v3867
    %3902 = vmatprep.subr.bf16.mxu0 0
    %3903 = vmatpush1.bf16.msra.mxu0 %v3868
    %3904 = vmatprep.subr.bf16.mxu0 0
    %3905 = vmatpush1.bf16.msra.mxu0 %v3869
    %3906 = vmatprep.subr.bf16.mxu0 0
    %3907 = vmatpush1.bf16.msra.mxu0 %v3870
    %3908 = vmatprep.subr.bf16.mxu0 0
    %3909 = vmatpush1.bf16.msra.mxu0 %v3871
    %3910 = vmatprep.subr.bf16.mxu0 0
    %3911 = vmatpush1.bf16.msra.mxu0 %v3872
    %3912 = vmatprep.subr.bf16.mxu0 0
    %3913 = vmatpush1.bf16.msra.mxu0 %v3873
    %3914 = vmatprep.subr.bf16.mxu0 0
    %3915 = vmatpush1.bf16.msra.mxu0 %v3874
    %3916 = vmatprep.subr.bf16.mxu0 0
    %3917 = vmatpush1.bf16.msra.mxu0 %v3875
    %3918 = vmatprep.subr.bf16.mxu0 0
    %3919 = vmatpush1.bf16.msra.mxu0 %v3876
    %3920 = vmatprep.subr.bf16.mxu0 0
    %3921 = vmatpush1.bf16.msra.mxu0 %v3877
    %3922 = vmatprep.subr.bf16.mxu0 0
    %3923 = vmatpush1.bf16.msra.mxu0 %v3878
    %3924 = vmatprep.subr.bf16.mxu0 0
    %3925 = vmatpush1.bf16.msra.mxu0 %v3879
    %3926 = vmatprep.subr.bf16.mxu0 0
    %3927 = vmatpush1.bf16.msra.mxu0 %v3880
    %3928 = vmatprep.subr.bf16.mxu0 0
    %3929 = vmatpush1.bf16.msra.mxu0 %v3881
    %3930 = vmatprep.mubr.bf16.mxu0 %v3748
    %3931 = vmatmul.mubr.bf16.gmra.mrb[0].mxu0 %v3747
    %v3932 = vpop.f32.mrb[0].mxu0
    %v3933 = vadd.f32 %v3800, %v3932
    %v3934 = vpop.f32.mrb[0].mxu0
    %v3935 = vpop.f32.mrb[0].mxu0
    %v3936 = vadd.f32 %v3800, %v3935
    %v3937 = vpop.f32.mrb[0].mxu0
    %3938 = vmatprep.mubr.bf16.mxu0 %v3750
    %3939 = vmatmul.mubr.bf16.gmra.mrb[0].mxu0 %v3749
    %v3940 = vpop.f32.mrb[0].mxu0
    %v3941 = vadd.f32 %v3800, %v3940
    %v3942 = vpop.f32.mrb[0].mxu0
    %v3943 = vpop.f32.mrb[0].mxu0
    %v3944 = vadd.f32 %v3800, %v3943
    %v3945 = vpop.f32.mrb[0].mxu0
    %3946 = vmatprep.mubr.bf16.mxu0 %v3752
    %3947 = vmatmul.mubr.bf16.gmra.mrb[0].mxu0 %v3751
    %v3948 = vpop.f32.mrb[0].mxu0
    %v3949 = vadd.f32 %v3800, %v3948
    %v3950 = vpop.f32.mrb[0].mxu0
    %v3951 = vpop.f32.mrb[0].mxu0
    %v3952 = vadd.f32 %v3800, %v3951
    %v3953 = vpop.f32.mrb[0].mxu0
    %3954 = vmatprep.mubr.bf16.mxu0 %v3754
    %3955 = vmatmul.mubr.bf16.gmra.mrb[0].mxu0 %v3753
    %v3956 = vpop.f32.mrb[0].mxu0
    %v3957 = vadd.f32 %v3800, %v3956
    %v3958 = vpop.f32.mrb[0].mxu0
    %v3959 = vpop.f32.mrb[0].mxu0
    %v3960 = vadd.f32 %v3800, %v3959
    %v3961 = vpop.f32.mrb[0].mxu0
    %3962 = vmatprep.mubr.bf16.mxu0 %v3756
    %3963 = vmatmul.mubr.bf16.gmra.mrb[0].mxu0 %v3755
    %v3964 = vpop.f32.mrb[0].mxu0
    %v3965 = vadd.f32 %v3800, %v3964
    %v3966 = vpop.f32.mrb[0].mxu0
    %v3967 = vpop.f32.mrb[0].mxu0
    %v3968 = vadd.f32 %v3800, %v3967
    %v3969 = vpop.f32.mrb[0].mxu0
    %3970 = vmatprep.mubr.bf16.mxu0 %v3758
    %3971 = vmatmul.mubr.bf16.gmra.mrb[0].mxu0 %v3757
    %v3972 = vpop.f32.mrb[0].mxu0
    %v3973 = vadd.f32 %v3800, %v3972
    %v3974 = vpop.f32.mrb[0].mxu0
    %v3975 = vpop.f32.mrb[0].mxu0
    %v3976 = vadd.f32 %v3800, %v3975
    %v3977 = vpop.f32.mrb[0].mxu0
    %3978 = vmatprep.mubr.bf16.mxu0 %v3760
    %3979 = vmatmul.mubr.bf16.gmra.mrb[0].mxu0 %v3759
    %v3980 = vpop.f32.mrb[0].mxu0
    %v3981 = vadd.f32 %v3800, %v3980
    %v3982 = vpop.f32.mrb[0].mxu0
    %v3983 = vpop.f32.mrb[0].mxu0
    %v3984 = vadd.f32 %v3800, %v3983
    %v3985 = vpop.f32.mrb[0].mxu0
    %3986 = vmatprep.mubr.bf16.mxu0 %v3762
    %3987 = vmatmul.mubr.bf16.gmra.mrb[0].mxu0 %v3761
    %v3988 = vpop.f32.mrb[0].mxu0
    %v3989 = vadd.f32 %v3800, %v3988
    %v3990 = vpop.f32.mrb[0].mxu0
    %v3991 = vpop.f32.mrb[0].mxu0
    %v3992 = vadd.f32 %v3800, %v3991
    %v3993 = vpop.f32.mrb[0].mxu0
    %3994 = vdwg.mxu0
    %v3995 = vadd.f32 %v3933, %v2992
    %v3996 = vadd.f32 %v3936, %v2993
    %v3997 = vadd.f32 %v3941, %v2994
    %v3998 = vadd.f32 %v3944, %v2995
    %v3999 = vadd.f32 %v3949, %v2996
    %v4000 = vadd.f32 %v3952, %v2997
    %v4001 = vadd.f32 %v3957, %v2998
    %v4002 = vadd.f32 %v3960, %v2999
    %v4003 = vadd.f32 %v3965, %v3000
    %v4004 = vadd.f32 %v3968, %v3001
    %v4005 = vadd.f32 %v3973, %v3002
    %v4006 = vadd.f32 %v3976, %v3003
    %v4007 = vadd.f32 %v3981, %v3004
    %v4008 = vadd.f32 %v3984, %v3005
    %v4009 = vadd.f32 %v3989, %v3006
    %v4010 = vadd.f32 %v3992, %v3007
    %4011 = vst [vmem:[#allocation13] sm:$0xff] %v3995
    %4012 = vst [vmem:[#allocation13 + $0x8] sm:$0xff] %v3996
    %4013 = vst [vmem:[#allocation13 + $0x10] sm:$0xff] %v3997
    %4014 = vst [vmem:[#allocation13 + $0x18] sm:$0xff] %v3998
    %4015 = vst [vmem:[#allocation13 + $0x20] sm:$0xff] %v3999
    %4016 = vst [vmem:[#allocation13 + $0x28] sm:$0xff] %v4000
    %4017 = vst [vmem:[#allocation13 + $0x30] sm:$0xff] %v4001
    %4018 = vst [vmem:[#allocation13 + $0x38] sm:$0xff] %v4002
    %4019 = vst [vmem:[#allocation13 + $0x40] sm:$0xff] %v4003
    %4020 = vst [vmem:[#allocation13 + $0x48] sm:$0xff] %v4004
    %4021 = vst [vmem:[#allocation13 + $0x50] sm:$0xff] %v4005
    %4022 = vst [vmem:[#allocation13 + $0x58] sm:$0xff] %v4006
    %4023 = vst [vmem:[#allocation13 + $0x60] sm:$0xff] %v4007
    %4024 = vst [vmem:[#allocation13 + $0x68] sm:$0xff] %v4008
    %4025 = vst [vmem:[#allocation13 + $0x70] sm:$0xff] %v4009
    %4026 = vst [vmem:[#allocation13 + $0x78] sm:$0xff] %v4010
    // Predicated region
    $region82: #{encoder_layer.1} parent=1 // pred_check
      _
    $region83: #{encoder_layer.1} parent=1 // pred_check_branch
      %4028 = sbr.rel (0) target = $region85
    $region84: #{encoder_layer.1} parent=1 // pred_region
      %s4030 = ssub.s32 2048, 2048
      %4031 = vsyncadd [#allocation4], %s4030
      %s4032 = sshll.u32 [#allocation13], 4
      %s4033 = int_to_ptr.vmem [resolvable:$true] %s4032
      %4038 = dma.vmem_to_hbm [thread:$0]  %s4033, 2048, %s14, [#allocation4], 128, 128, 8
    $region85: #{encoder_layer.1} parent=1 // pred_fallthru
      _
    // Predicated region
    $region86: #{encoder_layer.1} parent=1 // pred_check
      _
    $region87: #{encoder_layer.1} parent=1 // pred_check_branch
      %4040 = sbr.rel (0) target = $region89
    $region88: #{encoder_layer.1} parent=1 // pred_region
      %4041 = dma.done [#allocation4], 2048
    $region89: #{encoder_layer.1} parent=1 // pred_fallthru
      _
    %4042 = vsyncpa [#allocation3], 1
    %4043 = vsyncpa [#allocation6], 1
    %4044 = vsyncpa [#allocation9], 1
    %4045 = vsyncpa [#allocation12], 1
    %4046 = vsyncpa [#allocation4], 1

</llo_original>
